<compile_context>
chip_gen: v7x
topology: tpu7x:2x2x1
jax: 0.10.0
libtpu: 0.0.40
codegen_flags: <defaults>
</compile_context>

<pallas_src>
import jax
import jax.numpy as jnp
from jax.experimental import pallas as pl
from jax.experimental.pallas import tpu as pltpu

LANE = 128
SUBLANE_BF16 = 16
HIDDEN = (256, 512, 512)


def _round_up(x, m):
    return ((x + m - 1) // m) * m


def dqn_kernel(x_ref,
               w1_ref, b1_ref,
               w2_ref, b2_ref,
               w3_ref, b3_ref,
               w4_ref, b4_ref,
               out_ref):
    # fc1 + ReLU  (bf16 MXU matmul, f32 accumulate, f32 bias/ReLU on VPU)
    h = jnp.dot(x_ref[...], w1_ref[...], preferred_element_type=jnp.float32)
    h = jnp.maximum(h + b1_ref[...], 0.0).astype(jnp.bfloat16)
    # fc2 + ReLU
    h = jnp.dot(h, w2_ref[...], preferred_element_type=jnp.float32)
    h = jnp.maximum(h + b2_ref[...], 0.0).astype(jnp.bfloat16)
    # fc3 + ReLU
    h = jnp.dot(h, w3_ref[...], preferred_element_type=jnp.float32)
    h = jnp.maximum(h + b3_ref[...], 0.0).astype(jnp.bfloat16)
    # fc4 (no activation) -> q-values, written lane-dense in f32
    q = jnp.dot(h, w4_ref[...], preferred_element_type=jnp.float32)
    out_ref[...] = (q + b4_ref[...]).astype(out_ref.dtype)


def init_linear(key, in_f, out_f):
    """Deterministic PyTorch-style Linear init: U(-1/sqrt(in), 1/sqrt(in))."""
    kw, kb = jax.random.split(key)
    bound = 1.0 / jnp.sqrt(jnp.float32(in_f))
    w = jax.random.uniform(kw, (in_f, out_f), jnp.float32, -bound, bound)
    b = jax.random.uniform(kb, (1, out_f), jnp.float32, -bound, bound)
    return w, b


def make_dqn_params(key, state_dim, action_dim):
    """Unpadded f32 params, [in, out] layout (y = x @ W + b)."""
    dims = [(state_dim, HIDDEN[0]), (HIDDEN[0], HIDDEN[1]),
            (HIDDEN[1], HIDDEN[2]), (HIDDEN[2], action_dim)]
    keys = jax.random.split(key, len(dims))
    return [init_linear(k, i, o) for k, (i, o) in zip(keys, dims)]


def prepare_kernel_params(params):
    """Pad feature dims (K to 16 if narrow, N to 128); weights bf16, biases f32."""
    kparams = []
    for w, b in params:
        in_f, out_f = w.shape
        if in_f < LANE:
            in_pad = _round_up(in_f, SUBLANE_BF16)   # e.g. state_dim 8 -> 16
        else:
            in_pad = _round_up(in_f, LANE)
        out_pad = _round_up(out_f, LANE)             # lane-dense N / output
        wp = jnp.zeros((in_pad, out_pad), jnp.bfloat16).at[:in_f, :out_f].set(
            w.astype(jnp.bfloat16))
        bp = jnp.zeros((1, out_pad), jnp.float32).at[:, :out_f].set(b)
        kparams.append((wp, bp))
    return kparams


def _vmem_limit_bytes(flat_params, TB, state_pad, single_buffer_weights):
    """Actual VMEM footprint + headroom, instead of a blanket 32 MiB."""
    resident = sum(int(p.size) * p.dtype.itemsize for p in flat_params)
    resident *= 1 if single_buffer_weights else 2
    x_bufs = 2 * TB * state_pad * 2                       # double-buffered bf16 in
    out_w = int(flat_params[-2].shape[1])
    out_bufs = 2 * TB * out_w * 4                         # double-buffered f32 out
    act_w = sum(int(p.shape[1]) for p in flat_params[0::2])
    intermediates = TB * act_w * 6                        # f32 + bf16 activations
    total = resident + x_bufs + out_bufs + intermediates + (2 << 20)
    return int(_round_up(total, 1 << 20))


def dqn_forward(x, kernel_params, action_dim):
    """x: [B, state_dim] f32. kernel_params: list of (W_bf16[in_p,out_p], b_f32[1,out_p])."""
    B, state_dim = x.shape
    state_pad = kernel_params[0][0].shape[0]
    out_pad = kernel_params[-1][0].shape[1]

    # Batch tile: >=2 grid tiles when B permits (v7x dual-TC split), cap 256.
    TB = max(SUBLANE_BF16, min(256, _round_up(-(-B // 2), SUBLANE_BF16)))
    B_pad = _round_up(B, TB)
    grid = (B_pad // TB,)

    # Zero-pad input (batch + narrow 16-wide feature pad) and cast to bf16.
    x_pad = jnp.zeros((B_pad, state_pad), jnp.bfloat16)
    x_pad = x_pad.at[:B, :state_dim].set(x.astype(jnp.bfloat16))

    flat_params = [p for wb in kernel_params for p in wb]

    flops = 2 * B_pad * sum(int(w.shape[0]) * int(w.shape[1])
                            for w, _ in kernel_params)
    bytes_accessed = (x_pad.size * x_pad.dtype.itemsize
                      + sum(int(p.size) * p.dtype.itemsize for p in flat_params)
                      + B_pad * out_pad * 4)

    def run(single_buffer_weights):
        # Constant index_map -> weights/biases stay VMEM-resident across all
        # batch tiles; single-buffer them since the block never changes.
        res_mode = ({"pipeline_mode": pl.Buffered(1)}
                    if single_buffer_weights else {})
        in_specs = [pl.BlockSpec((TB, state_pad), lambda i: (i, 0))]
        for p in flat_params:
            in_specs.append(pl.BlockSpec(p.shape, lambda i: (0, 0), **res_mode))
        out = pl.pallas_call(
            dqn_kernel,
            out_shape=jax.ShapeDtypeStruct((B_pad, out_pad), jnp.float32),
            grid=grid,
            in_specs=in_specs,
            out_specs=pl.BlockSpec((TB, out_pad), lambda i: (i, 0)),
            compiler_params=pltpu.CompilerParams(
                dimension_semantics=("parallel",),
                vmem_limit_bytes=_vmem_limit_bytes(
                    flat_params, TB, state_pad, single_buffer_weights),
            ),
            cost_estimate=pl.CostEstimate(
                flops=flops, transcendentals=0, bytes_accessed=bytes_accessed),
        )(x_pad, *flat_params)
        return jax.block_until_ready(out)

    try:
        out = run(single_buffer_weights=True)
    except Exception:
        # Buffered(1) pipeline hint not supported in this build -> default specs.
        out = run(single_buffer_weights=False)

    return out[:B, :action_dim]


def ref_forward_bf16(x, params):
    """Pure-JAX reference with the same bf16-matmul / f32-accumulate recipe."""
    h = x.astype(jnp.bfloat16)
    n = len(params)
    for i, (w, b) in enumerate(params):
        h = jnp.dot(h, w.astype(jnp.bfloat16),
                    preferred_element_type=jnp.float32) + b
        if i < n - 1:
            h = jnp.maximum(h, 0.0).astype(jnp.bfloat16)
    return h


if __name__ == "__main__":
    key = jax.random.PRNGKey(0)
    k_param, k_x = jax.random.split(key)

    batch = 2
    state_dim = 8
    action_dim = 4

    params = make_dqn_params(k_param, state_dim, action_dim)
    kernel_params = prepare_kernel_params(params)
    x = jax.random.normal(k_x, (batch, state_dim), jnp.float32)

    qvals = dqn_forward(x, kernel_params, action_dim)
    jax.block_until_ready(qvals)

    assert qvals.shape == (batch, action_dim)

    # bf16-matched reference (same MXU recipe) is the meaningful check.
    ref_bf16 = ref_forward_bf16(x, params)
    assert jnp.allclose(qvals, ref_bf16, atol=1e-2, rtol=1e-2)

    # Loose sanity check against full-f32 math.
    h = x
    for i, (w, b) in enumerate(params):
        h = h @ w + b
        if i < len(params) - 1:
            h = jnp.maximum(h, 0.0)
    assert jnp.allclose(qvals, h, atol=1e-1, rtol=1e-1)

    print("KERNEL_OK")
</pallas_src>

<mosaic_0001>
module attributes {stable_mosaic.version = 11 : i64} {
  func.func @dqn_kernel(%arg0: i32, %arg1: memref<16x16xbf16, #tpu.memory_space<vmem>>, %arg2: memref<16x256xbf16, #tpu.memory_space<vmem>>, %arg3: memref<1x256xf32, #tpu.memory_space<vmem>>, %arg4: memref<256x512xbf16, #tpu.memory_space<vmem>>, %arg5: memref<1x512xf32, #tpu.memory_space<vmem>>, %arg6: memref<512x512xbf16, #tpu.memory_space<vmem>>, %arg7: memref<1x512xf32, #tpu.memory_space<vmem>>, %arg8: memref<512x128xbf16, #tpu.memory_space<vmem>>, %arg9: memref<1x128xf32, #tpu.memory_space<vmem>>, %arg10: memref<16x128xf32, #tpu.memory_space<vmem>>) attributes {dimension_semantics = [#tpu.dimension_semantics<parallel>], iteration_bounds = array<i64: 1>, scalar_prefetch = 0 : i64, scratch_operands = 0 : i64, tpu.core_type = #tpu.core_type<tc>, window_params = [{transform_indices = @transform_0, window_bounds = array<i64: 16, 16>}, {pipeline_mode = #tpu.pipeline_mode<synchronous>, transform_indices = @transform_1, window_bounds = array<i64: 16, 256>}, {pipeline_mode = #tpu.pipeline_mode<synchronous>, transform_indices = @transform_2, window_bounds = array<i64: 1, 256>}, {pipeline_mode = #tpu.pipeline_mode<synchronous>, transform_indices = @transform_3, window_bounds = array<i64: 256, 512>}, {pipeline_mode = #tpu.pipeline_mode<synchronous>, transform_indices = @transform_4, window_bounds = array<i64: 1, 512>}, {pipeline_mode = #tpu.pipeline_mode<synchronous>, transform_indices = @transform_5, window_bounds = array<i64: 512, 512>}, {pipeline_mode = #tpu.pipeline_mode<synchronous>, transform_indices = @transform_6, window_bounds = array<i64: 1, 512>}, {pipeline_mode = #tpu.pipeline_mode<synchronous>, transform_indices = @transform_7, window_bounds = array<i64: 512, 128>}, {pipeline_mode = #tpu.pipeline_mode<synchronous>, transform_indices = @transform_8, window_bounds = array<i64: 1, 128>}, {transform_indices = @transform_9, window_bounds = array<i64: 16, 128>}]} {
    %c0 = arith.constant 0 : index
    %c0_0 = arith.constant 0 : index
    %0 = vector.load %arg1[%c0, %c0_0] : memref<16x16xbf16, #tpu.memory_space<vmem>>, vector<16x16xbf16>
    %c0_1 = arith.constant 0 : index
    %c0_2 = arith.constant 0 : index
    %1 = vector.load %arg2[%c0_1, %c0_2] : memref<16x256xbf16, #tpu.memory_space<vmem>>, vector<16x256xbf16>
    %cst = arith.constant dense<0.000000e+00> : vector<16x256xf32>
    %2 = tpu.matmul %0, %1, %cst {dimension_numbers = #tpu.dot_dimension_numbers<[1], [0], [0], [1], [0, 0, 1, 1], [], []>} : vector<16x16xbf16>, vector<16x256xbf16>, vector<16x256xf32> -> vector<16x256xf32>
    %c0_3 = arith.constant 0 : index
    %c0_4 = arith.constant 0 : index
    %3 = vector.load %arg3[%c0_3, %c0_4] : memref<1x256xf32, #tpu.memory_space<vmem>>, vector<1x256xf32>
    %4 = vector.broadcast %3 : vector<1x256xf32> to vector<16x256xf32>
    %5 = arith.addf %2, %4 : vector<16x256xf32>
    %cst_5 = arith.constant 0.000000e+00 : f32
    %6 = vector.broadcast %cst_5 : f32 to vector<16x256xf32>
    %7 = arith.maximumf %5, %6 : vector<16x256xf32>
    %8 = arith.truncf %7 : vector<16x256xf32> to vector<16x256xbf16>
    %c0_6 = arith.constant 0 : index
    %c0_7 = arith.constant 0 : index
    %9 = vector.load %arg4[%c0_6, %c0_7] : memref<256x512xbf16, #tpu.memory_space<vmem>>, vector<256x512xbf16>
    %cst_8 = arith.constant dense<0.000000e+00> : vector<16x512xf32>
    %10 = tpu.matmul %8, %9, %cst_8 {dimension_numbers = #tpu.dot_dimension_numbers<[1], [0], [0], [1], [0, 0, 1, 1], [], []>} : vector<16x256xbf16>, vector<256x512xbf16>, vector<16x512xf32> -> vector<16x512xf32>
    %c0_9 = arith.constant 0 : index
    %c0_10 = arith.constant 0 : index
    %11 = vector.load %arg5[%c0_9, %c0_10] : memref<1x512xf32, #tpu.memory_space<vmem>>, vector<1x512xf32>
    %12 = vector.broadcast %11 : vector<1x512xf32> to vector<16x512xf32>
    %13 = arith.addf %10, %12 : vector<16x512xf32>
    %cst_11 = arith.constant 0.000000e+00 : f32
    %14 = vector.broadcast %cst_11 : f32 to vector<16x512xf32>
    %15 = arith.maximumf %13, %14 : vector<16x512xf32>
    %16 = arith.truncf %15 : vector<16x512xf32> to vector<16x512xbf16>
    %c0_12 = arith.constant 0 : index
    %c0_13 = arith.constant 0 : index
    %17 = vector.load %arg6[%c0_12, %c0_13] : memref<512x512xbf16, #tpu.memory_space<vmem>>, vector<512x512xbf16>
    %cst_14 = arith.constant dense<0.000000e+00> : vector<16x512xf32>
    %18 = tpu.matmul %16, %17, %cst_14 {dimension_numbers = #tpu.dot_dimension_numbers<[1], [0], [0], [1], [0, 0, 1, 1], [], []>} : vector<16x512xbf16>, vector<512x512xbf16>, vector<16x512xf32> -> vector<16x512xf32>
    %c0_15 = arith.constant 0 : index
    %c0_16 = arith.constant 0 : index
    %19 = vector.load %arg7[%c0_15, %c0_16] : memref<1x512xf32, #tpu.memory_space<vmem>>, vector<1x512xf32>
    %20 = vector.broadcast %19 : vector<1x512xf32> to vector<16x512xf32>
    %21 = arith.addf %18, %20 : vector<16x512xf32>
    %cst_17 = arith.constant 0.000000e+00 : f32
    %22 = vector.broadcast %cst_17 : f32 to vector<16x512xf32>
    %23 = arith.maximumf %21, %22 : vector<16x512xf32>
    %24 = arith.truncf %23 : vector<16x512xf32> to vector<16x512xbf16>
    %c0_18 = arith.constant 0 : index
    %c0_19 = arith.constant 0 : index
    %25 = vector.load %arg8[%c0_18, %c0_19] : memref<512x128xbf16, #tpu.memory_space<vmem>>, vector<512x128xbf16>
    %cst_20 = arith.constant dense<0.000000e+00> : vector<16x128xf32>
    %26 = tpu.matmul %24, %25, %cst_20 {dimension_numbers = #tpu.dot_dimension_numbers<[1], [0], [0], [1], [0, 0, 1, 1], [], []>} : vector<16x512xbf16>, vector<512x128xbf16>, vector<16x128xf32> -> vector<16x128xf32>
    %c0_21 = arith.constant 0 : index
    %c0_22 = arith.constant 0 : index
    %27 = vector.load %arg9[%c0_21, %c0_22] : memref<1x128xf32, #tpu.memory_space<vmem>>, vector<1x128xf32>
    %28 = vector.broadcast %27 : vector<1x128xf32> to vector<16x128xf32>
    %29 = arith.addf %26, %28 : vector<16x128xf32>
    %c0_23 = arith.constant 0 : index
    %c0_24 = arith.constant 0 : index
    %30 = vector.load %arg10[%c0_23, %c0_24] : memref<16x128xf32, #tpu.memory_space<vmem>>, vector<16x128xf32>
    tpu.vector_store %arg10[%c0_23, %c0_24], %29 {strides = array<i32>} : memref<16x128xf32, #tpu.memory_space<vmem>>, vector<16x128xf32>,
    return
  }
  func.func @transform_0(%arg0: i32) -> (i32, i32) {
    %c0_i32 = arith.constant 0 : i32
    %c0_i32_0 = arith.constant 0 : i32
    return %arg0, %c0_i32 : i32, i32
  }
  func.func @transform_1(%arg0: i32) -> (i32, i32) {
    %c0_i32 = arith.constant 0 : i32
    %c0_i32_0 = arith.constant 0 : i32
    %c0_i32_1 = arith.constant 0 : i32
    return %c0_i32, %c0_i32_0 : i32, i32
  }
  func.func @transform_2(%arg0: i32) -> (i32, i32) {
    %c0_i32 = arith.constant 0 : i32
    %c0_i32_0 = arith.constant 0 : i32
    %c0_i32_1 = arith.constant 0 : i32
    return %c0_i32, %c0_i32_0 : i32, i32
  }
  func.func @transform_3(%arg0: i32) -> (i32, i32) {
    %c0_i32 = arith.constant 0 : i32
    %c0_i32_0 = arith.constant 0 : i32
    %c0_i32_1 = arith.constant 0 : i32
    return %c0_i32, %c0_i32_0 : i32, i32
  }
  func.func @transform_4(%arg0: i32) -> (i32, i32) {
    %c0_i32 = arith.constant 0 : i32
    %c0_i32_0 = arith.constant 0 : i32
    %c0_i32_1 = arith.constant 0 : i32
    return %c0_i32, %c0_i32_0 : i32, i32
  }
  func.func @transform_5(%arg0: i32) -> (i32, i32) {
    %c0_i32 = arith.constant 0 : i32
    %c0_i32_0 = arith.constant 0 : i32
    %c0_i32_1 = arith.constant 0 : i32
    return %c0_i32, %c0_i32_0 : i32, i32
  }
  func.func @transform_6(%arg0: i32) -> (i32, i32) {
    %c0_i32 = arith.constant 0 : i32
    %c0_i32_0 = arith.constant 0 : i32
    %c0_i32_1 = arith.constant 0 : i32
    return %c0_i32, %c0_i32_0 : i32, i32
  }
  func.func @transform_7(%arg0: i32) -> (i32, i32) {
    %c0_i32 = arith.constant 0 : i32
    %c0_i32_0 = arith.constant 0 : i32
    %c0_i32_1 = arith.constant 0 : i32
    return %c0_i32, %c0_i32_0 : i32, i32
  }
  func.func @transform_8(%arg0: i32) -> (i32, i32) {
    %c0_i32 = arith.constant 0 : i32
    %c0_i32_0 = arith.constant 0 : i32
    %c0_i32_1 = arith.constant 0 : i32
    return %c0_i32, %c0_i32_0 : i32, i32
  }
  func.func @transform_9(%arg0: i32) -> (i32, i32) {
    %c0_i32 = arith.constant 0 : i32
    %c0_i32_0 = arith.constant 0 : i32
    return %arg0, %c0_i32 : i32, i32
  }
}

module attributes {stable_mosaic.version = 11 : i64} {
  func.func @dqn_kernel(%arg0: i32, %arg1: memref<16x16xbf16, #tpu.memory_space<vmem>>, %arg2: memref<16x256xbf16, #tpu.memory_space<vmem>>, %arg3: memref<1x256xf32, #tpu.memory_space<vmem>>, %arg4: memref<256x512xbf16, #tpu.memory_space<vmem>>, %arg5: memref<1x512xf32, #tpu.memory_space<vmem>>, %arg6: memref<512x512xbf16, #tpu.memory_space<vmem>>, %arg7: memref<1x512xf32, #tpu.memory_space<vmem>>, %arg8: memref<512x128xbf16, #tpu.memory_space<vmem>>, %arg9: memref<1x128xf32, #tpu.memory_space<vmem>>, %arg10: memref<16x128xf32, #tpu.memory_space<vmem>>) attributes {dimension_semantics = [#tpu.dimension_semantics<parallel>], iteration_bounds = array<i64: 1>, scalar_prefetch = 0 : i64, scratch_operands = 0 : i64, tpu.core_type = #tpu.core_type<tc>, window_params = [{transform_indices = @transform_0, window_bounds = array<i64: 16, 16>}, {pipeline_mode = #tpu.pipeline_mode<synchronous>, transform_indices = @transform_1, window_bounds = array<i64: 16, 256>}, {pipeline_mode = #tpu.pipeline_mode<synchronous>, transform_indices = @transform_2, window_bounds = array<i64: 1, 256>}, {pipeline_mode = #tpu.pipeline_mode<synchronous>, transform_indices = @transform_3, window_bounds = array<i64: 256, 512>}, {pipeline_mode = #tpu.pipeline_mode<synchronous>, transform_indices = @transform_4, window_bounds = array<i64: 1, 512>}, {pipeline_mode = #tpu.pipeline_mode<synchronous>, transform_indices = @transform_5, window_bounds = array<i64: 512, 512>}, {pipeline_mode = #tpu.pipeline_mode<synchronous>, transform_indices = @transform_6, window_bounds = array<i64: 1, 512>}, {pipeline_mode = #tpu.pipeline_mode<synchronous>, transform_indices = @transform_7, window_bounds = array<i64: 512, 128>}, {pipeline_mode = #tpu.pipeline_mode<synchronous>, transform_indices = @transform_8, window_bounds = array<i64: 1, 128>}, {transform_indices = @transform_9, window_bounds = array<i64: 16, 128>}]} {
    %c0 = arith.constant 0 : index
    %c0_0 = arith.constant 0 : index
    %0 = vector.load %arg1[%c0, %c0_0] : memref<16x16xbf16, #tpu.memory_space<vmem>>, vector<16x16xbf16>
    %c0_1 = arith.constant 0 : index
    %c0_2 = arith.constant 0 : index
    %1 = vector.load %arg2[%c0_1, %c0_2] : memref<16x256xbf16, #tpu.memory_space<vmem>>, vector<16x256xbf16>
    %cst = arith.constant dense<0.000000e+00> : vector<16x256xf32>
    %2 = tpu.matmul %0, %1, %cst {dimension_numbers = #tpu.dot_dimension_numbers<[1], [0], [0], [1], [0, 0, 1, 1], [], []>} : vector<16x16xbf16>, vector<16x256xbf16>, vector<16x256xf32> -> vector<16x256xf32>
    %c0_3 = arith.constant 0 : index
    %c0_4 = arith.constant 0 : index
    %3 = vector.load %arg3[%c0_3, %c0_4] : memref<1x256xf32, #tpu.memory_space<vmem>>, vector<1x256xf32>
    %4 = vector.broadcast %3 : vector<1x256xf32> to vector<16x256xf32>
    %5 = arith.addf %2, %4 : vector<16x256xf32>
    %cst_5 = arith.constant 0.000000e+00 : f32
    %6 = vector.broadcast %cst_5 : f32 to vector<16x256xf32>
    %7 = arith.maximumf %5, %6 : vector<16x256xf32>
    %8 = arith.truncf %7 : vector<16x256xf32> to vector<16x256xbf16>
    %c0_6 = arith.constant 0 : index
    %c0_7 = arith.constant 0 : index
    %9 = vector.load %arg4[%c0_6, %c0_7] : memref<256x512xbf16, #tpu.memory_space<vmem>>, vector<256x512xbf16>
    %cst_8 = arith.constant dense<0.000000e+00> : vector<16x512xf32>
    %10 = tpu.matmul %8, %9, %cst_8 {dimension_numbers = #tpu.dot_dimension_numbers<[1], [0], [0], [1], [0, 0, 1, 1], [], []>} : vector<16x256xbf16>, vector<256x512xbf16>, vector<16x512xf32> -> vector<16x512xf32>
    %c0_9 = arith.constant 0 : index
    %c0_10 = arith.constant 0 : index
    %11 = vector.load %arg5[%c0_9, %c0_10] : memref<1x512xf32, #tpu.memory_space<vmem>>, vector<1x512xf32>
    %12 = vector.broadcast %11 : vector<1x512xf32> to vector<16x512xf32>
    %13 = arith.addf %10, %12 : vector<16x512xf32>
    %cst_11 = arith.constant 0.000000e+00 : f32
    %14 = vector.broadcast %cst_11 : f32 to vector<16x512xf32>
    %15 = arith.maximumf %13, %14 : vector<16x512xf32>
    %16 = arith.truncf %15 : vector<16x512xf32> to vector<16x512xbf16>
    %c0_12 = arith.constant 0 : index
    %c0_13 = arith.constant 0 : index
    %17 = vector.load %arg6[%c0_12, %c0_13] : memref<512x512xbf16, #tpu.memory_space<vmem>>, vector<512x512xbf16>
    %cst_14 = arith.constant dense<0.000000e+00> : vector<16x512xf32>
    %18 = tpu.matmul %16, %17, %cst_14 {dimension_numbers = #tpu.dot_dimension_numbers<[1], [0], [0], [1], [0, 0, 1, 1], [], []>} : vector<16x512xbf16>, vector<512x512xbf16>, vector<16x512xf32> -> vector<16x512xf32>
    %c0_15 = arith.constant 0 : index
    %c0_16 = arith.constant 0 : index
    %19 = vector.load %arg7[%c0_15, %c0_16] : memref<1x512xf32, #tpu.memory_space<vmem>>, vector<1x512xf32>
    %20 = vector.broadcast %19 : vector<1x512xf32> to vector<16x512xf32>
    %21 = arith.addf %18, %20 : vector<16x512xf32>
    %cst_17 = arith.constant 0.000000e+00 : f32
    %22 = vector.broadcast %cst_17 : f32 to vector<16x512xf32>
    %23 = arith.maximumf %21, %22 : vector<16x512xf32>
    %24 = arith.truncf %23 : vector<16x512xf32> to vector<16x512xbf16>
    %c0_18 = arith.constant 0 : index
    %c0_19 = arith.constant 0 : index
    %25 = vector.load %arg8[%c0_18, %c0_19] : memref<512x128xbf16, #tpu.memory_space<vmem>>, vector<512x128xbf16>
    %cst_20 = arith.constant dense<0.000000e+00> : vector<16x128xf32>
    %26 = tpu.matmul %24, %25, %cst_20 {dimension_numbers = #tpu.dot_dimension_numbers<[1], [0], [0], [1], [0, 0, 1, 1], [], []>} : vector<16x512xbf16>, vector<512x128xbf16>, vector<16x128xf32> -> vector<16x128xf32>
    %c0_21 = arith.constant 0 : index
    %c0_22 = arith.constant 0 : index
    %27 = vector.load %arg9[%c0_21, %c0_22] : memref<1x128xf32, #tpu.memory_space<vmem>>, vector<1x128xf32>
    %28 = vector.broadcast %27 : vector<1x128xf32> to vector<16x128xf32>
    %29 = arith.addf %26, %28 : vector<16x128xf32>
    %c0_23 = arith.constant 0 : index
    %c0_24 = arith.constant 0 : index
    %30 = vector.load %arg10[%c0_23, %c0_24] : memref<16x128xf32, #tpu.memory_space<vmem>>, vector<16x128xf32>
    tpu.vector_store %arg10[%c0_23, %c0_24], %29 {strides = array<i32>} : memref<16x128xf32, #tpu.memory_space<vmem>>, vector<16x128xf32>,
    return
  }
  func.func @transform_0(%arg0: i32) -> (i32, i32) {
    %c0_i32 = arith.constant 0 : i32
    %c0_i32_0 = arith.constant 0 : i32
    return %arg0, %c0_i32 : i32, i32
  }
  func.func @transform_1(%arg0: i32) -> (i32, i32) {
    %c0_i32 = arith.constant 0 : i32
    %c0_i32_0 = arith.constant 0 : i32
    %c0_i32_1 = arith.constant 0 : i32
    return %c0_i32, %c0_i32_0 : i32, i32
  }
  func.func @transform_2(%arg0: i32) -> (i32, i32) {
    %c0_i32 = arith.constant 0 : i32
    %c0_i32_0 = arith.constant 0 : i32
    %c0_i32_1 = arith.constant 0 : i32
    return %c0_i32, %c0_i32_0 : i32, i32
  }
  func.func @transform_3(%arg0: i32) -> (i32, i32) {
    %c0_i32 = arith.constant 0 : i32
    %c0_i32_0 = arith.constant 0 : i32
    %c0_i32_1 = arith.constant 0 : i32
    return %c0_i32, %c0_i32_0 : i32, i32
  }
  func.func @transform_4(%arg0: i32) -> (i32, i32) {
    %c0_i32 = arith.constant 0 : i32
    %c0_i32_0 = arith.constant 0 : i32
    %c0_i32_1 = arith.constant 0 : i32
    return %c0_i32, %c0_i32_0 : i32, i32
  }
  func.func @transform_5(%arg0: i32) -> (i32, i32) {
    %c0_i32 = arith.constant 0 : i32
    %c0_i32_0 = arith.constant 0 : i32
    %c0_i32_1 = arith.constant 0 : i32
    return %c0_i32, %c0_i32_0 : i32, i32
  }
  func.func @transform_6(%arg0: i32) -> (i32, i32) {
    %c0_i32 = arith.constant 0 : i32
    %c0_i32_0 = arith.constant 0 : i32
    %c0_i32_1 = arith.constant 0 : i32
    return %c0_i32, %c0_i32_0 : i32, i32
  }
  func.func @transform_7(%arg0: i32) -> (i32, i32) {
    %c0_i32 = arith.constant 0 : i32
    %c0_i32_0 = arith.constant 0 : i32
    %c0_i32_1 = arith.constant 0 : i32
    return %c0_i32, %c0_i32_0 : i32, i32
  }
  func.func @transform_8(%arg0: i32) -> (i32, i32) {
    %c0_i32 = arith.constant 0 : i32
    %c0_i32_0 = arith.constant 0 : i32
    %c0_i32_1 = arith.constant 0 : i32
    return %c0_i32, %c0_i32_0 : i32, i32
  }
  func.func @transform_9(%arg0: i32) -> (i32, i32) {
    %c0_i32 = arith.constant 0 : i32
    %c0_i32_0 = arith.constant 0 : i32
    return %arg0, %c0_i32 : i32, i32
  }
}

</mosaic_0001>

<llo_original>
// kernel: tpu_custom_call.1
$region0: #{tpu_custom_call.1}
  #allocation0 [shape = 'u32[]', space=smem, size = 0x4, offset = 0x4, fixed_abs, tag = 'smem constant byte address 0x4 - core index']
  #allocation1 [shape = 'u32[144,128]{1,0:T(1,128)}', space=vmem, size = 0x12000, scoped, tag = 'internal scratch']
  %s0 = inlined_call_operand.hbm [shape: bf16[16,16], index: 0, kind: input, shape index: {}]
  %s1 = inlined_call_operand.hbm [shape: bf16[16,256], index: 1, kind: input, shape index: {}]
  %s2 = inlined_call_operand.vmem [shape: f32[1,256], index: 2, kind: input, shape index: {}]
  %s3 = inlined_call_operand.hbm [shape: bf16[256,512], index: 3, kind: input, shape index: {}]
  %s4 = inlined_call_operand.vmem [shape: f32[1,512], index: 4, kind: input, shape index: {}]
  %s5 = inlined_call_operand.hbm [shape: bf16[512,512], index: 5, kind: input, shape index: {}]
  %s6 = inlined_call_operand.vmem [shape: f32[1,512], index: 6, kind: input, shape index: {}]
  %s7 = inlined_call_operand.hbm [shape: bf16[512,128], index: 7, kind: input, shape index: {}]
  %s8 = inlined_call_operand.vmem [shape: f32[1,128], index: 8, kind: input, shape index: {}]
  %s9 = inlined_call_operand.hbm [shape: f32[16,128], index: 9, kind: output, shape index: {}]
  %s10 = sld [smem:[#allocation0]]
  $region66: #{tpu_custom_call.1} parent=0
    _
  %s12 = ssub.s32 1, %s10
  %s13 = scalar_select 0, %s12, %s10
  $region1: #{tpu_custom_call.1} parent=0
    #allocation2 [shape = 'u8[4096]{0}', space=vmem, size = 0x1000, scoped, tag = 'input window, operand 0, single buffered']
    #allocation3 [shape = 's32[1]{0}', space=sflag, size = 0x4, scoped, tag = 'scoped memory for tpu_custom_call.1']
    #allocation4 [shape = 's32[1]{0}', space=sflag, size = 0x4, scoped, tag = 'scoped memory for tpu_custom_call.1']
    #allocation5 [shape = 'u8[8192]{0}', space=vmem, size = 0x2000, scoped, tag = 'input window, operand 1, single buffered']
    #allocation6 [shape = 's32[1]{0}', space=sflag, size = 0x4, scoped, tag = 'scoped memory for tpu_custom_call.1']
    #allocation7 [shape = 'u8[262144]{0}', space=vmem, size = 0x40000, scoped, tag = 'input window, operand 3, single buffered']
    #allocation8 [shape = 'u8[524288]{0}', space=vmem, size = 0x80000, scoped, tag = 'input window, operand 5, single buffered']
    #allocation9 [shape = 's32[1]{0}', space=sflag, size = 0x4, scoped, tag = 'scoped memory for tpu_custom_call.1']
    #allocation10 [shape = 'u8[131072]{0}', space=vmem, size = 0x20000, scoped, tag = 'input window, operand 7, single buffered']
    #allocation11 [shape = 'u8[8192]{0}', space=vmem, size = 0x2000, scoped, tag = 'output window, operand 0, single buffered']
    %14 = vsyncpa [#allocation3], 0
    %15 = vsyncpa [#allocation6], 0
    %16 = vsyncpa [#allocation9], 0
    %17 = vsyncpa [#allocation4], 0
    // Predicated region
    $region2: #{tpu_custom_call.1} parent=1 // pred_check
      _
    $region3: #{tpu_custom_call.1} parent=1 // pred_check_branch
      %19 = sbr.rel (0) target = $region5
    $region4: #{tpu_custom_call.1} parent=1 // pred_region
      %s21 = ssub.s32 128, 128
      %22 = vsyncadd [#allocation3], %s21
      %s23 = sshll.u32 [#allocation2], 4
      %s24 = int_to_ptr.vmem [resolvable:$true] %s23
      %29 = dma.hbm_to_vmem [thread:$0]  %s0, 128, %s24, [#allocation3], 64, 64, 4
    $region5: #{tpu_custom_call.1} parent=1 // pred_fallthru
      _
    // Predicated region
    $region6: #{tpu_custom_call.1} parent=1 // pred_check
      _
    $region7: #{tpu_custom_call.1} parent=1 // pred_check_branch
      %31 = sbr.rel (0) target = $region9
    $region8: #{tpu_custom_call.1} parent=1 // pred_region
      %s33 = ssub.s32 256, 256
      %34 = vsyncadd [#allocation6], %s33
      %s35 = sshll.u32 [#allocation5], 4
      %s36 = int_to_ptr.vmem [resolvable:$true] %s35
      %41 = dma.hbm_to_vmem [thread:$0]  %s1, 256, %s36, [#allocation6], 128, 128, 8
    $region9: #{tpu_custom_call.1} parent=1 // pred_fallthru
      _
    // Predicated region
    $region10: #{tpu_custom_call.1} parent=1 // pred_check
      _
    $region11: #{tpu_custom_call.1} parent=1 // pred_check_branch
      %43 = sbr.rel (0) target = $region13
    $region12: #{tpu_custom_call.1} parent=1 // pred_region
      _
    $region13: #{tpu_custom_call.1} parent=1 // pred_fallthru
      _
    // Predicated region
    $region14: #{tpu_custom_call.1} parent=1 // pred_check
      _
    $region15: #{tpu_custom_call.1} parent=1 // pred_check_branch
      %45 = sbr.rel (0) target = $region17
    $region16: #{tpu_custom_call.1} parent=1 // pred_region
      %s47 = ssub.s32 8192, 8192
      %48 = vsyncadd [#allocation6], %s47
      %s49 = sshll.u32 [#allocation7], 4
      %s50 = int_to_ptr.vmem [resolvable:$true] %s49
      %55 = dma.hbm_to_vmem [thread:$0]  %s3, 8192, %s50, [#allocation6], 256, 256, 16
    $region17: #{tpu_custom_call.1} parent=1 // pred_fallthru
      _
    // Predicated region
    $region18: #{tpu_custom_call.1} parent=1 // pred_check
      _
    $region19: #{tpu_custom_call.1} parent=1 // pred_check_branch
      %57 = sbr.rel (0) target = $region21
    $region20: #{tpu_custom_call.1} parent=1 // pred_region
      _
    $region21: #{tpu_custom_call.1} parent=1 // pred_fallthru
      _
    // Predicated region
    $region22: #{tpu_custom_call.1} parent=1 // pred_check
      _
    $region23: #{tpu_custom_call.1} parent=1 // pred_check_branch
      %59 = sbr.rel (0) target = $region25
    $region24: #{tpu_custom_call.1} parent=1 // pred_region
      %s61 = ssub.s32 16384, 16384
      %62 = vsyncadd [#allocation9], %s61
      %s63 = sshll.u32 [#allocation8], 4
      %s64 = int_to_ptr.vmem [resolvable:$true] %s63
      %69 = dma.hbm_to_vmem [thread:$0]  %s5, 16384, %s64, [#allocation9], 256, 256, 16
    $region25: #{tpu_custom_call.1} parent=1 // pred_fallthru
      _
    // Predicated region
    $region26: #{tpu_custom_call.1} parent=1 // pred_check
      _
    $region27: #{tpu_custom_call.1} parent=1 // pred_check_branch
      %71 = sbr.rel (0) target = $region29
    $region28: #{tpu_custom_call.1} parent=1 // pred_region
      _
    $region29: #{tpu_custom_call.1} parent=1 // pred_fallthru
      _
    // Predicated region
    $region30: #{tpu_custom_call.1} parent=1 // pred_check
      _
    $region31: #{tpu_custom_call.1} parent=1 // pred_check_branch
      %73 = sbr.rel (0) target = $region33
    $region32: #{tpu_custom_call.1} parent=1 // pred_region
      %s75 = ssub.s32 4096, 4096
      %76 = vsyncadd [#allocation9], %s75
      %s77 = sshll.u32 [#allocation10], 4
      %s78 = int_to_ptr.vmem [resolvable:$true] %s77
      %83 = dma.hbm_to_vmem [thread:$0]  %s7, 4096, %s78, [#allocation9], 64, 64, 4
    $region33: #{tpu_custom_call.1} parent=1 // pred_fallthru
      _
    // Predicated region
    $region34: #{tpu_custom_call.1} parent=1 // pred_check
      _
    $region35: #{tpu_custom_call.1} parent=1 // pred_check_branch
      %85 = sbr.rel (0) target = $region37
    $region36: #{tpu_custom_call.1} parent=1 // pred_region
      _
    $region37: #{tpu_custom_call.1} parent=1 // pred_fallthru
      _
    // Predicated region
    $region38: #{tpu_custom_call.1} parent=1 // pred_check
      _
    $region39: #{tpu_custom_call.1} parent=1 // pred_check_branch
      %87 = sbr.rel (0) target = $region41
    $region40: #{tpu_custom_call.1} parent=1 // pred_region
      %88 = dma.done [#allocation3], 128
    $region41: #{tpu_custom_call.1} parent=1 // pred_fallthru
      _
    // Predicated region
    $region42: #{tpu_custom_call.1} parent=1 // pred_check
      _
    $region43: #{tpu_custom_call.1} parent=1 // pred_check_branch
      %90 = sbr.rel (0) target = $region45
    $region44: #{tpu_custom_call.1} parent=1 // pred_region
      %91 = dma.done [#allocation6], 256
    $region45: #{tpu_custom_call.1} parent=1 // pred_fallthru
      _
    // Predicated region
    $region46: #{tpu_custom_call.1} parent=1 // pred_check
      _
    $region47: #{tpu_custom_call.1} parent=1 // pred_check_branch
      %93 = sbr.rel (0) target = $region49
    $region48: #{tpu_custom_call.1} parent=1 // pred_region
      %94 = dma.done [#allocation6], 8192
    $region49: #{tpu_custom_call.1} parent=1 // pred_fallthru
      _
    // Predicated region
    $region50: #{tpu_custom_call.1} parent=1 // pred_check
      _
    $region51: #{tpu_custom_call.1} parent=1 // pred_check_branch
      %96 = sbr.rel (0) target = $region53
    $region52: #{tpu_custom_call.1} parent=1 // pred_region
      %97 = dma.done [#allocation9], 16384
    $region53: #{tpu_custom_call.1} parent=1 // pred_fallthru
      _
    // Predicated region
    $region54: #{tpu_custom_call.1} parent=1 // pred_check
      _
    $region55: #{tpu_custom_call.1} parent=1 // pred_check_branch
      %99 = sbr.rel (0) target = $region57
    $region56: #{tpu_custom_call.1} parent=1 // pred_region
      %100 = dma.done [#allocation9], 4096
    $region57: #{tpu_custom_call.1} parent=1 // pred_fallthru
      _
    %v102 = vld [vmem:[#allocation2] sm:$0xf]
    %v103 = vld [vmem:[#allocation2 + $0x4] sm:$0xf]
    %v104 = vld [vmem:[#allocation5] sm:$0xff]
    %v105 = vld [vmem:[#allocation5 + $0x8] sm:$0xff]
    %v106 = vld [vmem:[%s2] sm:$0x3]
    %v108 = vlaneseq
    %v109 = vshrl.u32 %v108, 7
    %v110 = vsub.s32 0, %v109
    %v111 = vrot.slane %v106, %v110
    %v112 = vlaneseq
    %v113 = vshrl.u32 %v112, 7
    %v114 = vsub.s32 1, %v113
    %v115 = vrot.slane %v106, %v114
    %v120 = vunpack.c.l.b16 %v102
    %v121 = vunpack.c.l.b16 %v103
    %v122 = vpack.c.b16 %v121, %v120
    %v125 = vunpack.c.l.b16 %v104
    %v126 = vunpack.c.h.b16 %v104
    %v127 = vunpack.c.l.b16 %v105
    %v128 = vunpack.c.h.b16 %v105
    %v129 = vpack.c.b16 %v127, %v125
    %v130 = vpack.c.b16 %v128, %v126
    %vm133 = vcmask 130048
    %v135 = vsel %vm133, %v122, 0
    %137 = vmatprep.subr.bf16.mxu0 %v130
    %138 = vmatpush1.bf16.msra.mxu0 %v129
    %139 = vmatprep.subr.bf16.mxu0 0
    %140 = vmatpush1.bf16.msra.mxu0 0
    %141 = vmatprep.subr.bf16.mxu0 0
    %142 = vmatpush1.bf16.msra.mxu0 0
    %143 = vmatprep.subr.bf16.mxu0 0
    %144 = vmatpush1.bf16.msra.mxu0 0
    %145 = vmatprep.subr.bf16.mxu0 0
    %146 = vmatpush1.bf16.msra.mxu0 0
    %147 = vmatprep.subr.bf16.mxu0 0
    %148 = vmatpush1.bf16.msra.mxu0 0
    %149 = vmatprep.subr.bf16.mxu0 0
    %150 = vmatpush1.bf16.msra.mxu0 0
    %151 = vmatprep.subr.bf16.mxu0 0
    %152 = vmatpush1.bf16.msra.mxu0 0
    %153 = vmatprep.subr.bf16.mxu0 0
    %154 = vmatpush1.bf16.msra.mxu0 0
    %155 = vmatprep.subr.bf16.mxu0 0
    %156 = vmatpush1.bf16.msra.mxu0 0
    %157 = vmatprep.subr.bf16.mxu0 0
    %158 = vmatpush1.bf16.msra.mxu0 0
    %159 = vmatprep.subr.bf16.mxu0 0
    %160 = vmatpush1.bf16.msra.mxu0 0
    %161 = vmatprep.subr.bf16.mxu0 0
    %162 = vmatpush1.bf16.msra.mxu0 0
    %163 = vmatprep.subr.bf16.mxu0 0
    %164 = vmatpush1.bf16.msra.mxu0 0
    %165 = vmatprep.subr.bf16.mxu0 0
    %166 = vmatpush1.bf16.msra.mxu0 0
    %167 = vmatprep.subr.bf16.mxu0 0
    %168 = vmatpush1.bf16.msra.mxu0 0
    %169 = vmatprep.mubr.bf16.mxu0 0
    %170 = vmatmul.mubr.bf16.gmra.mrb[0].mxu0 %v135
    %v171 = vpop.f32.mrb[0].mxu0
    %v172 = vadd.f32 %v111, %v171
    %v173 = vpop.f32.mrb[0].mxu0
    %v174 = vadd.f32 %v115, %v173
    %v175 = vpop.f32.mrb[0].mxu0
    %v176 = vadd.f32 %v111, %v175
    %v177 = vpop.f32.mrb[0].mxu0
    %v178 = vadd.f32 %v115, %v177
    %179 = vdwg.mxu0
    %v180 = vmax.f32 %v172, 0.0
    %v181 = vmax.f32 %v174, 0.0
    %v182 = vmax.f32 %v176, 0.0
    %v183 = vmax.f32 %v178, 0.0
    %v184 = vpack.c.bf16 %v182, %v180
    %v185 = vpack.c.bf16 %v183, %v181
    %v186 = vld [vmem:[#allocation7] sm:$0xff]
    %v187 = vld [vmem:[#allocation7 + $0x8] sm:$0xff]
    %v188 = vld [vmem:[#allocation7 + $0x10] sm:$0xff]
    %v189 = vld [vmem:[#allocation7 + $0x18] sm:$0xff]
    %v190 = vld [vmem:[#allocation7 + $0x20] sm:$0xff]
    %v191 = vld [vmem:[#allocation7 + $0x28] sm:$0xff]
    %v192 = vld [vmem:[#allocation7 + $0x30] sm:$0xff]
    %v193 = vld [vmem:[#allocation7 + $0x38] sm:$0xff]
    %v194 = vld [vmem:[#allocation7 + $0x40] sm:$0xff]
    %v195 = vld [vmem:[#allocation7 + $0x48] sm:$0xff]
    %v196 = vld [vmem:[#allocation7 + $0x50] sm:$0xff]
    %v197 = vld [vmem:[#allocation7 + $0x58] sm:$0xff]
    %v198 = vld [vmem:[#allocation7 + $0x60] sm:$0xff]
    %v199 = vld [vmem:[#allocation7 + $0x68] sm:$0xff]
    %v200 = vld [vmem:[#allocation7 + $0x70] sm:$0xff]
    %v201 = vld [vmem:[#allocation7 + $0x78] sm:$0xff]
    %v202 = vld [vmem:[#allocation7 + $0x80] sm:$0xff]
    %v203 = vld [vmem:[#allocation7 + $0x88] sm:$0xff]
    %v204 = vld [vmem:[#allocation7 + $0x90] sm:$0xff]
    %v205 = vld [vmem:[#allocation7 + $0x98] sm:$0xff]
    %v206 = vld [vmem:[#allocation7 + $0xa0] sm:$0xff]
    %v207 = vld [vmem:[#allocation7 + $0xa8] sm:$0xff]
    %v208 = vld [vmem:[#allocation7 + $0xb0] sm:$0xff]
    %v209 = vld [vmem:[#allocation7 + $0xb8] sm:$0xff]
    %v210 = vld [vmem:[#allocation7 + $0xc0] sm:$0xff]
    %v211 = vld [vmem:[#allocation7 + $0xc8] sm:$0xff]
    %v212 = vld [vmem:[#allocation7 + $0xd0] sm:$0xff]
    %v213 = vld [vmem:[#allocation7 + $0xd8] sm:$0xff]
    %v214 = vld [vmem:[#allocation7 + $0xe0] sm:$0xff]
    %v215 = vld [vmem:[#allocation7 + $0xe8] sm:$0xff]
    %v216 = vld [vmem:[#allocation7 + $0xf0] sm:$0xff]
    %v217 = vld [vmem:[#allocation7 + $0xf8] sm:$0xff]
    %v218 = vld [vmem:[#allocation7 + $0x100] sm:$0xff]
    %v219 = vld [vmem:[#allocation7 + $0x108] sm:$0xff]
    %v220 = vld [vmem:[#allocation7 + $0x110] sm:$0xff]
    %v221 = vld [vmem:[#allocation7 + $0x118] sm:$0xff]
    %v222 = vld [vmem:[#allocation7 + $0x120] sm:$0xff]
    %v223 = vld [vmem:[#allocation7 + $0x128] sm:$0xff]
    %v224 = vld [vmem:[#allocation7 + $0x130] sm:$0xff]
    %v225 = vld [vmem:[#allocation7 + $0x138] sm:$0xff]
    %v226 = vld [vmem:[#allocation7 + $0x140] sm:$0xff]
    %v227 = vld [vmem:[#allocation7 + $0x148] sm:$0xff]
    %v228 = vld [vmem:[#allocation7 + $0x150] sm:$0xff]
    %v229 = vld [vmem:[#allocation7 + $0x158] sm:$0xff]
    %v230 = vld [vmem:[#allocation7 + $0x160] sm:$0xff]
    %v231 = vld [vmem:[#allocation7 + $0x168] sm:$0xff]
    %v232 = vld [vmem:[#allocation7 + $0x170] sm:$0xff]
    %v233 = vld [vmem:[#allocation7 + $0x178] sm:$0xff]
    %v234 = vld [vmem:[#allocation7 + $0x180] sm:$0xff]
    %v235 = vld [vmem:[#allocation7 + $0x188] sm:$0xff]
    %v236 = vld [vmem:[#allocation7 + $0x190] sm:$0xff]
    %v237 = vld [vmem:[#allocation7 + $0x198] sm:$0xff]
    %v238 = vld [vmem:[#allocation7 + $0x1a0] sm:$0xff]
    %v239 = vld [vmem:[#allocation7 + $0x1a8] sm:$0xff]
    %v240 = vld [vmem:[#allocation7 + $0x1b0] sm:$0xff]
    %v241 = vld [vmem:[#allocation7 + $0x1b8] sm:$0xff]
    %v242 = vld [vmem:[#allocation7 + $0x1c0] sm:$0xff]
    %v243 = vld [vmem:[#allocation7 + $0x1c8] sm:$0xff]
    %v244 = vld [vmem:[#allocation7 + $0x1d0] sm:$0xff]
    %v245 = vld [vmem:[#allocation7 + $0x1d8] sm:$0xff]
    %v246 = vld [vmem:[#allocation7 + $0x1e0] sm:$0xff]
    %v247 = vld [vmem:[#allocation7 + $0x1e8] sm:$0xff]
    %v248 = vld [vmem:[#allocation7 + $0x1f0] sm:$0xff]
    %v249 = vld [vmem:[#allocation7 + $0x1f8] sm:$0xff]
    %v250 = vld [vmem:[%s4] sm:$0xf]
    %v252 = vlaneseq
    %v253 = vshrl.u32 %v252, 7
    %v254 = vsub.s32 0, %v253
    %v255 = vrot.slane %v250, %v254
    %v256 = vlaneseq
    %v257 = vshrl.u32 %v256, 7
    %v258 = vsub.s32 1, %v257
    %v259 = vrot.slane %v250, %v258
    %v260 = vlaneseq
    %v261 = vshrl.u32 %v260, 7
    %v262 = vsub.s32 2, %v261
    %v263 = vrot.slane %v250, %v262
    %v264 = vlaneseq
    %v265 = vshrl.u32 %v264, 7
    %v266 = vsub.s32 3, %v265
    %v267 = vrot.slane %v250, %v266
    %v336 = vunpack.c.l.b16 %v186
    %v337 = vunpack.c.h.b16 %v186
    %v338 = vunpack.c.l.b16 %v187
    %v339 = vunpack.c.h.b16 %v187
    %v340 = vunpack.c.l.b16 %v188
    %v341 = vunpack.c.h.b16 %v188
    %v342 = vunpack.c.l.b16 %v189
    %v343 = vunpack.c.h.b16 %v189
    %v344 = vunpack.c.l.b16 %v190
    %v345 = vunpack.c.h.b16 %v190
    %v346 = vunpack.c.l.b16 %v191
    %v347 = vunpack.c.h.b16 %v191
    %v348 = vunpack.c.l.b16 %v192
    %v349 = vunpack.c.h.b16 %v192
    %v350 = vunpack.c.l.b16 %v193
    %v351 = vunpack.c.h.b16 %v193
    %v352 = vunpack.c.l.b16 %v194
    %v353 = vunpack.c.h.b16 %v194
    %v354 = vunpack.c.l.b16 %v195
    %v355 = vunpack.c.h.b16 %v195
    %v356 = vunpack.c.l.b16 %v196
    %v357 = vunpack.c.h.b16 %v196
    %v358 = vunpack.c.l.b16 %v197
    %v359 = vunpack.c.h.b16 %v197
    %v360 = vunpack.c.l.b16 %v198
    %v361 = vunpack.c.h.b16 %v198
    %v362 = vunpack.c.l.b16 %v199
    %v363 = vunpack.c.h.b16 %v199
    %v364 = vunpack.c.l.b16 %v200
    %v365 = vunpack.c.h.b16 %v200
    %v366 = vunpack.c.l.b16 %v201
    %v367 = vunpack.c.h.b16 %v201
    %v368 = vunpack.c.l.b16 %v202
    %v369 = vunpack.c.h.b16 %v202
    %v370 = vunpack.c.l.b16 %v203
    %v371 = vunpack.c.h.b16 %v203
    %v372 = vunpack.c.l.b16 %v204
    %v373 = vunpack.c.h.b16 %v204
    %v374 = vunpack.c.l.b16 %v205
    %v375 = vunpack.c.h.b16 %v205
    %v376 = vunpack.c.l.b16 %v206
    %v377 = vunpack.c.h.b16 %v206
    %v378 = vunpack.c.l.b16 %v207
    %v379 = vunpack.c.h.b16 %v207
    %v380 = vunpack.c.l.b16 %v208
    %v381 = vunpack.c.h.b16 %v208
    %v382 = vunpack.c.l.b16 %v209
    %v383 = vunpack.c.h.b16 %v209
    %v384 = vunpack.c.l.b16 %v210
    %v385 = vunpack.c.h.b16 %v210
    %v386 = vunpack.c.l.b16 %v211
    %v387 = vunpack.c.h.b16 %v211
    %v388 = vunpack.c.l.b16 %v212
    %v389 = vunpack.c.h.b16 %v212
    %v390 = vunpack.c.l.b16 %v213
    %v391 = vunpack.c.h.b16 %v213
    %v392 = vunpack.c.l.b16 %v214
    %v393 = vunpack.c.h.b16 %v214
    %v394 = vunpack.c.l.b16 %v215
    %v395 = vunpack.c.h.b16 %v215
    %v396 = vunpack.c.l.b16 %v216
    %v397 = vunpack.c.h.b16 %v216
    %v398 = vunpack.c.l.b16 %v217
    %v399 = vunpack.c.h.b16 %v217
    %v400 = vunpack.c.l.b16 %v218
    %v401 = vunpack.c.h.b16 %v218
    %v402 = vunpack.c.l.b16 %v219
    %v403 = vunpack.c.h.b16 %v219
    %v404 = vunpack.c.l.b16 %v220
    %v405 = vunpack.c.h.b16 %v220
    %v406 = vunpack.c.l.b16 %v221
    %v407 = vunpack.c.h.b16 %v221
    %v408 = vunpack.c.l.b16 %v222
    %v409 = vunpack.c.h.b16 %v222
    %v410 = vunpack.c.l.b16 %v223
    %v411 = vunpack.c.h.b16 %v223
    %v412 = vunpack.c.l.b16 %v224
    %v413 = vunpack.c.h.b16 %v224
    %v414 = vunpack.c.l.b16 %v225
    %v415 = vunpack.c.h.b16 %v225
    %v416 = vunpack.c.l.b16 %v226
    %v417 = vunpack.c.h.b16 %v226
    %v418 = vunpack.c.l.b16 %v227
    %v419 = vunpack.c.h.b16 %v227
    %v420 = vunpack.c.l.b16 %v228
    %v421 = vunpack.c.h.b16 %v228
    %v422 = vunpack.c.l.b16 %v229
    %v423 = vunpack.c.h.b16 %v229
    %v424 = vunpack.c.l.b16 %v230
    %v425 = vunpack.c.h.b16 %v230
    %v426 = vunpack.c.l.b16 %v231
    %v427 = vunpack.c.h.b16 %v231
    %v428 = vunpack.c.l.b16 %v232
    %v429 = vunpack.c.h.b16 %v232
    %v430 = vunpack.c.l.b16 %v233
    %v431 = vunpack.c.h.b16 %v233
    %v432 = vunpack.c.l.b16 %v234
    %v433 = vunpack.c.h.b16 %v234
    %v434 = vunpack.c.l.b16 %v235
    %v435 = vunpack.c.h.b16 %v235
    %v436 = vunpack.c.l.b16 %v236
    %v437 = vunpack.c.h.b16 %v236
    %v438 = vunpack.c.l.b16 %v237
    %v439 = vunpack.c.h.b16 %v237
    %v440 = vunpack.c.l.b16 %v238
    %v441 = vunpack.c.h.b16 %v238
    %v442 = vunpack.c.l.b16 %v239
    %v443 = vunpack.c.h.b16 %v239
    %v444 = vunpack.c.l.b16 %v240
    %v445 = vunpack.c.h.b16 %v240
    %v446 = vunpack.c.l.b16 %v241
    %v447 = vunpack.c.h.b16 %v241
    %v448 = vunpack.c.l.b16 %v242
    %v449 = vunpack.c.h.b16 %v242
    %v450 = vunpack.c.l.b16 %v243
    %v451 = vunpack.c.h.b16 %v243
    %v452 = vunpack.c.l.b16 %v244
    %v453 = vunpack.c.h.b16 %v244
    %v454 = vunpack.c.l.b16 %v245
    %v455 = vunpack.c.h.b16 %v245
    %v456 = vunpack.c.l.b16 %v246
    %v457 = vunpack.c.h.b16 %v246
    %v458 = vunpack.c.l.b16 %v247
    %v459 = vunpack.c.h.b16 %v247
    %v460 = vunpack.c.l.b16 %v248
    %v461 = vunpack.c.h.b16 %v248
    %v462 = vunpack.c.l.b16 %v249
    %v463 = vunpack.c.h.b16 %v249
    %v464 = vpack.c.b16 %v340, %v336
    %v465 = vpack.c.b16 %v341, %v337
    %v466 = vpack.c.b16 %v342, %v338
    %v467 = vpack.c.b16 %v343, %v339
    %v468 = vpack.c.b16 %v348, %v344
    %v469 = vpack.c.b16 %v349, %v345
    %v470 = vpack.c.b16 %v350, %v346
    %v471 = vpack.c.b16 %v351, %v347
    %v472 = vpack.c.b16 %v356, %v352
    %v473 = vpack.c.b16 %v357, %v353
    %v474 = vpack.c.b16 %v358, %v354
    %v475 = vpack.c.b16 %v359, %v355
    %v476 = vpack.c.b16 %v364, %v360
    %v477 = vpack.c.b16 %v365, %v361
    %v478 = vpack.c.b16 %v366, %v362
    %v479 = vpack.c.b16 %v367, %v363
    %v480 = vpack.c.b16 %v372, %v368
    %v481 = vpack.c.b16 %v373, %v369
    %v482 = vpack.c.b16 %v374, %v370
    %v483 = vpack.c.b16 %v375, %v371
    %v484 = vpack.c.b16 %v380, %v376
    %v485 = vpack.c.b16 %v381, %v377
    %v486 = vpack.c.b16 %v382, %v378
    %v487 = vpack.c.b16 %v383, %v379
    %v488 = vpack.c.b16 %v388, %v384
    %v489 = vpack.c.b16 %v389, %v385
    %v490 = vpack.c.b16 %v390, %v386
    %v491 = vpack.c.b16 %v391, %v387
    %v492 = vpack.c.b16 %v396, %v392
    %v493 = vpack.c.b16 %v397, %v393
    %v494 = vpack.c.b16 %v398, %v394
    %v495 = vpack.c.b16 %v399, %v395
    %v496 = vpack.c.b16 %v404, %v400
    %v497 = vpack.c.b16 %v405, %v401
    %v498 = vpack.c.b16 %v406, %v402
    %v499 = vpack.c.b16 %v407, %v403
    %v500 = vpack.c.b16 %v412, %v408
    %v501 = vpack.c.b16 %v413, %v409
    %v502 = vpack.c.b16 %v414, %v410
    %v503 = vpack.c.b16 %v415, %v411
    %v504 = vpack.c.b16 %v420, %v416
    %v505 = vpack.c.b16 %v421, %v417
    %v506 = vpack.c.b16 %v422, %v418
    %v507 = vpack.c.b16 %v423, %v419
    %v508 = vpack.c.b16 %v428, %v424
    %v509 = vpack.c.b16 %v429, %v425
    %v510 = vpack.c.b16 %v430, %v426
    %v511 = vpack.c.b16 %v431, %v427
    %v512 = vpack.c.b16 %v436, %v432
    %v513 = vpack.c.b16 %v437, %v433
    %v514 = vpack.c.b16 %v438, %v434
    %v515 = vpack.c.b16 %v439, %v435
    %v516 = vpack.c.b16 %v444, %v440
    %v517 = vpack.c.b16 %v445, %v441
    %v518 = vpack.c.b16 %v446, %v442
    %v519 = vpack.c.b16 %v447, %v443
    %v520 = vpack.c.b16 %v452, %v448
    %v521 = vpack.c.b16 %v453, %v449
    %v522 = vpack.c.b16 %v454, %v450
    %v523 = vpack.c.b16 %v455, %v451
    %v524 = vpack.c.b16 %v460, %v456
    %v525 = vpack.c.b16 %v461, %v457
    %v526 = vpack.c.b16 %v462, %v458
    %v527 = vpack.c.b16 %v463, %v459
    %592 = vmatprep.subr.bf16.mxu0 %v465
    %593 = vmatpush1.bf16.msra.mxu0 %v464
    %594 = vmatprep.subr.bf16.mxu0 %v469
    %595 = vmatpush1.bf16.msra.mxu0 %v468
    %596 = vmatprep.subr.bf16.mxu0 %v473
    %597 = vmatpush1.bf16.msra.mxu0 %v472
    %598 = vmatprep.subr.bf16.mxu0 %v477
    %599 = vmatpush1.bf16.msra.mxu0 %v476
    %600 = vmatprep.subr.bf16.mxu0 %v481
    %601 = vmatpush1.bf16.msra.mxu0 %v480
    %602 = vmatprep.subr.bf16.mxu0 %v485
    %603 = vmatpush1.bf16.msra.mxu0 %v484
    %604 = vmatprep.subr.bf16.mxu0 %v489
    %605 = vmatpush1.bf16.msra.mxu0 %v488
    %606 = vmatprep.subr.bf16.mxu0 %v493
    %607 = vmatpush1.bf16.msra.mxu0 %v492
    %608 = vmatprep.subr.bf16.mxu0 %v497
    %609 = vmatpush1.bf16.msra.mxu0 %v496
    %610 = vmatprep.subr.bf16.mxu0 %v501
    %611 = vmatpush1.bf16.msra.mxu0 %v500
    %612 = vmatprep.subr.bf16.mxu0 %v505
    %613 = vmatpush1.bf16.msra.mxu0 %v504
    %614 = vmatprep.subr.bf16.mxu0 %v509
    %615 = vmatpush1.bf16.msra.mxu0 %v508
    %616 = vmatprep.subr.bf16.mxu0 %v513
    %617 = vmatpush1.bf16.msra.mxu0 %v512
    %618 = vmatprep.subr.bf16.mxu0 %v517
    %619 = vmatpush1.bf16.msra.mxu0 %v516
    %620 = vmatprep.subr.bf16.mxu0 %v521
    %621 = vmatpush1.bf16.msra.mxu0 %v520
    %622 = vmatprep.subr.bf16.mxu0 %v525
    %623 = vmatpush1.bf16.msra.mxu0 %v524
    %624 = vmatprep.mubr.bf16.mxu0 %v185
    %625 = vmatmul.mubr.bf16.gmra.mrb[0].mxu0 %v184
    %v626 = vpop.f32.mrb[0].mxu0
    %v627 = vadd.f32 %v255, %v626
    %v628 = vpop.f32.mrb[0].mxu0
    %v629 = vadd.f32 %v259, %v628
    %v630 = vpop.f32.mrb[0].mxu0
    %v631 = vadd.f32 %v255, %v630
    %v632 = vpop.f32.mrb[0].mxu0
    %v633 = vadd.f32 %v259, %v632
    %634 = vdwg.mxu0
    %635 = vmatprep.subr.bf16.mxu0 %v467
    %636 = vmatpush1.bf16.msra.mxu0 %v466
    %637 = vmatprep.subr.bf16.mxu0 %v471
    %638 = vmatpush1.bf16.msra.mxu0 %v470
    %639 = vmatprep.subr.bf16.mxu0 %v475
    %640 = vmatpush1.bf16.msra.mxu0 %v474
    %641 = vmatprep.subr.bf16.mxu0 %v479
    %642 = vmatpush1.bf16.msra.mxu0 %v478
    %643 = vmatprep.subr.bf16.mxu0 %v483
    %644 = vmatpush1.bf16.msra.mxu0 %v482
    %645 = vmatprep.subr.bf16.mxu0 %v487
    %646 = vmatpush1.bf16.msra.mxu0 %v486
    %647 = vmatprep.subr.bf16.mxu0 %v491
    %648 = vmatpush1.bf16.msra.mxu0 %v490
    %649 = vmatprep.subr.bf16.mxu0 %v495
    %650 = vmatpush1.bf16.msra.mxu0 %v494
    %651 = vmatprep.subr.bf16.mxu0 %v499
    %652 = vmatpush1.bf16.msra.mxu0 %v498
    %653 = vmatprep.subr.bf16.mxu0 %v503
    %654 = vmatpush1.bf16.msra.mxu0 %v502
    %655 = vmatprep.subr.bf16.mxu0 %v507
    %656 = vmatpush1.bf16.msra.mxu0 %v506
    %657 = vmatprep.subr.bf16.mxu0 %v511
    %658 = vmatpush1.bf16.msra.mxu0 %v510
    %659 = vmatprep.subr.bf16.mxu0 %v515
    %660 = vmatpush1.bf16.msra.mxu0 %v514
    %661 = vmatprep.subr.bf16.mxu0 %v519
    %662 = vmatpush1.bf16.msra.mxu0 %v518
    %663 = vmatprep.subr.bf16.mxu0 %v523
    %664 = vmatpush1.bf16.msra.mxu0 %v522
    %665 = vmatprep.subr.bf16.mxu0 %v527
    %666 = vmatpush1.bf16.msra.mxu0 %v526
    %667 = vmatprep.mubr.bf16.mxu0 %v185
    %668 = vmatmul.mubr.bf16.gmra.mrb[0].mxu0 %v184
    %v669 = vpop.f32.mrb[0].mxu0
    %v670 = vadd.f32 %v263, %v669
    %v671 = vpop.f32.mrb[0].mxu0
    %v672 = vadd.f32 %v267, %v671
    %v673 = vpop.f32.mrb[0].mxu0
    %v674 = vadd.f32 %v263, %v673
    %v675 = vpop.f32.mrb[0].mxu0
    %v676 = vadd.f32 %v267, %v675
    %677 = vdwg.mxu0
    %v678 = vmax.f32 %v627, 0.0
    %v679 = vmax.f32 %v629, 0.0
    %v680 = vmax.f32 %v670, 0.0
    %v681 = vmax.f32 %v672, 0.0
    %v682 = vmax.f32 %v631, 0.0
    %v683 = vmax.f32 %v633, 0.0
    %v684 = vmax.f32 %v674, 0.0
    %v685 = vmax.f32 %v676, 0.0
    %v686 = vpack.c.bf16 %v682, %v678
    %v687 = vpack.c.bf16 %v683, %v679
    %v688 = vpack.c.bf16 %v684, %v680
    %v689 = vpack.c.bf16 %v685, %v681
    %v690 = vld [vmem:[#allocation8] sm:$0xff]
    %v691 = vld [vmem:[#allocation8 + $0x8] sm:$0xff]
    %v692 = vld [vmem:[#allocation8 + $0x10] sm:$0xff]
    %v693 = vld [vmem:[#allocation8 + $0x18] sm:$0xff]
    %v694 = vld [vmem:[#allocation8 + $0x20] sm:$0xff]
    %v695 = vld [vmem:[#allocation8 + $0x28] sm:$0xff]
    %v696 = vld [vmem:[#allocation8 + $0x30] sm:$0xff]
    %v697 = vld [vmem:[#allocation8 + $0x38] sm:$0xff]
    %v698 = vld [vmem:[#allocation8 + $0x40] sm:$0xff]
    %v699 = vld [vmem:[#allocation8 + $0x48] sm:$0xff]
    %v700 = vld [vmem:[#allocation8 + $0x50] sm:$0xff]
    %v701 = vld [vmem:[#allocation8 + $0x58] sm:$0xff]
    %v702 = vld [vmem:[#allocation8 + $0x60] sm:$0xff]
    %v703 = vld [vmem:[#allocation8 + $0x68] sm:$0xff]
    %v704 = vld [vmem:[#allocation8 + $0x70] sm:$0xff]
    %v705 = vld [vmem:[#allocation8 + $0x78] sm:$0xff]
    %v706 = vld [vmem:[#allocation8 + $0x80] sm:$0xff]
    %v707 = vld [vmem:[#allocation8 + $0x88] sm:$0xff]
    %v708 = vld [vmem:[#allocation8 + $0x90] sm:$0xff]
    %v709 = vld [vmem:[#allocation8 + $0x98] sm:$0xff]
    %v710 = vld [vmem:[#allocation8 + $0xa0] sm:$0xff]
    %v711 = vld [vmem:[#allocation8 + $0xa8] sm:$0xff]
    %v712 = vld [vmem:[#allocation8 + $0xb0] sm:$0xff]
    %v713 = vld [vmem:[#allocation8 + $0xb8] sm:$0xff]
    %v714 = vld [vmem:[#allocation8 + $0xc0] sm:$0xff]
    %v715 = vld [vmem:[#allocation8 + $0xc8] sm:$0xff]
    %v716 = vld [vmem:[#allocation8 + $0xd0] sm:$0xff]
    %v717 = vld [vmem:[#allocation8 + $0xd8] sm:$0xff]
    %v718 = vld [vmem:[#allocation8 + $0xe0] sm:$0xff]
    %v719 = vld [vmem:[#allocation8 + $0xe8] sm:$0xff]
    %v720 = vld [vmem:[#allocation8 + $0xf0] sm:$0xff]
    %v721 = vld [vmem:[#allocation8 + $0xf8] sm:$0xff]
    %v722 = vld [vmem:[#allocation8 + $0x100] sm:$0xff]
    %v723 = vld [vmem:[#allocation8 + $0x108] sm:$0xff]
    %v724 = vld [vmem:[#allocation8 + $0x110] sm:$0xff]
    %v725 = vld [vmem:[#allocation8 + $0x118] sm:$0xff]
    %v726 = vld [vmem:[#allocation8 + $0x120] sm:$0xff]
    %v727 = vld [vmem:[#allocation8 + $0x128] sm:$0xff]
    %v728 = vld [vmem:[#allocation8 + $0x130] sm:$0xff]
    %v729 = vld [vmem:[#allocation8 + $0x138] sm:$0xff]
    %v730 = vld [vmem:[#allocation8 + $0x140] sm:$0xff]
    %v731 = vld [vmem:[#allocation8 + $0x148] sm:$0xff]
    %v732 = vld [vmem:[#allocation8 + $0x150] sm:$0xff]
    %v733 = vld [vmem:[#allocation8 + $0x158] sm:$0xff]
    %v734 = vld [vmem:[#allocation8 + $0x160] sm:$0xff]
    %v735 = vld [vmem:[#allocation8 + $0x168] sm:$0xff]
    %v736 = vld [vmem:[#allocation8 + $0x170] sm:$0xff]
    %v737 = vld [vmem:[#allocation8 + $0x178] sm:$0xff]
    %v738 = vld [vmem:[#allocation8 + $0x180] sm:$0xff]
    %v739 = vld [vmem:[#allocation8 + $0x188] sm:$0xff]
    %v740 = vld [vmem:[#allocation8 + $0x190] sm:$0xff]
    %v741 = vld [vmem:[#allocation8 + $0x198] sm:$0xff]
    %v742 = vld [vmem:[#allocation8 + $0x1a0] sm:$0xff]
    %v743 = vld [vmem:[#allocation8 + $0x1a8] sm:$0xff]
    %v744 = vld [vmem:[#allocation8 + $0x1b0] sm:$0xff]
    %v745 = vld [vmem:[#allocation8 + $0x1b8] sm:$0xff]
    %v746 = vld [vmem:[#allocation8 + $0x1c0] sm:$0xff]
    %v747 = vld [vmem:[#allocation8 + $0x1c8] sm:$0xff]
    %v748 = vld [vmem:[#allocation8 + $0x1d0] sm:$0xff]
    %v749 = vld [vmem:[#allocation8 + $0x1d8] sm:$0xff]
    %v750 = vld [vmem:[#allocation8 + $0x1e0] sm:$0xff]
    %v751 = vld [vmem:[#allocation8 + $0x1e8] sm:$0xff]
    %v752 = vld [vmem:[#allocation8 + $0x1f0] sm:$0xff]
    %v753 = vld [vmem:[#allocation8 + $0x1f8] sm:$0xff]
    %v754 = vld [vmem:[#allocation8 + $0x200] sm:$0xff]
    %v755 = vld [vmem:[#allocation8 + $0x208] sm:$0xff]
    %v756 = vld [vmem:[#allocation8 + $0x210] sm:$0xff]
    %v757 = vld [vmem:[#allocation8 + $0x218] sm:$0xff]
    %v758 = vld [vmem:[#allocation8 + $0x220] sm:$0xff]
    %v759 = vld [vmem:[#allocation8 + $0x228] sm:$0xff]
    %v760 = vld [vmem:[#allocation8 + $0x230] sm:$0xff]
    %v761 = vld [vmem:[#allocation8 + $0x238] sm:$0xff]
    %v762 = vld [vmem:[#allocation8 + $0x240] sm:$0xff]
    %v763 = vld [vmem:[#allocation8 + $0x248] sm:$0xff]
    %v764 = vld [vmem:[#allocation8 + $0x250] sm:$0xff]
    %v765 = vld [vmem:[#allocation8 + $0x258] sm:$0xff]
    %v766 = vld [vmem:[#allocation8 + $0x260] sm:$0xff]
    %v767 = vld [vmem:[#allocation8 + $0x268] sm:$0xff]
    %v768 = vld [vmem:[#allocation8 + $0x270] sm:$0xff]
    %v769 = vld [vmem:[#allocation8 + $0x278] sm:$0xff]
    %v770 = vld [vmem:[#allocation8 + $0x280] sm:$0xff]
    %v771 = vld [vmem:[#allocation8 + $0x288] sm:$0xff]
    %v772 = vld [vmem:[#allocation8 + $0x290] sm:$0xff]
    %v773 = vld [vmem:[#allocation8 + $0x298] sm:$0xff]
    %v774 = vld [vmem:[#allocation8 + $0x2a0] sm:$0xff]
    %v775 = vld [vmem:[#allocation8 + $0x2a8] sm:$0xff]
    %v776 = vld [vmem:[#allocation8 + $0x2b0] sm:$0xff]
    %v777 = vld [vmem:[#allocation8 + $0x2b8] sm:$0xff]
    %v778 = vld [vmem:[#allocation8 + $0x2c0] sm:$0xff]
    %v779 = vld [vmem:[#allocation8 + $0x2c8] sm:$0xff]
    %v780 = vld [vmem:[#allocation8 + $0x2d0] sm:$0xff]
    %v781 = vld [vmem:[#allocation8 + $0x2d8] sm:$0xff]
    %v782 = vld [vmem:[#allocation8 + $0x2e0] sm:$0xff]
    %v783 = vld [vmem:[#allocation8 + $0x2e8] sm:$0xff]
    %v784 = vld [vmem:[#allocation8 + $0x2f0] sm:$0xff]
    %v785 = vld [vmem:[#allocation8 + $0x2f8] sm:$0xff]
    %v786 = vld [vmem:[#allocation8 + $0x300] sm:$0xff]
    %v787 = vld [vmem:[#allocation8 + $0x308] sm:$0xff]
    %v788 = vld [vmem:[#allocation8 + $0x310] sm:$0xff]
    %v789 = vld [vmem:[#allocation8 + $0x318] sm:$0xff]
    %v790 = vld [vmem:[#allocation8 + $0x320] sm:$0xff]
    %v791 = vld [vmem:[#allocation8 + $0x328] sm:$0xff]
    %v792 = vld [vmem:[#allocation8 + $0x330] sm:$0xff]
    %v793 = vld [vmem:[#allocation8 + $0x338] sm:$0xff]
    %v794 = vld [vmem:[#allocation8 + $0x340] sm:$0xff]
    %v795 = vld [vmem:[#allocation8 + $0x348] sm:$0xff]
    %v796 = vld [vmem:[#allocation8 + $0x350] sm:$0xff]
    %v797 = vld [vmem:[#allocation8 + $0x358] sm:$0xff]
    %v798 = vld [vmem:[#allocation8 + $0x360] sm:$0xff]
    %v799 = vld [vmem:[#allocation8 + $0x368] sm:$0xff]
    %v800 = vld [vmem:[#allocation8 + $0x370] sm:$0xff]
    %v801 = vld [vmem:[#allocation8 + $0x378] sm:$0xff]
    %v802 = vld [vmem:[#allocation8 + $0x380] sm:$0xff]
    %v803 = vld [vmem:[#allocation8 + $0x388] sm:$0xff]
    %v804 = vld [vmem:[#allocation8 + $0x390] sm:$0xff]
    %v805 = vld [vmem:[#allocation8 + $0x398] sm:$0xff]
    %v806 = vld [vmem:[#allocation8 + $0x3a0] sm:$0xff]
    %v807 = vld [vmem:[#allocation8 + $0x3a8] sm:$0xff]
    %v808 = vld [vmem:[#allocation8 + $0x3b0] sm:$0xff]
    %v809 = vld [vmem:[#allocation8 + $0x3b8] sm:$0xff]
    %v810 = vld [vmem:[#allocation8 + $0x3c0] sm:$0xff]
    %v811 = vld [vmem:[#allocation8 + $0x3c8] sm:$0xff]
    %v812 = vld [vmem:[#allocation8 + $0x3d0] sm:$0xff]
    %v813 = vld [vmem:[#allocation8 + $0x3d8] sm:$0xff]
    %v814 = vld [vmem:[#allocation8 + $0x3e0] sm:$0xff]
    %v815 = vld [vmem:[#allocation8 + $0x3e8] sm:$0xff]
    %v816 = vld [vmem:[#allocation8 + $0x3f0] sm:$0xff]
    %v817 = vld [vmem:[#allocation8 + $0x3f8] sm:$0xff]
    %v818 = vld [vmem:[%s6] sm:$0xf]
    %v820 = vlaneseq
    %v821 = vshrl.u32 %v820, 7
    %v822 = vsub.s32 0, %v821
    %v823 = vrot.slane %v818, %v822
    %v824 = vlaneseq
    %v825 = vshrl.u32 %v824, 7
    %v826 = vsub.s32 1, %v825
    %v827 = vrot.slane %v818, %v826
    %v828 = vlaneseq
    %v829 = vshrl.u32 %v828, 7
    %v830 = vsub.s32 2, %v829
    %v831 = vrot.slane %v818, %v830
    %v832 = vlaneseq
    %v833 = vshrl.u32 %v832, 7
    %v834 = vsub.s32 3, %v833
    %v835 = vrot.slane %v818, %v834
    %v968 = vunpack.c.l.b16 %v690
    %v969 = vunpack.c.h.b16 %v690
    %v970 = vunpack.c.l.b16 %v691
    %v971 = vunpack.c.h.b16 %v691
    %v972 = vunpack.c.l.b16 %v692
    %v973 = vunpack.c.h.b16 %v692
    %v974 = vunpack.c.l.b16 %v693
    %v975 = vunpack.c.h.b16 %v693
    %v976 = vunpack.c.l.b16 %v694
    %v977 = vunpack.c.h.b16 %v694
    %v978 = vunpack.c.l.b16 %v695
    %v979 = vunpack.c.h.b16 %v695
    %v980 = vunpack.c.l.b16 %v696
    %v981 = vunpack.c.h.b16 %v696
    %v982 = vunpack.c.l.b16 %v697
    %v983 = vunpack.c.h.b16 %v697
    %v984 = vunpack.c.l.b16 %v698
    %v985 = vunpack.c.h.b16 %v698
    %v986 = vunpack.c.l.b16 %v699
    %v987 = vunpack.c.h.b16 %v699
    %v988 = vunpack.c.l.b16 %v700
    %v989 = vunpack.c.h.b16 %v700
    %v990 = vunpack.c.l.b16 %v701
    %v991 = vunpack.c.h.b16 %v701
    %v992 = vunpack.c.l.b16 %v702
    %v993 = vunpack.c.h.b16 %v702
    %v994 = vunpack.c.l.b16 %v703
    %v995 = vunpack.c.h.b16 %v703
    %v996 = vunpack.c.l.b16 %v704
    %v997 = vunpack.c.h.b16 %v704
    %v998 = vunpack.c.l.b16 %v705
    %v999 = vunpack.c.h.b16 %v705
    %v1000 = vunpack.c.l.b16 %v706
    %v1001 = vunpack.c.h.b16 %v706
    %v1002 = vunpack.c.l.b16 %v707
    %v1003 = vunpack.c.h.b16 %v707
    %v1004 = vunpack.c.l.b16 %v708
    %v1005 = vunpack.c.h.b16 %v708
    %v1006 = vunpack.c.l.b16 %v709
    %v1007 = vunpack.c.h.b16 %v709
    %v1008 = vunpack.c.l.b16 %v710
    %v1009 = vunpack.c.h.b16 %v710
    %v1010 = vunpack.c.l.b16 %v711
    %v1011 = vunpack.c.h.b16 %v711
    %v1012 = vunpack.c.l.b16 %v712
    %v1013 = vunpack.c.h.b16 %v712
    %v1014 = vunpack.c.l.b16 %v713
    %v1015 = vunpack.c.h.b16 %v713
    %v1016 = vunpack.c.l.b16 %v714
    %v1017 = vunpack.c.h.b16 %v714
    %v1018 = vunpack.c.l.b16 %v715
    %v1019 = vunpack.c.h.b16 %v715
    %v1020 = vunpack.c.l.b16 %v716
    %v1021 = vunpack.c.h.b16 %v716
    %v1022 = vunpack.c.l.b16 %v717
    %v1023 = vunpack.c.h.b16 %v717
    %v1024 = vunpack.c.l.b16 %v718
    %v1025 = vunpack.c.h.b16 %v718
    %v1026 = vunpack.c.l.b16 %v719
    %v1027 = vunpack.c.h.b16 %v719
    %v1028 = vunpack.c.l.b16 %v720
    %v1029 = vunpack.c.h.b16 %v720
    %v1030 = vunpack.c.l.b16 %v721
    %v1031 = vunpack.c.h.b16 %v721
    %v1032 = vunpack.c.l.b16 %v722
    %v1033 = vunpack.c.h.b16 %v722
    %v1034 = vunpack.c.l.b16 %v723
    %v1035 = vunpack.c.h.b16 %v723
    %v1036 = vunpack.c.l.b16 %v724
    %v1037 = vunpack.c.h.b16 %v724
    %v1038 = vunpack.c.l.b16 %v725
    %v1039 = vunpack.c.h.b16 %v725
    %v1040 = vunpack.c.l.b16 %v726
    %v1041 = vunpack.c.h.b16 %v726
    %v1042 = vunpack.c.l.b16 %v727
    %v1043 = vunpack.c.h.b16 %v727
    %v1044 = vunpack.c.l.b16 %v728
    %v1045 = vunpack.c.h.b16 %v728
    %v1046 = vunpack.c.l.b16 %v729
    %v1047 = vunpack.c.h.b16 %v729
    %v1048 = vunpack.c.l.b16 %v730
    %v1049 = vunpack.c.h.b16 %v730
    %v1050 = vunpack.c.l.b16 %v731
    %v1051 = vunpack.c.h.b16 %v731
    %v1052 = vunpack.c.l.b16 %v732
    %v1053 = vunpack.c.h.b16 %v732
    %v1054 = vunpack.c.l.b16 %v733
    %v1055 = vunpack.c.h.b16 %v733
    %v1056 = vunpack.c.l.b16 %v734
    %v1057 = vunpack.c.h.b16 %v734
    %v1058 = vunpack.c.l.b16 %v735
    %v1059 = vunpack.c.h.b16 %v735
    %v1060 = vunpack.c.l.b16 %v736
    %v1061 = vunpack.c.h.b16 %v736
    %v1062 = vunpack.c.l.b16 %v737
    %v1063 = vunpack.c.h.b16 %v737
    %v1064 = vunpack.c.l.b16 %v738
    %v1065 = vunpack.c.h.b16 %v738
    %v1066 = vunpack.c.l.b16 %v739
    %v1067 = vunpack.c.h.b16 %v739
    %v1068 = vunpack.c.l.b16 %v740
    %v1069 = vunpack.c.h.b16 %v740
    %v1070 = vunpack.c.l.b16 %v741
    %v1071 = vunpack.c.h.b16 %v741
    %v1072 = vunpack.c.l.b16 %v742
    %v1073 = vunpack.c.h.b16 %v742
    %v1074 = vunpack.c.l.b16 %v743
    %v1075 = vunpack.c.h.b16 %v743
    %v1076 = vunpack.c.l.b16 %v744
    %v1077 = vunpack.c.h.b16 %v744
    %v1078 = vunpack.c.l.b16 %v745
    %v1079 = vunpack.c.h.b16 %v745
    %v1080 = vunpack.c.l.b16 %v746
    %v1081 = vunpack.c.h.b16 %v746
    %v1082 = vunpack.c.l.b16 %v747
    %v1083 = vunpack.c.h.b16 %v747
    %v1084 = vunpack.c.l.b16 %v748
    %v1085 = vunpack.c.h.b16 %v748
    %v1086 = vunpack.c.l.b16 %v749
    %v1087 = vunpack.c.h.b16 %v749
    %v1088 = vunpack.c.l.b16 %v750
    %v1089 = vunpack.c.h.b16 %v750
    %v1090 = vunpack.c.l.b16 %v751
    %v1091 = vunpack.c.h.b16 %v751
    %v1092 = vunpack.c.l.b16 %v752
    %v1093 = vunpack.c.h.b16 %v752
    %v1094 = vunpack.c.l.b16 %v753
    %v1095 = vunpack.c.h.b16 %v753
    %v1096 = vunpack.c.l.b16 %v754
    %v1097 = vunpack.c.h.b16 %v754
    %v1098 = vunpack.c.l.b16 %v755
    %v1099 = vunpack.c.h.b16 %v755
    %v1100 = vunpack.c.l.b16 %v756
    %v1101 = vunpack.c.h.b16 %v756
    %v1102 = vunpack.c.l.b16 %v757
    %v1103 = vunpack.c.h.b16 %v757
    %v1104 = vunpack.c.l.b16 %v758
    %v1105 = vunpack.c.h.b16 %v758
    %v1106 = vunpack.c.l.b16 %v759
    %v1107 = vunpack.c.h.b16 %v759
    %v1108 = vunpack.c.l.b16 %v760
    %v1109 = vunpack.c.h.b16 %v760
    %v1110 = vunpack.c.l.b16 %v761
    %v1111 = vunpack.c.h.b16 %v761
    %v1112 = vunpack.c.l.b16 %v762
    %v1113 = vunpack.c.h.b16 %v762
    %v1114 = vunpack.c.l.b16 %v763
    %v1115 = vunpack.c.h.b16 %v763
    %v1116 = vunpack.c.l.b16 %v764
    %v1117 = vunpack.c.h.b16 %v764
    %v1118 = vunpack.c.l.b16 %v765
    %v1119 = vunpack.c.h.b16 %v765
    %v1120 = vunpack.c.l.b16 %v766
    %v1121 = vunpack.c.h.b16 %v766
    %v1122 = vunpack.c.l.b16 %v767
    %v1123 = vunpack.c.h.b16 %v767
    %v1124 = vunpack.c.l.b16 %v768
    %v1125 = vunpack.c.h.b16 %v768
    %v1126 = vunpack.c.l.b16 %v769
    %v1127 = vunpack.c.h.b16 %v769
    %v1128 = vunpack.c.l.b16 %v770
    %v1129 = vunpack.c.h.b16 %v770
    %v1130 = vunpack.c.l.b16 %v771
    %v1131 = vunpack.c.h.b16 %v771
    %v1132 = vunpack.c.l.b16 %v772
    %v1133 = vunpack.c.h.b16 %v772
    %v1134 = vunpack.c.l.b16 %v773
    %v1135 = vunpack.c.h.b16 %v773
    %v1136 = vunpack.c.l.b16 %v774
    %v1137 = vunpack.c.h.b16 %v774
    %v1138 = vunpack.c.l.b16 %v775
    %v1139 = vunpack.c.h.b16 %v775
    %v1140 = vunpack.c.l.b16 %v776
    %v1141 = vunpack.c.h.b16 %v776
    %v1142 = vunpack.c.l.b16 %v777
    %v1143 = vunpack.c.h.b16 %v777
    %v1144 = vunpack.c.l.b16 %v778
    %v1145 = vunpack.c.h.b16 %v778
    %v1146 = vunpack.c.l.b16 %v779
    %v1147 = vunpack.c.h.b16 %v779
    %v1148 = vunpack.c.l.b16 %v780
    %v1149 = vunpack.c.h.b16 %v780
    %v1150 = vunpack.c.l.b16 %v781
    %v1151 = vunpack.c.h.b16 %v781
    %v1152 = vunpack.c.l.b16 %v782
    %v1153 = vunpack.c.h.b16 %v782
    %v1154 = vunpack.c.l.b16 %v783
    %v1155 = vunpack.c.h.b16 %v783
    %v1156 = vunpack.c.l.b16 %v784
    %v1157 = vunpack.c.h.b16 %v784
    %v1158 = vunpack.c.l.b16 %v785
    %v1159 = vunpack.c.h.b16 %v785
    %v1160 = vunpack.c.l.b16 %v786
    %v1161 = vunpack.c.h.b16 %v786
    %v1162 = vunpack.c.l.b16 %v787
    %v1163 = vunpack.c.h.b16 %v787
    %v1164 = vunpack.c.l.b16 %v788
    %v1165 = vunpack.c.h.b16 %v788
    %v1166 = vunpack.c.l.b16 %v789
    %v1167 = vunpack.c.h.b16 %v789
    %v1168 = vunpack.c.l.b16 %v790
    %v1169 = vunpack.c.h.b16 %v790
    %v1170 = vunpack.c.l.b16 %v791
    %v1171 = vunpack.c.h.b16 %v791
    %v1172 = vunpack.c.l.b16 %v792
    %v1173 = vunpack.c.h.b16 %v792
    %v1174 = vunpack.c.l.b16 %v793
    %v1175 = vunpack.c.h.b16 %v793
    %v1176 = vunpack.c.l.b16 %v794
    %v1177 = vunpack.c.h.b16 %v794
    %v1178 = vunpack.c.l.b16 %v795
    %v1179 = vunpack.c.h.b16 %v795
    %v1180 = vunpack.c.l.b16 %v796
    %v1181 = vunpack.c.h.b16 %v796
    %v1182 = vunpack.c.l.b16 %v797
    %v1183 = vunpack.c.h.b16 %v797
    %v1184 = vunpack.c.l.b16 %v798
    %v1185 = vunpack.c.h.b16 %v798
    %v1186 = vunpack.c.l.b16 %v799
    %v1187 = vunpack.c.h.b16 %v799
    %v1188 = vunpack.c.l.b16 %v800
    %v1189 = vunpack.c.h.b16 %v800
    %v1190 = vunpack.c.l.b16 %v801
    %v1191 = vunpack.c.h.b16 %v801
    %v1192 = vunpack.c.l.b16 %v802
    %v1193 = vunpack.c.h.b16 %v802
    %v1194 = vunpack.c.l.b16 %v803
    %v1195 = vunpack.c.h.b16 %v803
    %v1196 = vunpack.c.l.b16 %v804
    %v1197 = vunpack.c.h.b16 %v804
    %v1198 = vunpack.c.l.b16 %v805
    %v1199 = vunpack.c.h.b16 %v805
    %v1200 = vunpack.c.l.b16 %v806
    %v1201 = vunpack.c.h.b16 %v806
    %v1202 = vunpack.c.l.b16 %v807
    %v1203 = vunpack.c.h.b16 %v807
    %v1204 = vunpack.c.l.b16 %v808
    %v1205 = vunpack.c.h.b16 %v808
    %v1206 = vunpack.c.l.b16 %v809
    %v1207 = vunpack.c.h.b16 %v809
    %v1208 = vunpack.c.l.b16 %v810
    %v1209 = vunpack.c.h.b16 %v810
    %v1210 = vunpack.c.l.b16 %v811
    %v1211 = vunpack.c.h.b16 %v811
    %v1212 = vunpack.c.l.b16 %v812
    %v1213 = vunpack.c.h.b16 %v812
    %v1214 = vunpack.c.l.b16 %v813
    %v1215 = vunpack.c.h.b16 %v813
    %v1216 = vunpack.c.l.b16 %v814
    %v1217 = vunpack.c.h.b16 %v814
    %v1218 = vunpack.c.l.b16 %v815
    %v1219 = vunpack.c.h.b16 %v815
    %v1220 = vunpack.c.l.b16 %v816
    %v1221 = vunpack.c.h.b16 %v816
    %v1222 = vunpack.c.l.b16 %v817
    %v1223 = vunpack.c.h.b16 %v817
    %v1224 = vpack.c.b16 %v972, %v968
    %v1225 = vpack.c.b16 %v973, %v969
    %v1226 = vpack.c.b16 %v974, %v970
    %v1227 = vpack.c.b16 %v975, %v971
    %v1228 = vpack.c.b16 %v980, %v976
    %v1229 = vpack.c.b16 %v981, %v977
    %v1230 = vpack.c.b16 %v982, %v978
    %v1231 = vpack.c.b16 %v983, %v979
    %v1232 = vpack.c.b16 %v988, %v984
    %v1233 = vpack.c.b16 %v989, %v985
    %v1234 = vpack.c.b16 %v990, %v986
    %v1235 = vpack.c.b16 %v991, %v987
    %v1236 = vpack.c.b16 %v996, %v992
    %v1237 = vpack.c.b16 %v997, %v993
    %v1238 = vpack.c.b16 %v998, %v994
    %v1239 = vpack.c.b16 %v999, %v995
    %v1240 = vpack.c.b16 %v1004, %v1000
    %v1241 = vpack.c.b16 %v1005, %v1001
    %v1242 = vpack.c.b16 %v1006, %v1002
    %v1243 = vpack.c.b16 %v1007, %v1003
    %v1244 = vpack.c.b16 %v1012, %v1008
    %v1245 = vpack.c.b16 %v1013, %v1009
    %v1246 = vpack.c.b16 %v1014, %v1010
    %v1247 = vpack.c.b16 %v1015, %v1011
    %v1248 = vpack.c.b16 %v1020, %v1016
    %v1249 = vpack.c.b16 %v1021, %v1017
    %v1250 = vpack.c.b16 %v1022, %v1018
    %v1251 = vpack.c.b16 %v1023, %v1019
    %v1252 = vpack.c.b16 %v1028, %v1024
    %v1253 = vpack.c.b16 %v1029, %v1025
    %v1254 = vpack.c.b16 %v1030, %v1026
    %v1255 = vpack.c.b16 %v1031, %v1027
    %v1256 = vpack.c.b16 %v1036, %v1032
    %v1257 = vpack.c.b16 %v1037, %v1033
    %v1258 = vpack.c.b16 %v1038, %v1034
    %v1259 = vpack.c.b16 %v1039, %v1035
    %v1260 = vpack.c.b16 %v1044, %v1040
    %v1261 = vpack.c.b16 %v1045, %v1041
    %v1262 = vpack.c.b16 %v1046, %v1042
    %v1263 = vpack.c.b16 %v1047, %v1043
    %v1264 = vpack.c.b16 %v1052, %v1048
    %v1265 = vpack.c.b16 %v1053, %v1049
    %v1266 = vpack.c.b16 %v1054, %v1050
    %v1267 = vpack.c.b16 %v1055, %v1051
    %v1268 = vpack.c.b16 %v1060, %v1056
    %v1269 = vpack.c.b16 %v1061, %v1057
    %v1270 = vpack.c.b16 %v1062, %v1058
    %v1271 = vpack.c.b16 %v1063, %v1059
    %v1272 = vpack.c.b16 %v1068, %v1064
    %v1273 = vpack.c.b16 %v1069, %v1065
    %v1274 = vpack.c.b16 %v1070, %v1066
    %v1275 = vpack.c.b16 %v1071, %v1067
    %v1276 = vpack.c.b16 %v1076, %v1072
    %v1277 = vpack.c.b16 %v1077, %v1073
    %v1278 = vpack.c.b16 %v1078, %v1074
    %v1279 = vpack.c.b16 %v1079, %v1075
    %v1280 = vpack.c.b16 %v1084, %v1080
    %v1281 = vpack.c.b16 %v1085, %v1081
    %v1282 = vpack.c.b16 %v1086, %v1082
    %v1283 = vpack.c.b16 %v1087, %v1083
    %v1284 = vpack.c.b16 %v1092, %v1088
    %v1285 = vpack.c.b16 %v1093, %v1089
    %v1286 = vpack.c.b16 %v1094, %v1090
    %v1287 = vpack.c.b16 %v1095, %v1091
    %v1288 = vpack.c.b16 %v1100, %v1096
    %v1289 = vpack.c.b16 %v1101, %v1097
    %v1290 = vpack.c.b16 %v1102, %v1098
    %v1291 = vpack.c.b16 %v1103, %v1099
    %v1292 = vpack.c.b16 %v1108, %v1104
    %v1293 = vpack.c.b16 %v1109, %v1105
    %v1294 = vpack.c.b16 %v1110, %v1106
    %v1295 = vpack.c.b16 %v1111, %v1107
    %v1296 = vpack.c.b16 %v1116, %v1112
    %v1297 = vpack.c.b16 %v1117, %v1113
    %v1298 = vpack.c.b16 %v1118, %v1114
    %v1299 = vpack.c.b16 %v1119, %v1115
    %v1300 = vpack.c.b16 %v1124, %v1120
    %v1301 = vpack.c.b16 %v1125, %v1121
    %v1302 = vpack.c.b16 %v1126, %v1122
    %v1303 = vpack.c.b16 %v1127, %v1123
    %v1304 = vpack.c.b16 %v1132, %v1128
    %v1305 = vpack.c.b16 %v1133, %v1129
    %v1306 = vpack.c.b16 %v1134, %v1130
    %v1307 = vpack.c.b16 %v1135, %v1131
    %v1308 = vpack.c.b16 %v1140, %v1136
    %v1309 = vpack.c.b16 %v1141, %v1137
    %v1310 = vpack.c.b16 %v1142, %v1138
    %v1311 = vpack.c.b16 %v1143, %v1139
    %v1312 = vpack.c.b16 %v1148, %v1144
    %v1313 = vpack.c.b16 %v1149, %v1145
    %v1314 = vpack.c.b16 %v1150, %v1146
    %v1315 = vpack.c.b16 %v1151, %v1147
    %v1316 = vpack.c.b16 %v1156, %v1152
    %v1317 = vpack.c.b16 %v1157, %v1153
    %v1318 = vpack.c.b16 %v1158, %v1154
    %v1319 = vpack.c.b16 %v1159, %v1155
    %v1320 = vpack.c.b16 %v1164, %v1160
    %v1321 = vpack.c.b16 %v1165, %v1161
    %v1322 = vpack.c.b16 %v1166, %v1162
    %v1323 = vpack.c.b16 %v1167, %v1163
    %v1324 = vpack.c.b16 %v1172, %v1168
    %v1325 = vpack.c.b16 %v1173, %v1169
    %v1326 = vpack.c.b16 %v1174, %v1170
    %v1327 = vpack.c.b16 %v1175, %v1171
    %v1328 = vpack.c.b16 %v1180, %v1176
    %v1329 = vpack.c.b16 %v1181, %v1177
    %v1330 = vpack.c.b16 %v1182, %v1178
    %v1331 = vpack.c.b16 %v1183, %v1179
    %v1332 = vpack.c.b16 %v1188, %v1184
    %v1333 = vpack.c.b16 %v1189, %v1185
    %v1334 = vpack.c.b16 %v1190, %v1186
    %v1335 = vpack.c.b16 %v1191, %v1187
    %v1336 = vpack.c.b16 %v1196, %v1192
    %v1337 = vpack.c.b16 %v1197, %v1193
    %v1338 = vpack.c.b16 %v1198, %v1194
    %v1339 = vpack.c.b16 %v1199, %v1195
    %v1340 = vpack.c.b16 %v1204, %v1200
    %v1341 = vpack.c.b16 %v1205, %v1201
    %v1342 = vpack.c.b16 %v1206, %v1202
    %v1343 = vpack.c.b16 %v1207, %v1203
    %v1344 = vpack.c.b16 %v1212, %v1208
    %v1345 = vpack.c.b16 %v1213, %v1209
    %v1346 = vpack.c.b16 %v1214, %v1210
    %v1347 = vpack.c.b16 %v1215, %v1211
    %v1348 = vpack.c.b16 %v1220, %v1216
    %v1349 = vpack.c.b16 %v1221, %v1217
    %v1350 = vpack.c.b16 %v1222, %v1218
    %v1351 = vpack.c.b16 %v1223, %v1219
    %1480 = vmatprep.subr.bf16.mxu0 %v1225
    %1481 = vmatpush1.bf16.msra.mxu0 %v1224
    %1482 = vmatprep.subr.bf16.mxu0 %v1229
    %1483 = vmatpush1.bf16.msra.mxu0 %v1228
    %1484 = vmatprep.subr.bf16.mxu0 %v1233
    %1485 = vmatpush1.bf16.msra.mxu0 %v1232
    %1486 = vmatprep.subr.bf16.mxu0 %v1237
    %1487 = vmatpush1.bf16.msra.mxu0 %v1236
    %1488 = vmatprep.subr.bf16.mxu0 %v1241
    %1489 = vmatpush1.bf16.msra.mxu0 %v1240
    %1490 = vmatprep.subr.bf16.mxu0 %v1245
    %1491 = vmatpush1.bf16.msra.mxu0 %v1244
    %1492 = vmatprep.subr.bf16.mxu0 %v1249
    %1493 = vmatpush1.bf16.msra.mxu0 %v1248
    %1494 = vmatprep.subr.bf16.mxu0 %v1253
    %1495 = vmatpush1.bf16.msra.mxu0 %v1252
    %1496 = vmatprep.subr.bf16.mxu0 %v1257
    %1497 = vmatpush1.bf16.msra.mxu0 %v1256
    %1498 = vmatprep.subr.bf16.mxu0 %v1261
    %1499 = vmatpush1.bf16.msra.mxu0 %v1260
    %1500 = vmatprep.subr.bf16.mxu0 %v1265
    %1501 = vmatpush1.bf16.msra.mxu0 %v1264
    %1502 = vmatprep.subr.bf16.mxu0 %v1269
    %1503 = vmatpush1.bf16.msra.mxu0 %v1268
    %1504 = vmatprep.subr.bf16.mxu0 %v1273
    %1505 = vmatpush1.bf16.msra.mxu0 %v1272
    %1506 = vmatprep.subr.bf16.mxu0 %v1277
    %1507 = vmatpush1.bf16.msra.mxu0 %v1276
    %1508 = vmatprep.subr.bf16.mxu0 %v1281
    %1509 = vmatpush1.bf16.msra.mxu0 %v1280
    %1510 = vmatprep.subr.bf16.mxu0 %v1285
    %1511 = vmatpush1.bf16.msra.mxu0 %v1284
    %1512 = vmatprep.mubr.bf16.mxu0 %v687
    %1513 = vmatmul.mubr.bf16.gmra.mrb[0].mxu0 %v686
    %v1514 = vpop.f32.mrb[0].mxu0
    %v1515 = vadd.f32 %v823, %v1514
    %v1516 = vpop.f32.mrb[0].mxu0
    %v1517 = vadd.f32 %v827, %v1516
    %v1518 = vpop.f32.mrb[0].mxu0
    %v1519 = vadd.f32 %v823, %v1518
    %v1520 = vpop.f32.mrb[0].mxu0
    %v1521 = vadd.f32 %v827, %v1520
    %1522 = vdwg.mxu0
    %1523 = vmatprep.subr.bf16.mxu0 %v1289
    %1524 = vmatpush1.bf16.msra.mxu0 %v1288
    %1525 = vmatprep.subr.bf16.mxu0 %v1293
    %1526 = vmatpush1.bf16.msra.mxu0 %v1292
    %1527 = vmatprep.subr.bf16.mxu0 %v1297
    %1528 = vmatpush1.bf16.msra.mxu0 %v1296
    %1529 = vmatprep.subr.bf16.mxu0 %v1301
    %1530 = vmatpush1.bf16.msra.mxu0 %v1300
    %1531 = vmatprep.subr.bf16.mxu0 %v1305
    %1532 = vmatpush1.bf16.msra.mxu0 %v1304
    %1533 = vmatprep.subr.bf16.mxu0 %v1309
    %1534 = vmatpush1.bf16.msra.mxu0 %v1308
    %1535 = vmatprep.subr.bf16.mxu0 %v1313
    %1536 = vmatpush1.bf16.msra.mxu0 %v1312
    %1537 = vmatprep.subr.bf16.mxu0 %v1317
    %1538 = vmatpush1.bf16.msra.mxu0 %v1316
    %1539 = vmatprep.subr.bf16.mxu0 %v1321
    %1540 = vmatpush1.bf16.msra.mxu0 %v1320
    %1541 = vmatprep.subr.bf16.mxu0 %v1325
    %1542 = vmatpush1.bf16.msra.mxu0 %v1324
    %1543 = vmatprep.subr.bf16.mxu0 %v1329
    %1544 = vmatpush1.bf16.msra.mxu0 %v1328
    %1545 = vmatprep.subr.bf16.mxu0 %v1333
    %1546 = vmatpush1.bf16.msra.mxu0 %v1332
    %1547 = vmatprep.subr.bf16.mxu0 %v1337
    %1548 = vmatpush1.bf16.msra.mxu0 %v1336
    %1549 = vmatprep.subr.bf16.mxu0 %v1341
    %1550 = vmatpush1.bf16.msra.mxu0 %v1340
    %1551 = vmatprep.subr.bf16.mxu0 %v1345
    %1552 = vmatpush1.bf16.msra.mxu0 %v1344
    %1553 = vmatprep.subr.bf16.mxu0 %v1349
    %1554 = vmatpush1.bf16.msra.mxu0 %v1348
    %1555 = vmatprep.mubr.bf16.mxu0 %v689
    %1556 = vmatmul.mubr.bf16.gmra.mrb[0].mxu0 %v688
    %v1557 = vpop.f32.mrb[0].mxu0
    %v1558 = vadd.f32 %v1515, %v1557
    %v1559 = vpop.f32.mrb[0].mxu0
    %v1560 = vadd.f32 %v1517, %v1559
    %v1561 = vpop.f32.mrb[0].mxu0
    %v1562 = vadd.f32 %v1519, %v1561
    %v1563 = vpop.f32.mrb[0].mxu0
    %v1564 = vadd.f32 %v1521, %v1563
    %1565 = vdwg.mxu0
    %1566 = vmatprep.subr.bf16.mxu0 %v1227
    %1567 = vmatpush1.bf16.msra.mxu0 %v1226
    %1568 = vmatprep.subr.bf16.mxu0 %v1231
    %1569 = vmatpush1.bf16.msra.mxu0 %v1230
    %1570 = vmatprep.subr.bf16.mxu0 %v1235
    %1571 = vmatpush1.bf16.msra.mxu0 %v1234
    %1572 = vmatprep.subr.bf16.mxu0 %v1239
    %1573 = vmatpush1.bf16.msra.mxu0 %v1238
    %1574 = vmatprep.subr.bf16.mxu0 %v1243
    %1575 = vmatpush1.bf16.msra.mxu0 %v1242
    %1576 = vmatprep.subr.bf16.mxu0 %v1247
    %1577 = vmatpush1.bf16.msra.mxu0 %v1246
    %1578 = vmatprep.subr.bf16.mxu0 %v1251
    %1579 = vmatpush1.bf16.msra.mxu0 %v1250
    %1580 = vmatprep.subr.bf16.mxu0 %v1255
    %1581 = vmatpush1.bf16.msra.mxu0 %v1254
    %1582 = vmatprep.subr.bf16.mxu0 %v1259
    %1583 = vmatpush1.bf16.msra.mxu0 %v1258
    %1584 = vmatprep.subr.bf16.mxu0 %v1263
    %1585 = vmatpush1.bf16.msra.mxu0 %v1262
    %1586 = vmatprep.subr.bf16.mxu0 %v1267
    %1587 = vmatpush1.bf16.msra.mxu0 %v1266
    %1588 = vmatprep.subr.bf16.mxu0 %v1271
    %1589 = vmatpush1.bf16.msra.mxu0 %v1270
    %1590 = vmatprep.subr.bf16.mxu0 %v1275
    %1591 = vmatpush1.bf16.msra.mxu0 %v1274
    %1592 = vmatprep.subr.bf16.mxu0 %v1279
    %1593 = vmatpush1.bf16.msra.mxu0 %v1278
    %1594 = vmatprep.subr.bf16.mxu0 %v1283
    %1595 = vmatpush1.bf16.msra.mxu0 %v1282
    %1596 = vmatprep.subr.bf16.mxu0 %v1287
    %1597 = vmatpush1.bf16.msra.mxu0 %v1286
    %1598 = vmatprep.mubr.bf16.mxu0 %v687
    %1599 = vmatmul.mubr.bf16.gmra.mrb[0].mxu0 %v686
    %v1600 = vpop.f32.mrb[0].mxu0
    %v1601 = vadd.f32 %v831, %v1600
    %v1602 = vpop.f32.mrb[0].mxu0
    %v1603 = vadd.f32 %v835, %v1602
    %v1604 = vpop.f32.mrb[0].mxu0
    %v1605 = vadd.f32 %v831, %v1604
    %v1606 = vpop.f32.mrb[0].mxu0
    %v1607 = vadd.f32 %v835, %v1606
    %1608 = vdwg.mxu0
    %1609 = vmatprep.subr.bf16.mxu0 %v1291
    %1610 = vmatpush1.bf16.msra.mxu0 %v1290
    %1611 = vmatprep.subr.bf16.mxu0 %v1295
    %1612 = vmatpush1.bf16.msra.mxu0 %v1294
    %1613 = vmatprep.subr.bf16.mxu0 %v1299
    %1614 = vmatpush1.bf16.msra.mxu0 %v1298
    %1615 = vmatprep.subr.bf16.mxu0 %v1303
    %1616 = vmatpush1.bf16.msra.mxu0 %v1302
    %1617 = vmatprep.subr.bf16.mxu0 %v1307
    %1618 = vmatpush1.bf16.msra.mxu0 %v1306
    %1619 = vmatprep.subr.bf16.mxu0 %v1311
    %1620 = vmatpush1.bf16.msra.mxu0 %v1310
    %1621 = vmatprep.subr.bf16.mxu0 %v1315
    %1622 = vmatpush1.bf16.msra.mxu0 %v1314
    %1623 = vmatprep.subr.bf16.mxu0 %v1319
    %1624 = vmatpush1.bf16.msra.mxu0 %v1318
    %1625 = vmatprep.subr.bf16.mxu0 %v1323
    %1626 = vmatpush1.bf16.msra.mxu0 %v1322
    %1627 = vmatprep.subr.bf16.mxu0 %v1327
    %1628 = vmatpush1.bf16.msra.mxu0 %v1326
    %1629 = vmatprep.subr.bf16.mxu0 %v1331
    %1630 = vmatpush1.bf16.msra.mxu0 %v1330
    %1631 = vmatprep.subr.bf16.mxu0 %v1335
    %1632 = vmatpush1.bf16.msra.mxu0 %v1334
    %1633 = vmatprep.subr.bf16.mxu0 %v1339
    %1634 = vmatpush1.bf16.msra.mxu0 %v1338
    %1635 = vmatprep.subr.bf16.mxu0 %v1343
    %1636 = vmatpush1.bf16.msra.mxu0 %v1342
    %1637 = vmatprep.subr.bf16.mxu0 %v1347
    %1638 = vmatpush1.bf16.msra.mxu0 %v1346
    %1639 = vmatprep.subr.bf16.mxu0 %v1351
    %1640 = vmatpush1.bf16.msra.mxu0 %v1350
    %1641 = vmatprep.mubr.bf16.mxu0 %v689
    %1642 = vmatmul.mubr.bf16.gmra.mrb[0].mxu0 %v688
    %v1643 = vpop.f32.mrb[0].mxu0
    %v1644 = vadd.f32 %v1601, %v1643
    %v1645 = vpop.f32.mrb[0].mxu0
    %v1646 = vadd.f32 %v1603, %v1645
    %v1647 = vpop.f32.mrb[0].mxu0
    %v1648 = vadd.f32 %v1605, %v1647
    %v1649 = vpop.f32.mrb[0].mxu0
    %v1650 = vadd.f32 %v1607, %v1649
    %1651 = vdwg.mxu0
    %v1652 = vmax.f32 %v1558, 0.0
    %v1653 = vmax.f32 %v1560, 0.0
    %v1654 = vmax.f32 %v1644, 0.0
    %v1655 = vmax.f32 %v1646, 0.0
    %v1656 = vmax.f32 %v1562, 0.0
    %v1657 = vmax.f32 %v1564, 0.0
    %v1658 = vmax.f32 %v1648, 0.0
    %v1659 = vmax.f32 %v1650, 0.0
    %v1660 = vpack.c.bf16 %v1656, %v1652
    %v1661 = vpack.c.bf16 %v1657, %v1653
    %v1662 = vpack.c.bf16 %v1658, %v1654
    %v1663 = vpack.c.bf16 %v1659, %v1655
    %v1664 = vld [vmem:[#allocation10] sm:$0xf]
    %v1665 = vld [vmem:[#allocation10 + $0x4] sm:$0xf]
    %v1666 = vld [vmem:[#allocation10 + $0x8] sm:$0xf]
    %v1667 = vld [vmem:[#allocation10 + $0xc] sm:$0xf]
    %v1668 = vld [vmem:[#allocation10 + $0x10] sm:$0xf]
    %v1669 = vld [vmem:[#allocation10 + $0x14] sm:$0xf]
    %v1670 = vld [vmem:[#allocation10 + $0x18] sm:$0xf]
    %v1671 = vld [vmem:[#allocation10 + $0x1c] sm:$0xf]
    %v1672 = vld [vmem:[#allocation10 + $0x20] sm:$0xf]
    %v1673 = vld [vmem:[#allocation10 + $0x24] sm:$0xf]
    %v1674 = vld [vmem:[#allocation10 + $0x28] sm:$0xf]
    %v1675 = vld [vmem:[#allocation10 + $0x2c] sm:$0xf]
    %v1676 = vld [vmem:[#allocation10 + $0x30] sm:$0xf]
    %v1677 = vld [vmem:[#allocation10 + $0x34] sm:$0xf]
    %v1678 = vld [vmem:[#allocation10 + $0x38] sm:$0xf]
    %v1679 = vld [vmem:[#allocation10 + $0x3c] sm:$0xf]
    %v1680 = vld [vmem:[#allocation10 + $0x40] sm:$0xf]
    %v1681 = vld [vmem:[#allocation10 + $0x44] sm:$0xf]
    %v1682 = vld [vmem:[#allocation10 + $0x48] sm:$0xf]
    %v1683 = vld [vmem:[#allocation10 + $0x4c] sm:$0xf]
    %v1684 = vld [vmem:[#allocation10 + $0x50] sm:$0xf]
    %v1685 = vld [vmem:[#allocation10 + $0x54] sm:$0xf]
    %v1686 = vld [vmem:[#allocation10 + $0x58] sm:$0xf]
    %v1687 = vld [vmem:[#allocation10 + $0x5c] sm:$0xf]
    %v1688 = vld [vmem:[#allocation10 + $0x60] sm:$0xf]
    %v1689 = vld [vmem:[#allocation10 + $0x64] sm:$0xf]
    %v1690 = vld [vmem:[#allocation10 + $0x68] sm:$0xf]
    %v1691 = vld [vmem:[#allocation10 + $0x6c] sm:$0xf]
    %v1692 = vld [vmem:[#allocation10 + $0x70] sm:$0xf]
    %v1693 = vld [vmem:[#allocation10 + $0x74] sm:$0xf]
    %v1694 = vld [vmem:[#allocation10 + $0x78] sm:$0xf]
    %v1695 = vld [vmem:[#allocation10 + $0x7c] sm:$0xf]
    %v1696 = vld [vmem:[#allocation10 + $0x80] sm:$0xf]
    %v1697 = vld [vmem:[#allocation10 + $0x84] sm:$0xf]
    %v1698 = vld [vmem:[#allocation10 + $0x88] sm:$0xf]
    %v1699 = vld [vmem:[#allocation10 + $0x8c] sm:$0xf]
    %v1700 = vld [vmem:[#allocation10 + $0x90] sm:$0xf]
    %v1701 = vld [vmem:[#allocation10 + $0x94] sm:$0xf]
    %v1702 = vld [vmem:[#allocation10 + $0x98] sm:$0xf]
    %v1703 = vld [vmem:[#allocation10 + $0x9c] sm:$0xf]
    %v1704 = vld [vmem:[#allocation10 + $0xa0] sm:$0xf]
    %v1705 = vld [vmem:[#allocation10 + $0xa4] sm:$0xf]
    %v1706 = vld [vmem:[#allocation10 + $0xa8] sm:$0xf]
    %v1707 = vld [vmem:[#allocation10 + $0xac] sm:$0xf]
    %v1708 = vld [vmem:[#allocation10 + $0xb0] sm:$0xf]
    %v1709 = vld [vmem:[#allocation10 + $0xb4] sm:$0xf]
    %v1710 = vld [vmem:[#allocation10 + $0xb8] sm:$0xf]
    %v1711 = vld [vmem:[#allocation10 + $0xbc] sm:$0xf]
    %v1712 = vld [vmem:[#allocation10 + $0xc0] sm:$0xf]
    %v1713 = vld [vmem:[#allocation10 + $0xc4] sm:$0xf]
    %v1714 = vld [vmem:[#allocation10 + $0xc8] sm:$0xf]
    %v1715 = vld [vmem:[#allocation10 + $0xcc] sm:$0xf]
    %v1716 = vld [vmem:[#allocation10 + $0xd0] sm:$0xf]
    %v1717 = vld [vmem:[#allocation10 + $0xd4] sm:$0xf]
    %v1718 = vld [vmem:[#allocation10 + $0xd8] sm:$0xf]
    %v1719 = vld [vmem:[#allocation10 + $0xdc] sm:$0xf]
    %v1720 = vld [vmem:[#allocation10 + $0xe0] sm:$0xf]
    %v1721 = vld [vmem:[#allocation10 + $0xe4] sm:$0xf]
    %v1722 = vld [vmem:[#allocation10 + $0xe8] sm:$0xf]
    %v1723 = vld [vmem:[#allocation10 + $0xec] sm:$0xf]
    %v1724 = vld [vmem:[#allocation10 + $0xf0] sm:$0xf]
    %v1725 = vld [vmem:[#allocation10 + $0xf4] sm:$0xf]
    %v1726 = vld [vmem:[#allocation10 + $0xf8] sm:$0xf]
    %v1727 = vld [vmem:[#allocation10 + $0xfc] sm:$0xf]
    %v1728 = vld [vmem:[%s8] sm:$0x1]
    %v1730 = vlaneseq
    %v1731 = vshrl.u32 %v1730, 7
    %v1732 = vsub.s32 0, %v1731
    %v1733 = vrot.slane %v1728, %v1732
    %v1799 = vunpack.c.l.b16 %v1664
    %v1800 = vunpack.c.l.b16 %v1665
    %v1801 = vunpack.c.l.b16 %v1666
    %v1802 = vunpack.c.l.b16 %v1667
    %v1803 = vunpack.c.l.b16 %v1668
    %v1804 = vunpack.c.l.b16 %v1669
    %v1805 = vunpack.c.l.b16 %v1670
    %v1806 = vunpack.c.l.b16 %v1671
    %v1807 = vunpack.c.l.b16 %v1672
    %v1808 = vunpack.c.l.b16 %v1673
    %v1809 = vunpack.c.l.b16 %v1674
    %v1810 = vunpack.c.l.b16 %v1675
    %v1811 = vunpack.c.l.b16 %v1676
    %v1812 = vunpack.c.l.b16 %v1677
    %v1813 = vunpack.c.l.b16 %v1678
    %v1814 = vunpack.c.l.b16 %v1679
    %v1815 = vunpack.c.l.b16 %v1680
    %v1816 = vunpack.c.l.b16 %v1681
    %v1817 = vunpack.c.l.b16 %v1682
    %v1818 = vunpack.c.l.b16 %v1683
    %v1819 = vunpack.c.l.b16 %v1684
    %v1820 = vunpack.c.l.b16 %v1685
    %v1821 = vunpack.c.l.b16 %v1686
    %v1822 = vunpack.c.l.b16 %v1687
    %v1823 = vunpack.c.l.b16 %v1688
    %v1824 = vunpack.c.l.b16 %v1689
    %v1825 = vunpack.c.l.b16 %v1690
    %v1826 = vunpack.c.l.b16 %v1691
    %v1827 = vunpack.c.l.b16 %v1692
    %v1828 = vunpack.c.l.b16 %v1693
    %v1829 = vunpack.c.l.b16 %v1694
    %v1830 = vunpack.c.l.b16 %v1695
    %v1831 = vunpack.c.l.b16 %v1696
    %v1832 = vunpack.c.l.b16 %v1697
    %v1833 = vunpack.c.l.b16 %v1698
    %v1834 = vunpack.c.l.b16 %v1699
    %v1835 = vunpack.c.l.b16 %v1700
    %v1836 = vunpack.c.l.b16 %v1701
    %v1837 = vunpack.c.l.b16 %v1702
    %v1838 = vunpack.c.l.b16 %v1703
    %v1839 = vunpack.c.l.b16 %v1704
    %v1840 = vunpack.c.l.b16 %v1705
    %v1841 = vunpack.c.l.b16 %v1706
    %v1842 = vunpack.c.l.b16 %v1707
    %v1843 = vunpack.c.l.b16 %v1708
    %v1844 = vunpack.c.l.b16 %v1709
    %v1845 = vunpack.c.l.b16 %v1710
    %v1846 = vunpack.c.l.b16 %v1711
    %v1847 = vunpack.c.l.b16 %v1712
    %v1848 = vunpack.c.l.b16 %v1713
    %v1849 = vunpack.c.l.b16 %v1714
    %v1850 = vunpack.c.l.b16 %v1715
    %v1851 = vunpack.c.l.b16 %v1716
    %v1852 = vunpack.c.l.b16 %v1717
    %v1853 = vunpack.c.l.b16 %v1718
    %v1854 = vunpack.c.l.b16 %v1719
    %v1855 = vunpack.c.l.b16 %v1720
    %v1856 = vunpack.c.l.b16 %v1721
    %v1857 = vunpack.c.l.b16 %v1722
    %v1858 = vunpack.c.l.b16 %v1723
    %v1859 = vunpack.c.l.b16 %v1724
    %v1860 = vunpack.c.l.b16 %v1725
    %v1861 = vunpack.c.l.b16 %v1726
    %v1862 = vunpack.c.l.b16 %v1727
    %v1863 = vpack.c.b16 %v1800, %v1799
    %v1864 = vpack.c.b16 %v1802, %v1801
    %v1865 = vpack.c.b16 %v1804, %v1803
    %v1866 = vpack.c.b16 %v1806, %v1805
    %v1867 = vpack.c.b16 %v1808, %v1807
    %v1868 = vpack.c.b16 %v1810, %v1809
    %v1869 = vpack.c.b16 %v1812, %v1811
    %v1870 = vpack.c.b16 %v1814, %v1813
    %v1871 = vpack.c.b16 %v1816, %v1815
    %v1872 = vpack.c.b16 %v1818, %v1817
    %v1873 = vpack.c.b16 %v1820, %v1819
    %v1874 = vpack.c.b16 %v1822, %v1821
    %v1875 = vpack.c.b16 %v1824, %v1823
    %v1876 = vpack.c.b16 %v1826, %v1825
    %v1877 = vpack.c.b16 %v1828, %v1827
    %v1878 = vpack.c.b16 %v1830, %v1829
    %v1879 = vpack.c.b16 %v1832, %v1831
    %v1880 = vpack.c.b16 %v1834, %v1833
    %v1881 = vpack.c.b16 %v1836, %v1835
    %v1882 = vpack.c.b16 %v1838, %v1837
    %v1883 = vpack.c.b16 %v1840, %v1839
    %v1884 = vpack.c.b16 %v1842, %v1841
    %v1885 = vpack.c.b16 %v1844, %v1843
    %v1886 = vpack.c.b16 %v1846, %v1845
    %v1887 = vpack.c.b16 %v1848, %v1847
    %v1888 = vpack.c.b16 %v1850, %v1849
    %v1889 = vpack.c.b16 %v1852, %v1851
    %v1890 = vpack.c.b16 %v1854, %v1853
    %v1891 = vpack.c.b16 %v1856, %v1855
    %v1892 = vpack.c.b16 %v1858, %v1857
    %v1893 = vpack.c.b16 %v1860, %v1859
    %v1894 = vpack.c.b16 %v1862, %v1861
    %1927 = vmatprep.subr.bf16.mxu0 0
    %1928 = vmatpush1.bf16.msra.mxu0 %v1863
    %1929 = vmatprep.subr.bf16.mxu0 0
    %1930 = vmatpush1.bf16.msra.mxu0 %v1864
    %1931 = vmatprep.subr.bf16.mxu0 0
    %1932 = vmatpush1.bf16.msra.mxu0 %v1865
    %1933 = vmatprep.subr.bf16.mxu0 0
    %1934 = vmatpush1.bf16.msra.mxu0 %v1866
    %1935 = vmatprep.subr.bf16.mxu0 0
    %1936 = vmatpush1.bf16.msra.mxu0 %v1867
    %1937 = vmatprep.subr.bf16.mxu0 0
    %1938 = vmatpush1.bf16.msra.mxu0 %v1868
    %1939 = vmatprep.subr.bf16.mxu0 0
    %1940 = vmatpush1.bf16.msra.mxu0 %v1869
    %1941 = vmatprep.subr.bf16.mxu0 0
    %1942 = vmatpush1.bf16.msra.mxu0 %v1870
    %1943 = vmatprep.subr.bf16.mxu0 0
    %1944 = vmatpush1.bf16.msra.mxu0 %v1871
    %1945 = vmatprep.subr.bf16.mxu0 0
    %1946 = vmatpush1.bf16.msra.mxu0 %v1872
    %1947 = vmatprep.subr.bf16.mxu0 0
    %1948 = vmatpush1.bf16.msra.mxu0 %v1873
    %1949 = vmatprep.subr.bf16.mxu0 0
    %1950 = vmatpush1.bf16.msra.mxu0 %v1874
    %1951 = vmatprep.subr.bf16.mxu0 0
    %1952 = vmatpush1.bf16.msra.mxu0 %v1875
    %1953 = vmatprep.subr.bf16.mxu0 0
    %1954 = vmatpush1.bf16.msra.mxu0 %v1876
    %1955 = vmatprep.subr.bf16.mxu0 0
    %1956 = vmatpush1.bf16.msra.mxu0 %v1877
    %1957 = vmatprep.subr.bf16.mxu0 0
    %1958 = vmatpush1.bf16.msra.mxu0 %v1878
    %1959 = vmatprep.mubr.bf16.mxu0 %v1661
    %1960 = vmatmul.mubr.bf16.gmra.mrb[0].mxu0 %v1660
    %v1961 = vpop.f32.mrb[0].mxu0
    %v1962 = vadd.f32 %v1733, %v1961
    %v1963 = vpop.f32.mrb[0].mxu0
    %v1964 = vpop.f32.mrb[0].mxu0
    %v1965 = vadd.f32 %v1733, %v1964
    %v1966 = vpop.f32.mrb[0].mxu0
    %1967 = vdwg.mxu0
    %1968 = vmatprep.subr.bf16.mxu0 0
    %1969 = vmatpush1.bf16.msra.mxu0 %v1879
    %1970 = vmatprep.subr.bf16.mxu0 0
    %1971 = vmatpush1.bf16.msra.mxu0 %v1880
    %1972 = vmatprep.subr.bf16.mxu0 0
    %1973 = vmatpush1.bf16.msra.mxu0 %v1881
    %1974 = vmatprep.subr.bf16.mxu0 0
    %1975 = vmatpush1.bf16.msra.mxu0 %v1882
    %1976 = vmatprep.subr.bf16.mxu0 0
    %1977 = vmatpush1.bf16.msra.mxu0 %v1883
    %1978 = vmatprep.subr.bf16.mxu0 0
    %1979 = vmatpush1.bf16.msra.mxu0 %v1884
    %1980 = vmatprep.subr.bf16.mxu0 0
    %1981 = vmatpush1.bf16.msra.mxu0 %v1885
    %1982 = vmatprep.subr.bf16.mxu0 0
    %1983 = vmatpush1.bf16.msra.mxu0 %v1886
    %1984 = vmatprep.subr.bf16.mxu0 0
    %1985 = vmatpush1.bf16.msra.mxu0 %v1887
    %1986 = vmatprep.subr.bf16.mxu0 0
    %1987 = vmatpush1.bf16.msra.mxu0 %v1888
    %1988 = vmatprep.subr.bf16.mxu0 0
    %1989 = vmatpush1.bf16.msra.mxu0 %v1889
    %1990 = vmatprep.subr.bf16.mxu0 0
    %1991 = vmatpush1.bf16.msra.mxu0 %v1890
    %1992 = vmatprep.subr.bf16.mxu0 0
    %1993 = vmatpush1.bf16.msra.mxu0 %v1891
    %1994 = vmatprep.subr.bf16.mxu0 0
    %1995 = vmatpush1.bf16.msra.mxu0 %v1892
    %1996 = vmatprep.subr.bf16.mxu0 0
    %1997 = vmatpush1.bf16.msra.mxu0 %v1893
    %1998 = vmatprep.subr.bf16.mxu0 0
    %1999 = vmatpush1.bf16.msra.mxu0 %v1894
    %2000 = vmatprep.mubr.bf16.mxu0 %v1663
    %2001 = vmatmul.mubr.bf16.gmra.mrb[0].mxu0 %v1662
    %v2002 = vpop.f32.mrb[0].mxu0
    %v2003 = vadd.f32 %v1962, %v2002
    %v2004 = vpop.f32.mrb[0].mxu0
    %v2005 = vpop.f32.mrb[0].mxu0
    %v2006 = vadd.f32 %v1965, %v2005
    %v2007 = vpop.f32.mrb[0].mxu0
    %2008 = vdwg.mxu0
    %2009 = vst [vmem:[#allocation11] sm:$0xff] %v2003
    %2010 = vst [vmem:[#allocation11 + $0x8] sm:$0xff] %v2006
    // Predicated region
    $region58: #{tpu_custom_call.1} parent=1 // pred_check
      _
    $region59: #{tpu_custom_call.1} parent=1 // pred_check_branch
      %2012 = sbr.rel (0) target = $region61
    $region60: #{tpu_custom_call.1} parent=1 // pred_region
      %s2014 = ssub.s32 256, 256
      %2015 = vsyncadd [#allocation4], %s2014
      %s2016 = sshll.u32 [#allocation11], 4
      %s2017 = int_to_ptr.vmem [resolvable:$true] %s2016
      %2022 = dma.vmem_to_hbm [thread:$0]  %s2017, 256, %s9, [#allocation4], 128, 128, 8
    $region61: #{tpu_custom_call.1} parent=1 // pred_fallthru
      _
    // Predicated region
    $region62: #{tpu_custom_call.1} parent=1 // pred_check
      _
    $region63: #{tpu_custom_call.1} parent=1 // pred_check_branch
      %2024 = sbr.rel (0) target = $region65
    $region64: #{tpu_custom_call.1} parent=1 // pred_region
      %2025 = dma.done [#allocation4], 256
    $region65: #{tpu_custom_call.1} parent=1 // pred_fallthru
      _
    %2026 = vsyncpa [#allocation3], 1
    %2027 = vsyncpa [#allocation6], 1
    %2028 = vsyncpa [#allocation9], 1
    %2029 = vsyncpa [#allocation4], 1

// kernel: tpu_custom_call.1
$region0: #{tpu_custom_call.1}
  #allocation0 [shape = 'u32[]', space=smem, size = 0x4, offset = 0x4, fixed_abs, tag = 'smem constant byte address 0x4 - core index']
  #allocation1 [shape = 'u32[144,128]{1,0:T(1,128)}', space=vmem, size = 0x12000, scoped, tag = 'internal scratch']
  %s0 = inlined_call_operand.hbm [shape: bf16[16,16], index: 0, kind: input, shape index: {}]
  %s1 = inlined_call_operand.hbm [shape: bf16[16,256], index: 1, kind: input, shape index: {}]
  %s2 = inlined_call_operand.vmem [shape: f32[1,256], index: 2, kind: input, shape index: {}]
  %s3 = inlined_call_operand.hbm [shape: bf16[256,512], index: 3, kind: input, shape index: {}]
  %s4 = inlined_call_operand.vmem [shape: f32[1,512], index: 4, kind: input, shape index: {}]
  %s5 = inlined_call_operand.hbm [shape: bf16[512,512], index: 5, kind: input, shape index: {}]
  %s6 = inlined_call_operand.vmem [shape: f32[1,512], index: 6, kind: input, shape index: {}]
  %s7 = inlined_call_operand.hbm [shape: bf16[512,128], index: 7, kind: input, shape index: {}]
  %s8 = inlined_call_operand.vmem [shape: f32[1,128], index: 8, kind: input, shape index: {}]
  %s9 = inlined_call_operand.hbm [shape: f32[16,128], index: 9, kind: output, shape index: {}]
  %s10 = sld [smem:[#allocation0]]
  $region66: #{tpu_custom_call.1} parent=0
    _
  %s12 = ssub.s32 1, %s10
  %s13 = scalar_select 0, %s12, %s10
  $region1: #{tpu_custom_call.1} parent=0
    #allocation2 [shape = 'u8[4096]{0}', space=vmem, size = 0x1000, scoped, tag = 'input window, operand 0, single buffered']
    #allocation3 [shape = 's32[1]{0}', space=sflag, size = 0x4, scoped, tag = 'scoped memory for tpu_custom_call.1']
    #allocation4 [shape = 's32[1]{0}', space=sflag, size = 0x4, scoped, tag = 'scoped memory for tpu_custom_call.1']
    #allocation5 [shape = 'u8[8192]{0}', space=vmem, size = 0x2000, scoped, tag = 'input window, operand 1, single buffered']
    #allocation6 [shape = 's32[1]{0}', space=sflag, size = 0x4, scoped, tag = 'scoped memory for tpu_custom_call.1']
    #allocation7 [shape = 'u8[262144]{0}', space=vmem, size = 0x40000, scoped, tag = 'input window, operand 3, single buffered']
    #allocation8 [shape = 'u8[524288]{0}', space=vmem, size = 0x80000, scoped, tag = 'input window, operand 5, single buffered']
    #allocation9 [shape = 's32[1]{0}', space=sflag, size = 0x4, scoped, tag = 'scoped memory for tpu_custom_call.1']
    #allocation10 [shape = 'u8[131072]{0}', space=vmem, size = 0x20000, scoped, tag = 'input window, operand 7, single buffered']
    #allocation11 [shape = 'u8[8192]{0}', space=vmem, size = 0x2000, scoped, tag = 'output window, operand 0, single buffered']
    %14 = vsyncpa [#allocation3], 0
    %15 = vsyncpa [#allocation6], 0
    %16 = vsyncpa [#allocation9], 0
    %17 = vsyncpa [#allocation4], 0
    // Predicated region
    $region2: #{tpu_custom_call.1} parent=1 // pred_check
      _
    $region3: #{tpu_custom_call.1} parent=1 // pred_check_branch
      %19 = sbr.rel (0) target = $region5
    $region4: #{tpu_custom_call.1} parent=1 // pred_region
      %s21 = ssub.s32 128, 128
      %22 = vsyncadd [#allocation3], %s21
      %s23 = sshll.u32 [#allocation2], 4
      %s24 = int_to_ptr.vmem [resolvable:$true] %s23
      %29 = dma.hbm_to_vmem [thread:$0]  %s0, 128, %s24, [#allocation3], 64, 64, 4
    $region5: #{tpu_custom_call.1} parent=1 // pred_fallthru
      _
    // Predicated region
    $region6: #{tpu_custom_call.1} parent=1 // pred_check
      _
    $region7: #{tpu_custom_call.1} parent=1 // pred_check_branch
      %31 = sbr.rel (0) target = $region9
    $region8: #{tpu_custom_call.1} parent=1 // pred_region
      %s33 = ssub.s32 256, 256
      %34 = vsyncadd [#allocation6], %s33
      %s35 = sshll.u32 [#allocation5], 4
      %s36 = int_to_ptr.vmem [resolvable:$true] %s35
      %41 = dma.hbm_to_vmem [thread:$0]  %s1, 256, %s36, [#allocation6], 128, 128, 8
    $region9: #{tpu_custom_call.1} parent=1 // pred_fallthru
      _
    // Predicated region
    $region10: #{tpu_custom_call.1} parent=1 // pred_check
      _
    $region11: #{tpu_custom_call.1} parent=1 // pred_check_branch
      %43 = sbr.rel (0) target = $region13
    $region12: #{tpu_custom_call.1} parent=1 // pred_region
      _
    $region13: #{tpu_custom_call.1} parent=1 // pred_fallthru
      _
    // Predicated region
    $region14: #{tpu_custom_call.1} parent=1 // pred_check
      _
    $region15: #{tpu_custom_call.1} parent=1 // pred_check_branch
      %45 = sbr.rel (0) target = $region17
    $region16: #{tpu_custom_call.1} parent=1 // pred_region
      %s47 = ssub.s32 8192, 8192
      %48 = vsyncadd [#allocation6], %s47
      %s49 = sshll.u32 [#allocation7], 4
      %s50 = int_to_ptr.vmem [resolvable:$true] %s49
      %55 = dma.hbm_to_vmem [thread:$0]  %s3, 8192, %s50, [#allocation6], 256, 256, 16
    $region17: #{tpu_custom_call.1} parent=1 // pred_fallthru
      _
    // Predicated region
    $region18: #{tpu_custom_call.1} parent=1 // pred_check
      _
    $region19: #{tpu_custom_call.1} parent=1 // pred_check_branch
      %57 = sbr.rel (0) target = $region21
    $region20: #{tpu_custom_call.1} parent=1 // pred_region
      _
    $region21: #{tpu_custom_call.1} parent=1 // pred_fallthru
      _
    // Predicated region
    $region22: #{tpu_custom_call.1} parent=1 // pred_check
      _
    $region23: #{tpu_custom_call.1} parent=1 // pred_check_branch
      %59 = sbr.rel (0) target = $region25
    $region24: #{tpu_custom_call.1} parent=1 // pred_region
      %s61 = ssub.s32 16384, 16384
      %62 = vsyncadd [#allocation9], %s61
      %s63 = sshll.u32 [#allocation8], 4
      %s64 = int_to_ptr.vmem [resolvable:$true] %s63
      %69 = dma.hbm_to_vmem [thread:$0]  %s5, 16384, %s64, [#allocation9], 256, 256, 16
    $region25: #{tpu_custom_call.1} parent=1 // pred_fallthru
      _
    // Predicated region
    $region26: #{tpu_custom_call.1} parent=1 // pred_check
      _
    $region27: #{tpu_custom_call.1} parent=1 // pred_check_branch
      %71 = sbr.rel (0) target = $region29
    $region28: #{tpu_custom_call.1} parent=1 // pred_region
      _
    $region29: #{tpu_custom_call.1} parent=1 // pred_fallthru
      _
    // Predicated region
    $region30: #{tpu_custom_call.1} parent=1 // pred_check
      _
    $region31: #{tpu_custom_call.1} parent=1 // pred_check_branch
      %73 = sbr.rel (0) target = $region33
    $region32: #{tpu_custom_call.1} parent=1 // pred_region
      %s75 = ssub.s32 4096, 4096
      %76 = vsyncadd [#allocation9], %s75
      %s77 = sshll.u32 [#allocation10], 4
      %s78 = int_to_ptr.vmem [resolvable:$true] %s77
      %83 = dma.hbm_to_vmem [thread:$0]  %s7, 4096, %s78, [#allocation9], 64, 64, 4
    $region33: #{tpu_custom_call.1} parent=1 // pred_fallthru
      _
    // Predicated region
    $region34: #{tpu_custom_call.1} parent=1 // pred_check
      _
    $region35: #{tpu_custom_call.1} parent=1 // pred_check_branch
      %85 = sbr.rel (0) target = $region37
    $region36: #{tpu_custom_call.1} parent=1 // pred_region
      _
    $region37: #{tpu_custom_call.1} parent=1 // pred_fallthru
      _
    // Predicated region
    $region38: #{tpu_custom_call.1} parent=1 // pred_check
      _
    $region39: #{tpu_custom_call.1} parent=1 // pred_check_branch
      %87 = sbr.rel (0) target = $region41
    $region40: #{tpu_custom_call.1} parent=1 // pred_region
      %88 = dma.done [#allocation3], 128
    $region41: #{tpu_custom_call.1} parent=1 // pred_fallthru
      _
    // Predicated region
    $region42: #{tpu_custom_call.1} parent=1 // pred_check
      _
    $region43: #{tpu_custom_call.1} parent=1 // pred_check_branch
      %90 = sbr.rel (0) target = $region45
    $region44: #{tpu_custom_call.1} parent=1 // pred_region
      %91 = dma.done [#allocation6], 256
    $region45: #{tpu_custom_call.1} parent=1 // pred_fallthru
      _
    // Predicated region
    $region46: #{tpu_custom_call.1} parent=1 // pred_check
      _
    $region47: #{tpu_custom_call.1} parent=1 // pred_check_branch
      %93 = sbr.rel (0) target = $region49
    $region48: #{tpu_custom_call.1} parent=1 // pred_region
      %94 = dma.done [#allocation6], 8192
    $region49: #{tpu_custom_call.1} parent=1 // pred_fallthru
      _
    // Predicated region
    $region50: #{tpu_custom_call.1} parent=1 // pred_check
      _
    $region51: #{tpu_custom_call.1} parent=1 // pred_check_branch
      %96 = sbr.rel (0) target = $region53
    $region52: #{tpu_custom_call.1} parent=1 // pred_region
      %97 = dma.done [#allocation9], 16384
    $region53: #{tpu_custom_call.1} parent=1 // pred_fallthru
      _
    // Predicated region
    $region54: #{tpu_custom_call.1} parent=1 // pred_check
      _
    $region55: #{tpu_custom_call.1} parent=1 // pred_check_branch
      %99 = sbr.rel (0) target = $region57
    $region56: #{tpu_custom_call.1} parent=1 // pred_region
      %100 = dma.done [#allocation9], 4096
    $region57: #{tpu_custom_call.1} parent=1 // pred_fallthru
      _
    %v102 = vld [vmem:[#allocation2] sm:$0xf]
    %v103 = vld [vmem:[#allocation2 + $0x4] sm:$0xf]
    %v104 = vld [vmem:[#allocation5] sm:$0xff]
    %v105 = vld [vmem:[#allocation5 + $0x8] sm:$0xff]
    %v106 = vld [vmem:[%s2] sm:$0x3]
    %v108 = vlaneseq
    %v109 = vshrl.u32 %v108, 7
    %v110 = vsub.s32 0, %v109
    %v111 = vrot.slane %v106, %v110
    %v112 = vlaneseq
    %v113 = vshrl.u32 %v112, 7
    %v114 = vsub.s32 1, %v113
    %v115 = vrot.slane %v106, %v114
    %v120 = vunpack.c.l.b16 %v102
    %v121 = vunpack.c.l.b16 %v103
    %v122 = vpack.c.b16 %v121, %v120
    %v125 = vunpack.c.l.b16 %v104
    %v126 = vunpack.c.h.b16 %v104
    %v127 = vunpack.c.l.b16 %v105
    %v128 = vunpack.c.h.b16 %v105
    %v129 = vpack.c.b16 %v127, %v125
    %v130 = vpack.c.b16 %v128, %v126
    %vm133 = vcmask 130048
    %v135 = vsel %vm133, %v122, 0
    %137 = vmatprep.subr.bf16.mxu0 %v130
    %138 = vmatpush1.bf16.msra.mxu0 %v129
    %139 = vmatprep.subr.bf16.mxu0 0
    %140 = vmatpush1.bf16.msra.mxu0 0
    %141 = vmatprep.subr.bf16.mxu0 0
    %142 = vmatpush1.bf16.msra.mxu0 0
    %143 = vmatprep.subr.bf16.mxu0 0
    %144 = vmatpush1.bf16.msra.mxu0 0
    %145 = vmatprep.subr.bf16.mxu0 0
    %146 = vmatpush1.bf16.msra.mxu0 0
    %147 = vmatprep.subr.bf16.mxu0 0
    %148 = vmatpush1.bf16.msra.mxu0 0
    %149 = vmatprep.subr.bf16.mxu0 0
    %150 = vmatpush1.bf16.msra.mxu0 0
    %151 = vmatprep.subr.bf16.mxu0 0
    %152 = vmatpush1.bf16.msra.mxu0 0
    %153 = vmatprep.subr.bf16.mxu0 0
    %154 = vmatpush1.bf16.msra.mxu0 0
    %155 = vmatprep.subr.bf16.mxu0 0
    %156 = vmatpush1.bf16.msra.mxu0 0
    %157 = vmatprep.subr.bf16.mxu0 0
    %158 = vmatpush1.bf16.msra.mxu0 0
    %159 = vmatprep.subr.bf16.mxu0 0
    %160 = vmatpush1.bf16.msra.mxu0 0
    %161 = vmatprep.subr.bf16.mxu0 0
    %162 = vmatpush1.bf16.msra.mxu0 0
    %163 = vmatprep.subr.bf16.mxu0 0
    %164 = vmatpush1.bf16.msra.mxu0 0
    %165 = vmatprep.subr.bf16.mxu0 0
    %166 = vmatpush1.bf16.msra.mxu0 0
    %167 = vmatprep.subr.bf16.mxu0 0
    %168 = vmatpush1.bf16.msra.mxu0 0
    %169 = vmatprep.mubr.bf16.mxu0 0
    %170 = vmatmul.mubr.bf16.gmra.mrb[0].mxu0 %v135
    %v171 = vpop.f32.mrb[0].mxu0
    %v172 = vadd.f32 %v111, %v171
    %v173 = vpop.f32.mrb[0].mxu0
    %v174 = vadd.f32 %v115, %v173
    %v175 = vpop.f32.mrb[0].mxu0
    %v176 = vadd.f32 %v111, %v175
    %v177 = vpop.f32.mrb[0].mxu0
    %v178 = vadd.f32 %v115, %v177
    %179 = vdwg.mxu0
    %v180 = vmax.f32 %v172, 0.0
    %v181 = vmax.f32 %v174, 0.0
    %v182 = vmax.f32 %v176, 0.0
    %v183 = vmax.f32 %v178, 0.0
    %v184 = vpack.c.bf16 %v182, %v180
    %v185 = vpack.c.bf16 %v183, %v181
    %v186 = vld [vmem:[#allocation7] sm:$0xff]
    %v187 = vld [vmem:[#allocation7 + $0x8] sm:$0xff]
    %v188 = vld [vmem:[#allocation7 + $0x10] sm:$0xff]
    %v189 = vld [vmem:[#allocation7 + $0x18] sm:$0xff]
    %v190 = vld [vmem:[#allocation7 + $0x20] sm:$0xff]
    %v191 = vld [vmem:[#allocation7 + $0x28] sm:$0xff]
    %v192 = vld [vmem:[#allocation7 + $0x30] sm:$0xff]
    %v193 = vld [vmem:[#allocation7 + $0x38] sm:$0xff]
    %v194 = vld [vmem:[#allocation7 + $0x40] sm:$0xff]
    %v195 = vld [vmem:[#allocation7 + $0x48] sm:$0xff]
    %v196 = vld [vmem:[#allocation7 + $0x50] sm:$0xff]
    %v197 = vld [vmem:[#allocation7 + $0x58] sm:$0xff]
    %v198 = vld [vmem:[#allocation7 + $0x60] sm:$0xff]
    %v199 = vld [vmem:[#allocation7 + $0x68] sm:$0xff]
    %v200 = vld [vmem:[#allocation7 + $0x70] sm:$0xff]
    %v201 = vld [vmem:[#allocation7 + $0x78] sm:$0xff]
    %v202 = vld [vmem:[#allocation7 + $0x80] sm:$0xff]
    %v203 = vld [vmem:[#allocation7 + $0x88] sm:$0xff]
    %v204 = vld [vmem:[#allocation7 + $0x90] sm:$0xff]
    %v205 = vld [vmem:[#allocation7 + $0x98] sm:$0xff]
    %v206 = vld [vmem:[#allocation7 + $0xa0] sm:$0xff]
    %v207 = vld [vmem:[#allocation7 + $0xa8] sm:$0xff]
    %v208 = vld [vmem:[#allocation7 + $0xb0] sm:$0xff]
    %v209 = vld [vmem:[#allocation7 + $0xb8] sm:$0xff]
    %v210 = vld [vmem:[#allocation7 + $0xc0] sm:$0xff]
    %v211 = vld [vmem:[#allocation7 + $0xc8] sm:$0xff]
    %v212 = vld [vmem:[#allocation7 + $0xd0] sm:$0xff]
    %v213 = vld [vmem:[#allocation7 + $0xd8] sm:$0xff]
    %v214 = vld [vmem:[#allocation7 + $0xe0] sm:$0xff]
    %v215 = vld [vmem:[#allocation7 + $0xe8] sm:$0xff]
    %v216 = vld [vmem:[#allocation7 + $0xf0] sm:$0xff]
    %v217 = vld [vmem:[#allocation7 + $0xf8] sm:$0xff]
    %v218 = vld [vmem:[#allocation7 + $0x100] sm:$0xff]
    %v219 = vld [vmem:[#allocation7 + $0x108] sm:$0xff]
    %v220 = vld [vmem:[#allocation7 + $0x110] sm:$0xff]
    %v221 = vld [vmem:[#allocation7 + $0x118] sm:$0xff]
    %v222 = vld [vmem:[#allocation7 + $0x120] sm:$0xff]
    %v223 = vld [vmem:[#allocation7 + $0x128] sm:$0xff]
    %v224 = vld [vmem:[#allocation7 + $0x130] sm:$0xff]
    %v225 = vld [vmem:[#allocation7 + $0x138] sm:$0xff]
    %v226 = vld [vmem:[#allocation7 + $0x140] sm:$0xff]
    %v227 = vld [vmem:[#allocation7 + $0x148] sm:$0xff]
    %v228 = vld [vmem:[#allocation7 + $0x150] sm:$0xff]
    %v229 = vld [vmem:[#allocation7 + $0x158] sm:$0xff]
    %v230 = vld [vmem:[#allocation7 + $0x160] sm:$0xff]
    %v231 = vld [vmem:[#allocation7 + $0x168] sm:$0xff]
    %v232 = vld [vmem:[#allocation7 + $0x170] sm:$0xff]
    %v233 = vld [vmem:[#allocation7 + $0x178] sm:$0xff]
    %v234 = vld [vmem:[#allocation7 + $0x180] sm:$0xff]
    %v235 = vld [vmem:[#allocation7 + $0x188] sm:$0xff]
    %v236 = vld [vmem:[#allocation7 + $0x190] sm:$0xff]
    %v237 = vld [vmem:[#allocation7 + $0x198] sm:$0xff]
    %v238 = vld [vmem:[#allocation7 + $0x1a0] sm:$0xff]
    %v239 = vld [vmem:[#allocation7 + $0x1a8] sm:$0xff]
    %v240 = vld [vmem:[#allocation7 + $0x1b0] sm:$0xff]
    %v241 = vld [vmem:[#allocation7 + $0x1b8] sm:$0xff]
    %v242 = vld [vmem:[#allocation7 + $0x1c0] sm:$0xff]
    %v243 = vld [vmem:[#allocation7 + $0x1c8] sm:$0xff]
    %v244 = vld [vmem:[#allocation7 + $0x1d0] sm:$0xff]
    %v245 = vld [vmem:[#allocation7 + $0x1d8] sm:$0xff]
    %v246 = vld [vmem:[#allocation7 + $0x1e0] sm:$0xff]
    %v247 = vld [vmem:[#allocation7 + $0x1e8] sm:$0xff]
    %v248 = vld [vmem:[#allocation7 + $0x1f0] sm:$0xff]
    %v249 = vld [vmem:[#allocation7 + $0x1f8] sm:$0xff]
    %v250 = vld [vmem:[%s4] sm:$0xf]
    %v252 = vlaneseq
    %v253 = vshrl.u32 %v252, 7
    %v254 = vsub.s32 0, %v253
    %v255 = vrot.slane %v250, %v254
    %v256 = vlaneseq
    %v257 = vshrl.u32 %v256, 7
    %v258 = vsub.s32 1, %v257
    %v259 = vrot.slane %v250, %v258
    %v260 = vlaneseq
    %v261 = vshrl.u32 %v260, 7
    %v262 = vsub.s32 2, %v261
    %v263 = vrot.slane %v250, %v262
    %v264 = vlaneseq
    %v265 = vshrl.u32 %v264, 7
    %v266 = vsub.s32 3, %v265
    %v267 = vrot.slane %v250, %v266
    %v336 = vunpack.c.l.b16 %v186
    %v337 = vunpack.c.h.b16 %v186
    %v338 = vunpack.c.l.b16 %v187
    %v339 = vunpack.c.h.b16 %v187
    %v340 = vunpack.c.l.b16 %v188
    %v341 = vunpack.c.h.b16 %v188
    %v342 = vunpack.c.l.b16 %v189
    %v343 = vunpack.c.h.b16 %v189
    %v344 = vunpack.c.l.b16 %v190
    %v345 = vunpack.c.h.b16 %v190
    %v346 = vunpack.c.l.b16 %v191
    %v347 = vunpack.c.h.b16 %v191
    %v348 = vunpack.c.l.b16 %v192
    %v349 = vunpack.c.h.b16 %v192
    %v350 = vunpack.c.l.b16 %v193
    %v351 = vunpack.c.h.b16 %v193
    %v352 = vunpack.c.l.b16 %v194
    %v353 = vunpack.c.h.b16 %v194
    %v354 = vunpack.c.l.b16 %v195
    %v355 = vunpack.c.h.b16 %v195
    %v356 = vunpack.c.l.b16 %v196
    %v357 = vunpack.c.h.b16 %v196
    %v358 = vunpack.c.l.b16 %v197
    %v359 = vunpack.c.h.b16 %v197
    %v360 = vunpack.c.l.b16 %v198
    %v361 = vunpack.c.h.b16 %v198
    %v362 = vunpack.c.l.b16 %v199
    %v363 = vunpack.c.h.b16 %v199
    %v364 = vunpack.c.l.b16 %v200
    %v365 = vunpack.c.h.b16 %v200
    %v366 = vunpack.c.l.b16 %v201
    %v367 = vunpack.c.h.b16 %v201
    %v368 = vunpack.c.l.b16 %v202
    %v369 = vunpack.c.h.b16 %v202
    %v370 = vunpack.c.l.b16 %v203
    %v371 = vunpack.c.h.b16 %v203
    %v372 = vunpack.c.l.b16 %v204
    %v373 = vunpack.c.h.b16 %v204
    %v374 = vunpack.c.l.b16 %v205
    %v375 = vunpack.c.h.b16 %v205
    %v376 = vunpack.c.l.b16 %v206
    %v377 = vunpack.c.h.b16 %v206
    %v378 = vunpack.c.l.b16 %v207
    %v379 = vunpack.c.h.b16 %v207
    %v380 = vunpack.c.l.b16 %v208
    %v381 = vunpack.c.h.b16 %v208
    %v382 = vunpack.c.l.b16 %v209
    %v383 = vunpack.c.h.b16 %v209
    %v384 = vunpack.c.l.b16 %v210
    %v385 = vunpack.c.h.b16 %v210
    %v386 = vunpack.c.l.b16 %v211
    %v387 = vunpack.c.h.b16 %v211
    %v388 = vunpack.c.l.b16 %v212
    %v389 = vunpack.c.h.b16 %v212
    %v390 = vunpack.c.l.b16 %v213
    %v391 = vunpack.c.h.b16 %v213
    %v392 = vunpack.c.l.b16 %v214
    %v393 = vunpack.c.h.b16 %v214
    %v394 = vunpack.c.l.b16 %v215
    %v395 = vunpack.c.h.b16 %v215
    %v396 = vunpack.c.l.b16 %v216
    %v397 = vunpack.c.h.b16 %v216
    %v398 = vunpack.c.l.b16 %v217
    %v399 = vunpack.c.h.b16 %v217
    %v400 = vunpack.c.l.b16 %v218
    %v401 = vunpack.c.h.b16 %v218
    %v402 = vunpack.c.l.b16 %v219
    %v403 = vunpack.c.h.b16 %v219
    %v404 = vunpack.c.l.b16 %v220
    %v405 = vunpack.c.h.b16 %v220
    %v406 = vunpack.c.l.b16 %v221
    %v407 = vunpack.c.h.b16 %v221
    %v408 = vunpack.c.l.b16 %v222
    %v409 = vunpack.c.h.b16 %v222
    %v410 = vunpack.c.l.b16 %v223
    %v411 = vunpack.c.h.b16 %v223
    %v412 = vunpack.c.l.b16 %v224
    %v413 = vunpack.c.h.b16 %v224
    %v414 = vunpack.c.l.b16 %v225
    %v415 = vunpack.c.h.b16 %v225
    %v416 = vunpack.c.l.b16 %v226
    %v417 = vunpack.c.h.b16 %v226
    %v418 = vunpack.c.l.b16 %v227
    %v419 = vunpack.c.h.b16 %v227
    %v420 = vunpack.c.l.b16 %v228
    %v421 = vunpack.c.h.b16 %v228
    %v422 = vunpack.c.l.b16 %v229
    %v423 = vunpack.c.h.b16 %v229
    %v424 = vunpack.c.l.b16 %v230
    %v425 = vunpack.c.h.b16 %v230
    %v426 = vunpack.c.l.b16 %v231
    %v427 = vunpack.c.h.b16 %v231
    %v428 = vunpack.c.l.b16 %v232
    %v429 = vunpack.c.h.b16 %v232
    %v430 = vunpack.c.l.b16 %v233
    %v431 = vunpack.c.h.b16 %v233
    %v432 = vunpack.c.l.b16 %v234
    %v433 = vunpack.c.h.b16 %v234
    %v434 = vunpack.c.l.b16 %v235
    %v435 = vunpack.c.h.b16 %v235
    %v436 = vunpack.c.l.b16 %v236
    %v437 = vunpack.c.h.b16 %v236
    %v438 = vunpack.c.l.b16 %v237
    %v439 = vunpack.c.h.b16 %v237
    %v440 = vunpack.c.l.b16 %v238
    %v441 = vunpack.c.h.b16 %v238
    %v442 = vunpack.c.l.b16 %v239
    %v443 = vunpack.c.h.b16 %v239
    %v444 = vunpack.c.l.b16 %v240
    %v445 = vunpack.c.h.b16 %v240
    %v446 = vunpack.c.l.b16 %v241
    %v447 = vunpack.c.h.b16 %v241
    %v448 = vunpack.c.l.b16 %v242
    %v449 = vunpack.c.h.b16 %v242
    %v450 = vunpack.c.l.b16 %v243
    %v451 = vunpack.c.h.b16 %v243
    %v452 = vunpack.c.l.b16 %v244
    %v453 = vunpack.c.h.b16 %v244
    %v454 = vunpack.c.l.b16 %v245
    %v455 = vunpack.c.h.b16 %v245
    %v456 = vunpack.c.l.b16 %v246
    %v457 = vunpack.c.h.b16 %v246
    %v458 = vunpack.c.l.b16 %v247
    %v459 = vunpack.c.h.b16 %v247
    %v460 = vunpack.c.l.b16 %v248
    %v461 = vunpack.c.h.b16 %v248
    %v462 = vunpack.c.l.b16 %v249
    %v463 = vunpack.c.h.b16 %v249
    %v464 = vpack.c.b16 %v340, %v336
    %v465 = vpack.c.b16 %v341, %v337
    %v466 = vpack.c.b16 %v342, %v338
    %v467 = vpack.c.b16 %v343, %v339
    %v468 = vpack.c.b16 %v348, %v344
    %v469 = vpack.c.b16 %v349, %v345
    %v470 = vpack.c.b16 %v350, %v346
    %v471 = vpack.c.b16 %v351, %v347
    %v472 = vpack.c.b16 %v356, %v352
    %v473 = vpack.c.b16 %v357, %v353
    %v474 = vpack.c.b16 %v358, %v354
    %v475 = vpack.c.b16 %v359, %v355
    %v476 = vpack.c.b16 %v364, %v360
    %v477 = vpack.c.b16 %v365, %v361
    %v478 = vpack.c.b16 %v366, %v362
    %v479 = vpack.c.b16 %v367, %v363
    %v480 = vpack.c.b16 %v372, %v368
    %v481 = vpack.c.b16 %v373, %v369
    %v482 = vpack.c.b16 %v374, %v370
    %v483 = vpack.c.b16 %v375, %v371
    %v484 = vpack.c.b16 %v380, %v376
    %v485 = vpack.c.b16 %v381, %v377
    %v486 = vpack.c.b16 %v382, %v378
    %v487 = vpack.c.b16 %v383, %v379
    %v488 = vpack.c.b16 %v388, %v384
    %v489 = vpack.c.b16 %v389, %v385
    %v490 = vpack.c.b16 %v390, %v386
    %v491 = vpack.c.b16 %v391, %v387
    %v492 = vpack.c.b16 %v396, %v392
    %v493 = vpack.c.b16 %v397, %v393
    %v494 = vpack.c.b16 %v398, %v394
    %v495 = vpack.c.b16 %v399, %v395
    %v496 = vpack.c.b16 %v404, %v400
    %v497 = vpack.c.b16 %v405, %v401
    %v498 = vpack.c.b16 %v406, %v402
    %v499 = vpack.c.b16 %v407, %v403
    %v500 = vpack.c.b16 %v412, %v408
    %v501 = vpack.c.b16 %v413, %v409
    %v502 = vpack.c.b16 %v414, %v410
    %v503 = vpack.c.b16 %v415, %v411
    %v504 = vpack.c.b16 %v420, %v416
    %v505 = vpack.c.b16 %v421, %v417
    %v506 = vpack.c.b16 %v422, %v418
    %v507 = vpack.c.b16 %v423, %v419
    %v508 = vpack.c.b16 %v428, %v424
    %v509 = vpack.c.b16 %v429, %v425
    %v510 = vpack.c.b16 %v430, %v426
    %v511 = vpack.c.b16 %v431, %v427
    %v512 = vpack.c.b16 %v436, %v432
    %v513 = vpack.c.b16 %v437, %v433
    %v514 = vpack.c.b16 %v438, %v434
    %v515 = vpack.c.b16 %v439, %v435
    %v516 = vpack.c.b16 %v444, %v440
    %v517 = vpack.c.b16 %v445, %v441
    %v518 = vpack.c.b16 %v446, %v442
    %v519 = vpack.c.b16 %v447, %v443
    %v520 = vpack.c.b16 %v452, %v448
    %v521 = vpack.c.b16 %v453, %v449
    %v522 = vpack.c.b16 %v454, %v450
    %v523 = vpack.c.b16 %v455, %v451
    %v524 = vpack.c.b16 %v460, %v456
    %v525 = vpack.c.b16 %v461, %v457
    %v526 = vpack.c.b16 %v462, %v458
    %v527 = vpack.c.b16 %v463, %v459
    %592 = vmatprep.subr.bf16.mxu0 %v465
    %593 = vmatpush1.bf16.msra.mxu0 %v464
    %594 = vmatprep.subr.bf16.mxu0 %v469
    %595 = vmatpush1.bf16.msra.mxu0 %v468
    %596 = vmatprep.subr.bf16.mxu0 %v473
    %597 = vmatpush1.bf16.msra.mxu0 %v472
    %598 = vmatprep.subr.bf16.mxu0 %v477
    %599 = vmatpush1.bf16.msra.mxu0 %v476
    %600 = vmatprep.subr.bf16.mxu0 %v481
    %601 = vmatpush1.bf16.msra.mxu0 %v480
    %602 = vmatprep.subr.bf16.mxu0 %v485
    %603 = vmatpush1.bf16.msra.mxu0 %v484
    %604 = vmatprep.subr.bf16.mxu0 %v489
    %605 = vmatpush1.bf16.msra.mxu0 %v488
    %606 = vmatprep.subr.bf16.mxu0 %v493
    %607 = vmatpush1.bf16.msra.mxu0 %v492
    %608 = vmatprep.subr.bf16.mxu0 %v497
    %609 = vmatpush1.bf16.msra.mxu0 %v496
    %610 = vmatprep.subr.bf16.mxu0 %v501
    %611 = vmatpush1.bf16.msra.mxu0 %v500
    %612 = vmatprep.subr.bf16.mxu0 %v505
    %613 = vmatpush1.bf16.msra.mxu0 %v504
    %614 = vmatprep.subr.bf16.mxu0 %v509
    %615 = vmatpush1.bf16.msra.mxu0 %v508
    %616 = vmatprep.subr.bf16.mxu0 %v513
    %617 = vmatpush1.bf16.msra.mxu0 %v512
    %618 = vmatprep.subr.bf16.mxu0 %v517
    %619 = vmatpush1.bf16.msra.mxu0 %v516
    %620 = vmatprep.subr.bf16.mxu0 %v521
    %621 = vmatpush1.bf16.msra.mxu0 %v520
    %622 = vmatprep.subr.bf16.mxu0 %v525
    %623 = vmatpush1.bf16.msra.mxu0 %v524
    %624 = vmatprep.mubr.bf16.mxu0 %v185
    %625 = vmatmul.mubr.bf16.gmra.mrb[0].mxu0 %v184
    %v626 = vpop.f32.mrb[0].mxu0
    %v627 = vadd.f32 %v255, %v626
    %v628 = vpop.f32.mrb[0].mxu0
    %v629 = vadd.f32 %v259, %v628
    %v630 = vpop.f32.mrb[0].mxu0
    %v631 = vadd.f32 %v255, %v630
    %v632 = vpop.f32.mrb[0].mxu0
    %v633 = vadd.f32 %v259, %v632
    %634 = vdwg.mxu0
    %635 = vmatprep.subr.bf16.mxu0 %v467
    %636 = vmatpush1.bf16.msra.mxu0 %v466
    %637 = vmatprep.subr.bf16.mxu0 %v471
    %638 = vmatpush1.bf16.msra.mxu0 %v470
    %639 = vmatprep.subr.bf16.mxu0 %v475
    %640 = vmatpush1.bf16.msra.mxu0 %v474
    %641 = vmatprep.subr.bf16.mxu0 %v479
    %642 = vmatpush1.bf16.msra.mxu0 %v478
    %643 = vmatprep.subr.bf16.mxu0 %v483
    %644 = vmatpush1.bf16.msra.mxu0 %v482
    %645 = vmatprep.subr.bf16.mxu0 %v487
    %646 = vmatpush1.bf16.msra.mxu0 %v486
    %647 = vmatprep.subr.bf16.mxu0 %v491
    %648 = vmatpush1.bf16.msra.mxu0 %v490
    %649 = vmatprep.subr.bf16.mxu0 %v495
    %650 = vmatpush1.bf16.msra.mxu0 %v494
    %651 = vmatprep.subr.bf16.mxu0 %v499
    %652 = vmatpush1.bf16.msra.mxu0 %v498
    %653 = vmatprep.subr.bf16.mxu0 %v503
    %654 = vmatpush1.bf16.msra.mxu0 %v502
    %655 = vmatprep.subr.bf16.mxu0 %v507
    %656 = vmatpush1.bf16.msra.mxu0 %v506
    %657 = vmatprep.subr.bf16.mxu0 %v511
    %658 = vmatpush1.bf16.msra.mxu0 %v510
    %659 = vmatprep.subr.bf16.mxu0 %v515
    %660 = vmatpush1.bf16.msra.mxu0 %v514
    %661 = vmatprep.subr.bf16.mxu0 %v519
    %662 = vmatpush1.bf16.msra.mxu0 %v518
    %663 = vmatprep.subr.bf16.mxu0 %v523
    %664 = vmatpush1.bf16.msra.mxu0 %v522
    %665 = vmatprep.subr.bf16.mxu0 %v527
    %666 = vmatpush1.bf16.msra.mxu0 %v526
    %667 = vmatprep.mubr.bf16.mxu0 %v185
    %668 = vmatmul.mubr.bf16.gmra.mrb[0].mxu0 %v184
    %v669 = vpop.f32.mrb[0].mxu0
    %v670 = vadd.f32 %v263, %v669
    %v671 = vpop.f32.mrb[0].mxu0
    %v672 = vadd.f32 %v267, %v671
    %v673 = vpop.f32.mrb[0].mxu0
    %v674 = vadd.f32 %v263, %v673
    %v675 = vpop.f32.mrb[0].mxu0
    %v676 = vadd.f32 %v267, %v675
    %677 = vdwg.mxu0
    %v678 = vmax.f32 %v627, 0.0
    %v679 = vmax.f32 %v629, 0.0
    %v680 = vmax.f32 %v670, 0.0
    %v681 = vmax.f32 %v672, 0.0
    %v682 = vmax.f32 %v631, 0.0
    %v683 = vmax.f32 %v633, 0.0
    %v684 = vmax.f32 %v674, 0.0
    %v685 = vmax.f32 %v676, 0.0
    %v686 = vpack.c.bf16 %v682, %v678
    %v687 = vpack.c.bf16 %v683, %v679
    %v688 = vpack.c.bf16 %v684, %v680
    %v689 = vpack.c.bf16 %v685, %v681
    %v690 = vld [vmem:[#allocation8] sm:$0xff]
    %v691 = vld [vmem:[#allocation8 + $0x8] sm:$0xff]
    %v692 = vld [vmem:[#allocation8 + $0x10] sm:$0xff]
    %v693 = vld [vmem:[#allocation8 + $0x18] sm:$0xff]
    %v694 = vld [vmem:[#allocation8 + $0x20] sm:$0xff]
    %v695 = vld [vmem:[#allocation8 + $0x28] sm:$0xff]
    %v696 = vld [vmem:[#allocation8 + $0x30] sm:$0xff]
    %v697 = vld [vmem:[#allocation8 + $0x38] sm:$0xff]
    %v698 = vld [vmem:[#allocation8 + $0x40] sm:$0xff]
    %v699 = vld [vmem:[#allocation8 + $0x48] sm:$0xff]
    %v700 = vld [vmem:[#allocation8 + $0x50] sm:$0xff]
    %v701 = vld [vmem:[#allocation8 + $0x58] sm:$0xff]
    %v702 = vld [vmem:[#allocation8 + $0x60] sm:$0xff]
    %v703 = vld [vmem:[#allocation8 + $0x68] sm:$0xff]
    %v704 = vld [vmem:[#allocation8 + $0x70] sm:$0xff]
    %v705 = vld [vmem:[#allocation8 + $0x78] sm:$0xff]
    %v706 = vld [vmem:[#allocation8 + $0x80] sm:$0xff]
    %v707 = vld [vmem:[#allocation8 + $0x88] sm:$0xff]
    %v708 = vld [vmem:[#allocation8 + $0x90] sm:$0xff]
    %v709 = vld [vmem:[#allocation8 + $0x98] sm:$0xff]
    %v710 = vld [vmem:[#allocation8 + $0xa0] sm:$0xff]
    %v711 = vld [vmem:[#allocation8 + $0xa8] sm:$0xff]
    %v712 = vld [vmem:[#allocation8 + $0xb0] sm:$0xff]
    %v713 = vld [vmem:[#allocation8 + $0xb8] sm:$0xff]
    %v714 = vld [vmem:[#allocation8 + $0xc0] sm:$0xff]
    %v715 = vld [vmem:[#allocation8 + $0xc8] sm:$0xff]
    %v716 = vld [vmem:[#allocation8 + $0xd0] sm:$0xff]
    %v717 = vld [vmem:[#allocation8 + $0xd8] sm:$0xff]
    %v718 = vld [vmem:[#allocation8 + $0xe0] sm:$0xff]
    %v719 = vld [vmem:[#allocation8 + $0xe8] sm:$0xff]
    %v720 = vld [vmem:[#allocation8 + $0xf0] sm:$0xff]
    %v721 = vld [vmem:[#allocation8 + $0xf8] sm:$0xff]
    %v722 = vld [vmem:[#allocation8 + $0x100] sm:$0xff]
    %v723 = vld [vmem:[#allocation8 + $0x108] sm:$0xff]
    %v724 = vld [vmem:[#allocation8 + $0x110] sm:$0xff]
    %v725 = vld [vmem:[#allocation8 + $0x118] sm:$0xff]
    %v726 = vld [vmem:[#allocation8 + $0x120] sm:$0xff]
    %v727 = vld [vmem:[#allocation8 + $0x128] sm:$0xff]
    %v728 = vld [vmem:[#allocation8 + $0x130] sm:$0xff]
    %v729 = vld [vmem:[#allocation8 + $0x138] sm:$0xff]
    %v730 = vld [vmem:[#allocation8 + $0x140] sm:$0xff]
    %v731 = vld [vmem:[#allocation8 + $0x148] sm:$0xff]
    %v732 = vld [vmem:[#allocation8 + $0x150] sm:$0xff]
    %v733 = vld [vmem:[#allocation8 + $0x158] sm:$0xff]
    %v734 = vld [vmem:[#allocation8 + $0x160] sm:$0xff]
    %v735 = vld [vmem:[#allocation8 + $0x168] sm:$0xff]
    %v736 = vld [vmem:[#allocation8 + $0x170] sm:$0xff]
    %v737 = vld [vmem:[#allocation8 + $0x178] sm:$0xff]
    %v738 = vld [vmem:[#allocation8 + $0x180] sm:$0xff]
    %v739 = vld [vmem:[#allocation8 + $0x188] sm:$0xff]
    %v740 = vld [vmem:[#allocation8 + $0x190] sm:$0xff]
    %v741 = vld [vmem:[#allocation8 + $0x198] sm:$0xff]
    %v742 = vld [vmem:[#allocation8 + $0x1a0] sm:$0xff]
    %v743 = vld [vmem:[#allocation8 + $0x1a8] sm:$0xff]
    %v744 = vld [vmem:[#allocation8 + $0x1b0] sm:$0xff]
    %v745 = vld [vmem:[#allocation8 + $0x1b8] sm:$0xff]
    %v746 = vld [vmem:[#allocation8 + $0x1c0] sm:$0xff]
    %v747 = vld [vmem:[#allocation8 + $0x1c8] sm:$0xff]
    %v748 = vld [vmem:[#allocation8 + $0x1d0] sm:$0xff]
    %v749 = vld [vmem:[#allocation8 + $0x1d8] sm:$0xff]
    %v750 = vld [vmem:[#allocation8 + $0x1e0] sm:$0xff]
    %v751 = vld [vmem:[#allocation8 + $0x1e8] sm:$0xff]
    %v752 = vld [vmem:[#allocation8 + $0x1f0] sm:$0xff]
    %v753 = vld [vmem:[#allocation8 + $0x1f8] sm:$0xff]
    %v754 = vld [vmem:[#allocation8 + $0x200] sm:$0xff]
    %v755 = vld [vmem:[#allocation8 + $0x208] sm:$0xff]
    %v756 = vld [vmem:[#allocation8 + $0x210] sm:$0xff]
    %v757 = vld [vmem:[#allocation8 + $0x218] sm:$0xff]
    %v758 = vld [vmem:[#allocation8 + $0x220] sm:$0xff]
    %v759 = vld [vmem:[#allocation8 + $0x228] sm:$0xff]
    %v760 = vld [vmem:[#allocation8 + $0x230] sm:$0xff]
    %v761 = vld [vmem:[#allocation8 + $0x238] sm:$0xff]
    %v762 = vld [vmem:[#allocation8 + $0x240] sm:$0xff]
    %v763 = vld [vmem:[#allocation8 + $0x248] sm:$0xff]
    %v764 = vld [vmem:[#allocation8 + $0x250] sm:$0xff]
    %v765 = vld [vmem:[#allocation8 + $0x258] sm:$0xff]
    %v766 = vld [vmem:[#allocation8 + $0x260] sm:$0xff]
    %v767 = vld [vmem:[#allocation8 + $0x268] sm:$0xff]
    %v768 = vld [vmem:[#allocation8 + $0x270] sm:$0xff]
    %v769 = vld [vmem:[#allocation8 + $0x278] sm:$0xff]
    %v770 = vld [vmem:[#allocation8 + $0x280] sm:$0xff]
    %v771 = vld [vmem:[#allocation8 + $0x288] sm:$0xff]
    %v772 = vld [vmem:[#allocation8 + $0x290] sm:$0xff]
    %v773 = vld [vmem:[#allocation8 + $0x298] sm:$0xff]
    %v774 = vld [vmem:[#allocation8 + $0x2a0] sm:$0xff]
    %v775 = vld [vmem:[#allocation8 + $0x2a8] sm:$0xff]
    %v776 = vld [vmem:[#allocation8 + $0x2b0] sm:$0xff]
    %v777 = vld [vmem:[#allocation8 + $0x2b8] sm:$0xff]
    %v778 = vld [vmem:[#allocation8 + $0x2c0] sm:$0xff]
    %v779 = vld [vmem:[#allocation8 + $0x2c8] sm:$0xff]
    %v780 = vld [vmem:[#allocation8 + $0x2d0] sm:$0xff]
    %v781 = vld [vmem:[#allocation8 + $0x2d8] sm:$0xff]
    %v782 = vld [vmem:[#allocation8 + $0x2e0] sm:$0xff]
    %v783 = vld [vmem:[#allocation8 + $0x2e8] sm:$0xff]
    %v784 = vld [vmem:[#allocation8 + $0x2f0] sm:$0xff]
    %v785 = vld [vmem:[#allocation8 + $0x2f8] sm:$0xff]
    %v786 = vld [vmem:[#allocation8 + $0x300] sm:$0xff]
    %v787 = vld [vmem:[#allocation8 + $0x308] sm:$0xff]
    %v788 = vld [vmem:[#allocation8 + $0x310] sm:$0xff]
    %v789 = vld [vmem:[#allocation8 + $0x318] sm:$0xff]
    %v790 = vld [vmem:[#allocation8 + $0x320] sm:$0xff]
    %v791 = vld [vmem:[#allocation8 + $0x328] sm:$0xff]
    %v792 = vld [vmem:[#allocation8 + $0x330] sm:$0xff]
    %v793 = vld [vmem:[#allocation8 + $0x338] sm:$0xff]
    %v794 = vld [vmem:[#allocation8 + $0x340] sm:$0xff]
    %v795 = vld [vmem:[#allocation8 + $0x348] sm:$0xff]
    %v796 = vld [vmem:[#allocation8 + $0x350] sm:$0xff]
    %v797 = vld [vmem:[#allocation8 + $0x358] sm:$0xff]
    %v798 = vld [vmem:[#allocation8 + $0x360] sm:$0xff]
    %v799 = vld [vmem:[#allocation8 + $0x368] sm:$0xff]
    %v800 = vld [vmem:[#allocation8 + $0x370] sm:$0xff]
    %v801 = vld [vmem:[#allocation8 + $0x378] sm:$0xff]
    %v802 = vld [vmem:[#allocation8 + $0x380] sm:$0xff]
    %v803 = vld [vmem:[#allocation8 + $0x388] sm:$0xff]
    %v804 = vld [vmem:[#allocation8 + $0x390] sm:$0xff]
    %v805 = vld [vmem:[#allocation8 + $0x398] sm:$0xff]
    %v806 = vld [vmem:[#allocation8 + $0x3a0] sm:$0xff]
    %v807 = vld [vmem:[#allocation8 + $0x3a8] sm:$0xff]
    %v808 = vld [vmem:[#allocation8 + $0x3b0] sm:$0xff]
    %v809 = vld [vmem:[#allocation8 + $0x3b8] sm:$0xff]
    %v810 = vld [vmem:[#allocation8 + $0x3c0] sm:$0xff]
    %v811 = vld [vmem:[#allocation8 + $0x3c8] sm:$0xff]
    %v812 = vld [vmem:[#allocation8 + $0x3d0] sm:$0xff]
    %v813 = vld [vmem:[#allocation8 + $0x3d8] sm:$0xff]
    %v814 = vld [vmem:[#allocation8 + $0x3e0] sm:$0xff]
    %v815 = vld [vmem:[#allocation8 + $0x3e8] sm:$0xff]
    %v816 = vld [vmem:[#allocation8 + $0x3f0] sm:$0xff]
    %v817 = vld [vmem:[#allocation8 + $0x3f8] sm:$0xff]
    %v818 = vld [vmem:[%s6] sm:$0xf]
    %v820 = vlaneseq
    %v821 = vshrl.u32 %v820, 7
    %v822 = vsub.s32 0, %v821
    %v823 = vrot.slane %v818, %v822
    %v824 = vlaneseq
    %v825 = vshrl.u32 %v824, 7
    %v826 = vsub.s32 1, %v825
    %v827 = vrot.slane %v818, %v826
    %v828 = vlaneseq
    %v829 = vshrl.u32 %v828, 7
    %v830 = vsub.s32 2, %v829
    %v831 = vrot.slane %v818, %v830
    %v832 = vlaneseq
    %v833 = vshrl.u32 %v832, 7
    %v834 = vsub.s32 3, %v833
    %v835 = vrot.slane %v818, %v834
    %v968 = vunpack.c.l.b16 %v690
    %v969 = vunpack.c.h.b16 %v690
    %v970 = vunpack.c.l.b16 %v691
    %v971 = vunpack.c.h.b16 %v691
    %v972 = vunpack.c.l.b16 %v692
    %v973 = vunpack.c.h.b16 %v692
    %v974 = vunpack.c.l.b16 %v693
    %v975 = vunpack.c.h.b16 %v693
    %v976 = vunpack.c.l.b16 %v694
    %v977 = vunpack.c.h.b16 %v694
    %v978 = vunpack.c.l.b16 %v695
    %v979 = vunpack.c.h.b16 %v695
    %v980 = vunpack.c.l.b16 %v696
    %v981 = vunpack.c.h.b16 %v696
    %v982 = vunpack.c.l.b16 %v697
    %v983 = vunpack.c.h.b16 %v697
    %v984 = vunpack.c.l.b16 %v698
    %v985 = vunpack.c.h.b16 %v698
    %v986 = vunpack.c.l.b16 %v699
    %v987 = vunpack.c.h.b16 %v699
    %v988 = vunpack.c.l.b16 %v700
    %v989 = vunpack.c.h.b16 %v700
    %v990 = vunpack.c.l.b16 %v701
    %v991 = vunpack.c.h.b16 %v701
    %v992 = vunpack.c.l.b16 %v702
    %v993 = vunpack.c.h.b16 %v702
    %v994 = vunpack.c.l.b16 %v703
    %v995 = vunpack.c.h.b16 %v703
    %v996 = vunpack.c.l.b16 %v704
    %v997 = vunpack.c.h.b16 %v704
    %v998 = vunpack.c.l.b16 %v705
    %v999 = vunpack.c.h.b16 %v705
    %v1000 = vunpack.c.l.b16 %v706
    %v1001 = vunpack.c.h.b16 %v706
    %v1002 = vunpack.c.l.b16 %v707
    %v1003 = vunpack.c.h.b16 %v707
    %v1004 = vunpack.c.l.b16 %v708
    %v1005 = vunpack.c.h.b16 %v708
    %v1006 = vunpack.c.l.b16 %v709
    %v1007 = vunpack.c.h.b16 %v709
    %v1008 = vunpack.c.l.b16 %v710
    %v1009 = vunpack.c.h.b16 %v710
    %v1010 = vunpack.c.l.b16 %v711
    %v1011 = vunpack.c.h.b16 %v711
    %v1012 = vunpack.c.l.b16 %v712
    %v1013 = vunpack.c.h.b16 %v712
    %v1014 = vunpack.c.l.b16 %v713
    %v1015 = vunpack.c.h.b16 %v713
    %v1016 = vunpack.c.l.b16 %v714
    %v1017 = vunpack.c.h.b16 %v714
    %v1018 = vunpack.c.l.b16 %v715
    %v1019 = vunpack.c.h.b16 %v715
    %v1020 = vunpack.c.l.b16 %v716
    %v1021 = vunpack.c.h.b16 %v716
    %v1022 = vunpack.c.l.b16 %v717
    %v1023 = vunpack.c.h.b16 %v717
    %v1024 = vunpack.c.l.b16 %v718
    %v1025 = vunpack.c.h.b16 %v718
    %v1026 = vunpack.c.l.b16 %v719
    %v1027 = vunpack.c.h.b16 %v719
    %v1028 = vunpack.c.l.b16 %v720
    %v1029 = vunpack.c.h.b16 %v720
    %v1030 = vunpack.c.l.b16 %v721
    %v1031 = vunpack.c.h.b16 %v721
    %v1032 = vunpack.c.l.b16 %v722
    %v1033 = vunpack.c.h.b16 %v722
    %v1034 = vunpack.c.l.b16 %v723
    %v1035 = vunpack.c.h.b16 %v723
    %v1036 = vunpack.c.l.b16 %v724
    %v1037 = vunpack.c.h.b16 %v724
    %v1038 = vunpack.c.l.b16 %v725
    %v1039 = vunpack.c.h.b16 %v725
    %v1040 = vunpack.c.l.b16 %v726
    %v1041 = vunpack.c.h.b16 %v726
    %v1042 = vunpack.c.l.b16 %v727
    %v1043 = vunpack.c.h.b16 %v727
    %v1044 = vunpack.c.l.b16 %v728
    %v1045 = vunpack.c.h.b16 %v728
    %v1046 = vunpack.c.l.b16 %v729
    %v1047 = vunpack.c.h.b16 %v729
    %v1048 = vunpack.c.l.b16 %v730
    %v1049 = vunpack.c.h.b16 %v730
    %v1050 = vunpack.c.l.b16 %v731
    %v1051 = vunpack.c.h.b16 %v731
    %v1052 = vunpack.c.l.b16 %v732
    %v1053 = vunpack.c.h.b16 %v732
    %v1054 = vunpack.c.l.b16 %v733
    %v1055 = vunpack.c.h.b16 %v733
    %v1056 = vunpack.c.l.b16 %v734
    %v1057 = vunpack.c.h.b16 %v734
    %v1058 = vunpack.c.l.b16 %v735
    %v1059 = vunpack.c.h.b16 %v735
    %v1060 = vunpack.c.l.b16 %v736
    %v1061 = vunpack.c.h.b16 %v736
    %v1062 = vunpack.c.l.b16 %v737
    %v1063 = vunpack.c.h.b16 %v737
    %v1064 = vunpack.c.l.b16 %v738
    %v1065 = vunpack.c.h.b16 %v738
    %v1066 = vunpack.c.l.b16 %v739
    %v1067 = vunpack.c.h.b16 %v739
    %v1068 = vunpack.c.l.b16 %v740
    %v1069 = vunpack.c.h.b16 %v740
    %v1070 = vunpack.c.l.b16 %v741
    %v1071 = vunpack.c.h.b16 %v741
    %v1072 = vunpack.c.l.b16 %v742
    %v1073 = vunpack.c.h.b16 %v742
    %v1074 = vunpack.c.l.b16 %v743
    %v1075 = vunpack.c.h.b16 %v743
    %v1076 = vunpack.c.l.b16 %v744
    %v1077 = vunpack.c.h.b16 %v744
    %v1078 = vunpack.c.l.b16 %v745
    %v1079 = vunpack.c.h.b16 %v745
    %v1080 = vunpack.c.l.b16 %v746
    %v1081 = vunpack.c.h.b16 %v746
    %v1082 = vunpack.c.l.b16 %v747
    %v1083 = vunpack.c.h.b16 %v747
    %v1084 = vunpack.c.l.b16 %v748
    %v1085 = vunpack.c.h.b16 %v748
    %v1086 = vunpack.c.l.b16 %v749
    %v1087 = vunpack.c.h.b16 %v749
    %v1088 = vunpack.c.l.b16 %v750
    %v1089 = vunpack.c.h.b16 %v750
    %v1090 = vunpack.c.l.b16 %v751
    %v1091 = vunpack.c.h.b16 %v751
    %v1092 = vunpack.c.l.b16 %v752
    %v1093 = vunpack.c.h.b16 %v752
    %v1094 = vunpack.c.l.b16 %v753
    %v1095 = vunpack.c.h.b16 %v753
    %v1096 = vunpack.c.l.b16 %v754
    %v1097 = vunpack.c.h.b16 %v754
    %v1098 = vunpack.c.l.b16 %v755
    %v1099 = vunpack.c.h.b16 %v755
    %v1100 = vunpack.c.l.b16 %v756
    %v1101 = vunpack.c.h.b16 %v756
    %v1102 = vunpack.c.l.b16 %v757
    %v1103 = vunpack.c.h.b16 %v757
    %v1104 = vunpack.c.l.b16 %v758
    %v1105 = vunpack.c.h.b16 %v758
    %v1106 = vunpack.c.l.b16 %v759
    %v1107 = vunpack.c.h.b16 %v759
    %v1108 = vunpack.c.l.b16 %v760
    %v1109 = vunpack.c.h.b16 %v760
    %v1110 = vunpack.c.l.b16 %v761
    %v1111 = vunpack.c.h.b16 %v761
    %v1112 = vunpack.c.l.b16 %v762
    %v1113 = vunpack.c.h.b16 %v762
    %v1114 = vunpack.c.l.b16 %v763
    %v1115 = vunpack.c.h.b16 %v763
    %v1116 = vunpack.c.l.b16 %v764
    %v1117 = vunpack.c.h.b16 %v764
    %v1118 = vunpack.c.l.b16 %v765
    %v1119 = vunpack.c.h.b16 %v765
    %v1120 = vunpack.c.l.b16 %v766
    %v1121 = vunpack.c.h.b16 %v766
    %v1122 = vunpack.c.l.b16 %v767
    %v1123 = vunpack.c.h.b16 %v767
    %v1124 = vunpack.c.l.b16 %v768
    %v1125 = vunpack.c.h.b16 %v768
    %v1126 = vunpack.c.l.b16 %v769
    %v1127 = vunpack.c.h.b16 %v769
    %v1128 = vunpack.c.l.b16 %v770
    %v1129 = vunpack.c.h.b16 %v770
    %v1130 = vunpack.c.l.b16 %v771
    %v1131 = vunpack.c.h.b16 %v771
    %v1132 = vunpack.c.l.b16 %v772
    %v1133 = vunpack.c.h.b16 %v772
    %v1134 = vunpack.c.l.b16 %v773
    %v1135 = vunpack.c.h.b16 %v773
    %v1136 = vunpack.c.l.b16 %v774
    %v1137 = vunpack.c.h.b16 %v774
    %v1138 = vunpack.c.l.b16 %v775
    %v1139 = vunpack.c.h.b16 %v775
    %v1140 = vunpack.c.l.b16 %v776
    %v1141 = vunpack.c.h.b16 %v776
    %v1142 = vunpack.c.l.b16 %v777
    %v1143 = vunpack.c.h.b16 %v777
    %v1144 = vunpack.c.l.b16 %v778
    %v1145 = vunpack.c.h.b16 %v778
    %v1146 = vunpack.c.l.b16 %v779
    %v1147 = vunpack.c.h.b16 %v779
    %v1148 = vunpack.c.l.b16 %v780
    %v1149 = vunpack.c.h.b16 %v780
    %v1150 = vunpack.c.l.b16 %v781
    %v1151 = vunpack.c.h.b16 %v781
    %v1152 = vunpack.c.l.b16 %v782
    %v1153 = vunpack.c.h.b16 %v782
    %v1154 = vunpack.c.l.b16 %v783
    %v1155 = vunpack.c.h.b16 %v783
    %v1156 = vunpack.c.l.b16 %v784
    %v1157 = vunpack.c.h.b16 %v784
    %v1158 = vunpack.c.l.b16 %v785
    %v1159 = vunpack.c.h.b16 %v785
    %v1160 = vunpack.c.l.b16 %v786
    %v1161 = vunpack.c.h.b16 %v786
    %v1162 = vunpack.c.l.b16 %v787
    %v1163 = vunpack.c.h.b16 %v787
    %v1164 = vunpack.c.l.b16 %v788
    %v1165 = vunpack.c.h.b16 %v788
    %v1166 = vunpack.c.l.b16 %v789
    %v1167 = vunpack.c.h.b16 %v789
    %v1168 = vunpack.c.l.b16 %v790
    %v1169 = vunpack.c.h.b16 %v790
    %v1170 = vunpack.c.l.b16 %v791
    %v1171 = vunpack.c.h.b16 %v791
    %v1172 = vunpack.c.l.b16 %v792
    %v1173 = vunpack.c.h.b16 %v792
    %v1174 = vunpack.c.l.b16 %v793
    %v1175 = vunpack.c.h.b16 %v793
    %v1176 = vunpack.c.l.b16 %v794
    %v1177 = vunpack.c.h.b16 %v794
    %v1178 = vunpack.c.l.b16 %v795
    %v1179 = vunpack.c.h.b16 %v795
    %v1180 = vunpack.c.l.b16 %v796
    %v1181 = vunpack.c.h.b16 %v796
    %v1182 = vunpack.c.l.b16 %v797
    %v1183 = vunpack.c.h.b16 %v797
    %v1184 = vunpack.c.l.b16 %v798
    %v1185 = vunpack.c.h.b16 %v798
    %v1186 = vunpack.c.l.b16 %v799
    %v1187 = vunpack.c.h.b16 %v799
    %v1188 = vunpack.c.l.b16 %v800
    %v1189 = vunpack.c.h.b16 %v800
    %v1190 = vunpack.c.l.b16 %v801
    %v1191 = vunpack.c.h.b16 %v801
    %v1192 = vunpack.c.l.b16 %v802
    %v1193 = vunpack.c.h.b16 %v802
    %v1194 = vunpack.c.l.b16 %v803
    %v1195 = vunpack.c.h.b16 %v803
    %v1196 = vunpack.c.l.b16 %v804
    %v1197 = vunpack.c.h.b16 %v804
    %v1198 = vunpack.c.l.b16 %v805
    %v1199 = vunpack.c.h.b16 %v805
    %v1200 = vunpack.c.l.b16 %v806
    %v1201 = vunpack.c.h.b16 %v806
    %v1202 = vunpack.c.l.b16 %v807
    %v1203 = vunpack.c.h.b16 %v807
    %v1204 = vunpack.c.l.b16 %v808
    %v1205 = vunpack.c.h.b16 %v808
    %v1206 = vunpack.c.l.b16 %v809
    %v1207 = vunpack.c.h.b16 %v809
    %v1208 = vunpack.c.l.b16 %v810
    %v1209 = vunpack.c.h.b16 %v810
    %v1210 = vunpack.c.l.b16 %v811
    %v1211 = vunpack.c.h.b16 %v811
    %v1212 = vunpack.c.l.b16 %v812
    %v1213 = vunpack.c.h.b16 %v812
    %v1214 = vunpack.c.l.b16 %v813
    %v1215 = vunpack.c.h.b16 %v813
    %v1216 = vunpack.c.l.b16 %v814
    %v1217 = vunpack.c.h.b16 %v814
    %v1218 = vunpack.c.l.b16 %v815
    %v1219 = vunpack.c.h.b16 %v815
    %v1220 = vunpack.c.l.b16 %v816
    %v1221 = vunpack.c.h.b16 %v816
    %v1222 = vunpack.c.l.b16 %v817
    %v1223 = vunpack.c.h.b16 %v817
    %v1224 = vpack.c.b16 %v972, %v968
    %v1225 = vpack.c.b16 %v973, %v969
    %v1226 = vpack.c.b16 %v974, %v970
    %v1227 = vpack.c.b16 %v975, %v971
    %v1228 = vpack.c.b16 %v980, %v976
    %v1229 = vpack.c.b16 %v981, %v977
    %v1230 = vpack.c.b16 %v982, %v978
    %v1231 = vpack.c.b16 %v983, %v979
    %v1232 = vpack.c.b16 %v988, %v984
    %v1233 = vpack.c.b16 %v989, %v985
    %v1234 = vpack.c.b16 %v990, %v986
    %v1235 = vpack.c.b16 %v991, %v987
    %v1236 = vpack.c.b16 %v996, %v992
    %v1237 = vpack.c.b16 %v997, %v993
    %v1238 = vpack.c.b16 %v998, %v994
    %v1239 = vpack.c.b16 %v999, %v995
    %v1240 = vpack.c.b16 %v1004, %v1000
    %v1241 = vpack.c.b16 %v1005, %v1001
    %v1242 = vpack.c.b16 %v1006, %v1002
    %v1243 = vpack.c.b16 %v1007, %v1003
    %v1244 = vpack.c.b16 %v1012, %v1008
    %v1245 = vpack.c.b16 %v1013, %v1009
    %v1246 = vpack.c.b16 %v1014, %v1010
    %v1247 = vpack.c.b16 %v1015, %v1011
    %v1248 = vpack.c.b16 %v1020, %v1016
    %v1249 = vpack.c.b16 %v1021, %v1017
    %v1250 = vpack.c.b16 %v1022, %v1018
    %v1251 = vpack.c.b16 %v1023, %v1019
    %v1252 = vpack.c.b16 %v1028, %v1024
    %v1253 = vpack.c.b16 %v1029, %v1025
    %v1254 = vpack.c.b16 %v1030, %v1026
    %v1255 = vpack.c.b16 %v1031, %v1027
    %v1256 = vpack.c.b16 %v1036, %v1032
    %v1257 = vpack.c.b16 %v1037, %v1033
    %v1258 = vpack.c.b16 %v1038, %v1034
    %v1259 = vpack.c.b16 %v1039, %v1035
    %v1260 = vpack.c.b16 %v1044, %v1040
    %v1261 = vpack.c.b16 %v1045, %v1041
    %v1262 = vpack.c.b16 %v1046, %v1042
    %v1263 = vpack.c.b16 %v1047, %v1043
    %v1264 = vpack.c.b16 %v1052, %v1048
    %v1265 = vpack.c.b16 %v1053, %v1049
    %v1266 = vpack.c.b16 %v1054, %v1050
    %v1267 = vpack.c.b16 %v1055, %v1051
    %v1268 = vpack.c.b16 %v1060, %v1056
    %v1269 = vpack.c.b16 %v1061, %v1057
    %v1270 = vpack.c.b16 %v1062, %v1058
    %v1271 = vpack.c.b16 %v1063, %v1059
    %v1272 = vpack.c.b16 %v1068, %v1064
    %v1273 = vpack.c.b16 %v1069, %v1065
    %v1274 = vpack.c.b16 %v1070, %v1066
    %v1275 = vpack.c.b16 %v1071, %v1067
    %v1276 = vpack.c.b16 %v1076, %v1072
    %v1277 = vpack.c.b16 %v1077, %v1073
    %v1278 = vpack.c.b16 %v1078, %v1074
    %v1279 = vpack.c.b16 %v1079, %v1075
    %v1280 = vpack.c.b16 %v1084, %v1080
    %v1281 = vpack.c.b16 %v1085, %v1081
    %v1282 = vpack.c.b16 %v1086, %v1082
    %v1283 = vpack.c.b16 %v1087, %v1083
    %v1284 = vpack.c.b16 %v1092, %v1088
    %v1285 = vpack.c.b16 %v1093, %v1089
    %v1286 = vpack.c.b16 %v1094, %v1090
    %v1287 = vpack.c.b16 %v1095, %v1091
    %v1288 = vpack.c.b16 %v1100, %v1096
    %v1289 = vpack.c.b16 %v1101, %v1097
    %v1290 = vpack.c.b16 %v1102, %v1098
    %v1291 = vpack.c.b16 %v1103, %v1099
    %v1292 = vpack.c.b16 %v1108, %v1104
    %v1293 = vpack.c.b16 %v1109, %v1105
    %v1294 = vpack.c.b16 %v1110, %v1106
    %v1295 = vpack.c.b16 %v1111, %v1107
    %v1296 = vpack.c.b16 %v1116, %v1112
    %v1297 = vpack.c.b16 %v1117, %v1113
    %v1298 = vpack.c.b16 %v1118, %v1114
    %v1299 = vpack.c.b16 %v1119, %v1115
    %v1300 = vpack.c.b16 %v1124, %v1120
    %v1301 = vpack.c.b16 %v1125, %v1121
    %v1302 = vpack.c.b16 %v1126, %v1122
    %v1303 = vpack.c.b16 %v1127, %v1123
    %v1304 = vpack.c.b16 %v1132, %v1128
    %v1305 = vpack.c.b16 %v1133, %v1129
    %v1306 = vpack.c.b16 %v1134, %v1130
    %v1307 = vpack.c.b16 %v1135, %v1131
    %v1308 = vpack.c.b16 %v1140, %v1136
    %v1309 = vpack.c.b16 %v1141, %v1137
    %v1310 = vpack.c.b16 %v1142, %v1138
    %v1311 = vpack.c.b16 %v1143, %v1139
    %v1312 = vpack.c.b16 %v1148, %v1144
    %v1313 = vpack.c.b16 %v1149, %v1145
    %v1314 = vpack.c.b16 %v1150, %v1146
    %v1315 = vpack.c.b16 %v1151, %v1147
    %v1316 = vpack.c.b16 %v1156, %v1152
    %v1317 = vpack.c.b16 %v1157, %v1153
    %v1318 = vpack.c.b16 %v1158, %v1154
    %v1319 = vpack.c.b16 %v1159, %v1155
    %v1320 = vpack.c.b16 %v1164, %v1160
    %v1321 = vpack.c.b16 %v1165, %v1161
    %v1322 = vpack.c.b16 %v1166, %v1162
    %v1323 = vpack.c.b16 %v1167, %v1163
    %v1324 = vpack.c.b16 %v1172, %v1168
    %v1325 = vpack.c.b16 %v1173, %v1169
    %v1326 = vpack.c.b16 %v1174, %v1170
    %v1327 = vpack.c.b16 %v1175, %v1171
    %v1328 = vpack.c.b16 %v1180, %v1176
    %v1329 = vpack.c.b16 %v1181, %v1177
    %v1330 = vpack.c.b16 %v1182, %v1178
    %v1331 = vpack.c.b16 %v1183, %v1179
    %v1332 = vpack.c.b16 %v1188, %v1184
    %v1333 = vpack.c.b16 %v1189, %v1185
    %v1334 = vpack.c.b16 %v1190, %v1186
    %v1335 = vpack.c.b16 %v1191, %v1187
    %v1336 = vpack.c.b16 %v1196, %v1192
    %v1337 = vpack.c.b16 %v1197, %v1193
    %v1338 = vpack.c.b16 %v1198, %v1194
    %v1339 = vpack.c.b16 %v1199, %v1195
    %v1340 = vpack.c.b16 %v1204, %v1200
    %v1341 = vpack.c.b16 %v1205, %v1201
    %v1342 = vpack.c.b16 %v1206, %v1202
    %v1343 = vpack.c.b16 %v1207, %v1203
    %v1344 = vpack.c.b16 %v1212, %v1208
    %v1345 = vpack.c.b16 %v1213, %v1209
    %v1346 = vpack.c.b16 %v1214, %v1210
    %v1347 = vpack.c.b16 %v1215, %v1211
    %v1348 = vpack.c.b16 %v1220, %v1216
    %v1349 = vpack.c.b16 %v1221, %v1217
    %v1350 = vpack.c.b16 %v1222, %v1218
    %v1351 = vpack.c.b16 %v1223, %v1219
    %1480 = vmatprep.subr.bf16.mxu0 %v1225
    %1481 = vmatpush1.bf16.msra.mxu0 %v1224
    %1482 = vmatprep.subr.bf16.mxu0 %v1229
    %1483 = vmatpush1.bf16.msra.mxu0 %v1228
    %1484 = vmatprep.subr.bf16.mxu0 %v1233
    %1485 = vmatpush1.bf16.msra.mxu0 %v1232
    %1486 = vmatprep.subr.bf16.mxu0 %v1237
    %1487 = vmatpush1.bf16.msra.mxu0 %v1236
    %1488 = vmatprep.subr.bf16.mxu0 %v1241
    %1489 = vmatpush1.bf16.msra.mxu0 %v1240
    %1490 = vmatprep.subr.bf16.mxu0 %v1245
    %1491 = vmatpush1.bf16.msra.mxu0 %v1244
    %1492 = vmatprep.subr.bf16.mxu0 %v1249
    %1493 = vmatpush1.bf16.msra.mxu0 %v1248
    %1494 = vmatprep.subr.bf16.mxu0 %v1253
    %1495 = vmatpush1.bf16.msra.mxu0 %v1252
    %1496 = vmatprep.subr.bf16.mxu0 %v1257
    %1497 = vmatpush1.bf16.msra.mxu0 %v1256
    %1498 = vmatprep.subr.bf16.mxu0 %v1261
    %1499 = vmatpush1.bf16.msra.mxu0 %v1260
    %1500 = vmatprep.subr.bf16.mxu0 %v1265
    %1501 = vmatpush1.bf16.msra.mxu0 %v1264
    %1502 = vmatprep.subr.bf16.mxu0 %v1269
    %1503 = vmatpush1.bf16.msra.mxu0 %v1268
    %1504 = vmatprep.subr.bf16.mxu0 %v1273
    %1505 = vmatpush1.bf16.msra.mxu0 %v1272
    %1506 = vmatprep.subr.bf16.mxu0 %v1277
    %1507 = vmatpush1.bf16.msra.mxu0 %v1276
    %1508 = vmatprep.subr.bf16.mxu0 %v1281
    %1509 = vmatpush1.bf16.msra.mxu0 %v1280
    %1510 = vmatprep.subr.bf16.mxu0 %v1285
    %1511 = vmatpush1.bf16.msra.mxu0 %v1284
    %1512 = vmatprep.mubr.bf16.mxu0 %v687
    %1513 = vmatmul.mubr.bf16.gmra.mrb[0].mxu0 %v686
    %v1514 = vpop.f32.mrb[0].mxu0
    %v1515 = vadd.f32 %v823, %v1514
    %v1516 = vpop.f32.mrb[0].mxu0
    %v1517 = vadd.f32 %v827, %v1516
    %v1518 = vpop.f32.mrb[0].mxu0
    %v1519 = vadd.f32 %v823, %v1518
    %v1520 = vpop.f32.mrb[0].mxu0
    %v1521 = vadd.f32 %v827, %v1520
    %1522 = vdwg.mxu0
    %1523 = vmatprep.subr.bf16.mxu0 %v1289
    %1524 = vmatpush1.bf16.msra.mxu0 %v1288
    %1525 = vmatprep.subr.bf16.mxu0 %v1293
    %1526 = vmatpush1.bf16.msra.mxu0 %v1292
    %1527 = vmatprep.subr.bf16.mxu0 %v1297
    %1528 = vmatpush1.bf16.msra.mxu0 %v1296
    %1529 = vmatprep.subr.bf16.mxu0 %v1301
    %1530 = vmatpush1.bf16.msra.mxu0 %v1300
    %1531 = vmatprep.subr.bf16.mxu0 %v1305
    %1532 = vmatpush1.bf16.msra.mxu0 %v1304
    %1533 = vmatprep.subr.bf16.mxu0 %v1309
    %1534 = vmatpush1.bf16.msra.mxu0 %v1308
    %1535 = vmatprep.subr.bf16.mxu0 %v1313
    %1536 = vmatpush1.bf16.msra.mxu0 %v1312
    %1537 = vmatprep.subr.bf16.mxu0 %v1317
    %1538 = vmatpush1.bf16.msra.mxu0 %v1316
    %1539 = vmatprep.subr.bf16.mxu0 %v1321
    %1540 = vmatpush1.bf16.msra.mxu0 %v1320
    %1541 = vmatprep.subr.bf16.mxu0 %v1325
    %1542 = vmatpush1.bf16.msra.mxu0 %v1324
    %1543 = vmatprep.subr.bf16.mxu0 %v1329
    %1544 = vmatpush1.bf16.msra.mxu0 %v1328
    %1545 = vmatprep.subr.bf16.mxu0 %v1333
    %1546 = vmatpush1.bf16.msra.mxu0 %v1332
    %1547 = vmatprep.subr.bf16.mxu0 %v1337
    %1548 = vmatpush1.bf16.msra.mxu0 %v1336
    %1549 = vmatprep.subr.bf16.mxu0 %v1341
    %1550 = vmatpush1.bf16.msra.mxu0 %v1340
    %1551 = vmatprep.subr.bf16.mxu0 %v1345
    %1552 = vmatpush1.bf16.msra.mxu0 %v1344
    %1553 = vmatprep.subr.bf16.mxu0 %v1349
    %1554 = vmatpush1.bf16.msra.mxu0 %v1348
    %1555 = vmatprep.mubr.bf16.mxu0 %v689
    %1556 = vmatmul.mubr.bf16.gmra.mrb[0].mxu0 %v688
    %v1557 = vpop.f32.mrb[0].mxu0
    %v1558 = vadd.f32 %v1515, %v1557
    %v1559 = vpop.f32.mrb[0].mxu0
    %v1560 = vadd.f32 %v1517, %v1559
    %v1561 = vpop.f32.mrb[0].mxu0
    %v1562 = vadd.f32 %v1519, %v1561
    %v1563 = vpop.f32.mrb[0].mxu0
    %v1564 = vadd.f32 %v1521, %v1563
    %1565 = vdwg.mxu0
    %1566 = vmatprep.subr.bf16.mxu0 %v1227
    %1567 = vmatpush1.bf16.msra.mxu0 %v1226
    %1568 = vmatprep.subr.bf16.mxu0 %v1231
    %1569 = vmatpush1.bf16.msra.mxu0 %v1230
    %1570 = vmatprep.subr.bf16.mxu0 %v1235
    %1571 = vmatpush1.bf16.msra.mxu0 %v1234
    %1572 = vmatprep.subr.bf16.mxu0 %v1239
    %1573 = vmatpush1.bf16.msra.mxu0 %v1238
    %1574 = vmatprep.subr.bf16.mxu0 %v1243
    %1575 = vmatpush1.bf16.msra.mxu0 %v1242
    %1576 = vmatprep.subr.bf16.mxu0 %v1247
    %1577 = vmatpush1.bf16.msra.mxu0 %v1246
    %1578 = vmatprep.subr.bf16.mxu0 %v1251
    %1579 = vmatpush1.bf16.msra.mxu0 %v1250
    %1580 = vmatprep.subr.bf16.mxu0 %v1255
    %1581 = vmatpush1.bf16.msra.mxu0 %v1254
    %1582 = vmatprep.subr.bf16.mxu0 %v1259
    %1583 = vmatpush1.bf16.msra.mxu0 %v1258
    %1584 = vmatprep.subr.bf16.mxu0 %v1263
    %1585 = vmatpush1.bf16.msra.mxu0 %v1262
    %1586 = vmatprep.subr.bf16.mxu0 %v1267
    %1587 = vmatpush1.bf16.msra.mxu0 %v1266
    %1588 = vmatprep.subr.bf16.mxu0 %v1271
    %1589 = vmatpush1.bf16.msra.mxu0 %v1270
    %1590 = vmatprep.subr.bf16.mxu0 %v1275
    %1591 = vmatpush1.bf16.msra.mxu0 %v1274
    %1592 = vmatprep.subr.bf16.mxu0 %v1279
    %1593 = vmatpush1.bf16.msra.mxu0 %v1278
    %1594 = vmatprep.subr.bf16.mxu0 %v1283
    %1595 = vmatpush1.bf16.msra.mxu0 %v1282
    %1596 = vmatprep.subr.bf16.mxu0 %v1287
    %1597 = vmatpush1.bf16.msra.mxu0 %v1286
    %1598 = vmatprep.mubr.bf16.mxu0 %v687
    %1599 = vmatmul.mubr.bf16.gmra.mrb[0].mxu0 %v686
    %v1600 = vpop.f32.mrb[0].mxu0
    %v1601 = vadd.f32 %v831, %v1600
    %v1602 = vpop.f32.mrb[0].mxu0
    %v1603 = vadd.f32 %v835, %v1602
    %v1604 = vpop.f32.mrb[0].mxu0
    %v1605 = vadd.f32 %v831, %v1604
    %v1606 = vpop.f32.mrb[0].mxu0
    %v1607 = vadd.f32 %v835, %v1606
    %1608 = vdwg.mxu0
    %1609 = vmatprep.subr.bf16.mxu0 %v1291
    %1610 = vmatpush1.bf16.msra.mxu0 %v1290
    %1611 = vmatprep.subr.bf16.mxu0 %v1295
    %1612 = vmatpush1.bf16.msra.mxu0 %v1294
    %1613 = vmatprep.subr.bf16.mxu0 %v1299
    %1614 = vmatpush1.bf16.msra.mxu0 %v1298
    %1615 = vmatprep.subr.bf16.mxu0 %v1303
    %1616 = vmatpush1.bf16.msra.mxu0 %v1302
    %1617 = vmatprep.subr.bf16.mxu0 %v1307
    %1618 = vmatpush1.bf16.msra.mxu0 %v1306
    %1619 = vmatprep.subr.bf16.mxu0 %v1311
    %1620 = vmatpush1.bf16.msra.mxu0 %v1310
    %1621 = vmatprep.subr.bf16.mxu0 %v1315
    %1622 = vmatpush1.bf16.msra.mxu0 %v1314
    %1623 = vmatprep.subr.bf16.mxu0 %v1319
    %1624 = vmatpush1.bf16.msra.mxu0 %v1318
    %1625 = vmatprep.subr.bf16.mxu0 %v1323
    %1626 = vmatpush1.bf16.msra.mxu0 %v1322
    %1627 = vmatprep.subr.bf16.mxu0 %v1327
    %1628 = vmatpush1.bf16.msra.mxu0 %v1326
    %1629 = vmatprep.subr.bf16.mxu0 %v1331
    %1630 = vmatpush1.bf16.msra.mxu0 %v1330
    %1631 = vmatprep.subr.bf16.mxu0 %v1335
    %1632 = vmatpush1.bf16.msra.mxu0 %v1334
    %1633 = vmatprep.subr.bf16.mxu0 %v1339
    %1634 = vmatpush1.bf16.msra.mxu0 %v1338
    %1635 = vmatprep.subr.bf16.mxu0 %v1343
    %1636 = vmatpush1.bf16.msra.mxu0 %v1342
    %1637 = vmatprep.subr.bf16.mxu0 %v1347
    %1638 = vmatpush1.bf16.msra.mxu0 %v1346
    %1639 = vmatprep.subr.bf16.mxu0 %v1351
    %1640 = vmatpush1.bf16.msra.mxu0 %v1350
    %1641 = vmatprep.mubr.bf16.mxu0 %v689
    %1642 = vmatmul.mubr.bf16.gmra.mrb[0].mxu0 %v688
    %v1643 = vpop.f32.mrb[0].mxu0
    %v1644 = vadd.f32 %v1601, %v1643
    %v1645 = vpop.f32.mrb[0].mxu0
    %v1646 = vadd.f32 %v1603, %v1645
    %v1647 = vpop.f32.mrb[0].mxu0
    %v1648 = vadd.f32 %v1605, %v1647
    %v1649 = vpop.f32.mrb[0].mxu0
    %v1650 = vadd.f32 %v1607, %v1649
    %1651 = vdwg.mxu0
    %v1652 = vmax.f32 %v1558, 0.0
    %v1653 = vmax.f32 %v1560, 0.0
    %v1654 = vmax.f32 %v1644, 0.0
    %v1655 = vmax.f32 %v1646, 0.0
    %v1656 = vmax.f32 %v1562, 0.0
    %v1657 = vmax.f32 %v1564, 0.0
    %v1658 = vmax.f32 %v1648, 0.0
    %v1659 = vmax.f32 %v1650, 0.0
    %v1660 = vpack.c.bf16 %v1656, %v1652
    %v1661 = vpack.c.bf16 %v1657, %v1653
    %v1662 = vpack.c.bf16 %v1658, %v1654
    %v1663 = vpack.c.bf16 %v1659, %v1655
    %v1664 = vld [vmem:[#allocation10] sm:$0xf]
    %v1665 = vld [vmem:[#allocation10 + $0x4] sm:$0xf]
    %v1666 = vld [vmem:[#allocation10 + $0x8] sm:$0xf]
    %v1667 = vld [vmem:[#allocation10 + $0xc] sm:$0xf]
    %v1668 = vld [vmem:[#allocation10 + $0x10] sm:$0xf]
    %v1669 = vld [vmem:[#allocation10 + $0x14] sm:$0xf]
    %v1670 = vld [vmem:[#allocation10 + $0x18] sm:$0xf]
    %v1671 = vld [vmem:[#allocation10 + $0x1c] sm:$0xf]
    %v1672 = vld [vmem:[#allocation10 + $0x20] sm:$0xf]
    %v1673 = vld [vmem:[#allocation10 + $0x24] sm:$0xf]
    %v1674 = vld [vmem:[#allocation10 + $0x28] sm:$0xf]
    %v1675 = vld [vmem:[#allocation10 + $0x2c] sm:$0xf]
    %v1676 = vld [vmem:[#allocation10 + $0x30] sm:$0xf]
    %v1677 = vld [vmem:[#allocation10 + $0x34] sm:$0xf]
    %v1678 = vld [vmem:[#allocation10 + $0x38] sm:$0xf]
    %v1679 = vld [vmem:[#allocation10 + $0x3c] sm:$0xf]
    %v1680 = vld [vmem:[#allocation10 + $0x40] sm:$0xf]
    %v1681 = vld [vmem:[#allocation10 + $0x44] sm:$0xf]
    %v1682 = vld [vmem:[#allocation10 + $0x48] sm:$0xf]
    %v1683 = vld [vmem:[#allocation10 + $0x4c] sm:$0xf]
    %v1684 = vld [vmem:[#allocation10 + $0x50] sm:$0xf]
    %v1685 = vld [vmem:[#allocation10 + $0x54] sm:$0xf]
    %v1686 = vld [vmem:[#allocation10 + $0x58] sm:$0xf]
    %v1687 = vld [vmem:[#allocation10 + $0x5c] sm:$0xf]
    %v1688 = vld [vmem:[#allocation10 + $0x60] sm:$0xf]
    %v1689 = vld [vmem:[#allocation10 + $0x64] sm:$0xf]
    %v1690 = vld [vmem:[#allocation10 + $0x68] sm:$0xf]
    %v1691 = vld [vmem:[#allocation10 + $0x6c] sm:$0xf]
    %v1692 = vld [vmem:[#allocation10 + $0x70] sm:$0xf]
    %v1693 = vld [vmem:[#allocation10 + $0x74] sm:$0xf]
    %v1694 = vld [vmem:[#allocation10 + $0x78] sm:$0xf]
    %v1695 = vld [vmem:[#allocation10 + $0x7c] sm:$0xf]
    %v1696 = vld [vmem:[#allocation10 + $0x80] sm:$0xf]
    %v1697 = vld [vmem:[#allocation10 + $0x84] sm:$0xf]
    %v1698 = vld [vmem:[#allocation10 + $0x88] sm:$0xf]
    %v1699 = vld [vmem:[#allocation10 + $0x8c] sm:$0xf]
    %v1700 = vld [vmem:[#allocation10 + $0x90] sm:$0xf]
    %v1701 = vld [vmem:[#allocation10 + $0x94] sm:$0xf]
    %v1702 = vld [vmem:[#allocation10 + $0x98] sm:$0xf]
    %v1703 = vld [vmem:[#allocation10 + $0x9c] sm:$0xf]
    %v1704 = vld [vmem:[#allocation10 + $0xa0] sm:$0xf]
    %v1705 = vld [vmem:[#allocation10 + $0xa4] sm:$0xf]
    %v1706 = vld [vmem:[#allocation10 + $0xa8] sm:$0xf]
    %v1707 = vld [vmem:[#allocation10 + $0xac] sm:$0xf]
    %v1708 = vld [vmem:[#allocation10 + $0xb0] sm:$0xf]
    %v1709 = vld [vmem:[#allocation10 + $0xb4] sm:$0xf]
    %v1710 = vld [vmem:[#allocation10 + $0xb8] sm:$0xf]
    %v1711 = vld [vmem:[#allocation10 + $0xbc] sm:$0xf]
    %v1712 = vld [vmem:[#allocation10 + $0xc0] sm:$0xf]
    %v1713 = vld [vmem:[#allocation10 + $0xc4] sm:$0xf]
    %v1714 = vld [vmem:[#allocation10 + $0xc8] sm:$0xf]
    %v1715 = vld [vmem:[#allocation10 + $0xcc] sm:$0xf]
    %v1716 = vld [vmem:[#allocation10 + $0xd0] sm:$0xf]
    %v1717 = vld [vmem:[#allocation10 + $0xd4] sm:$0xf]
    %v1718 = vld [vmem:[#allocation10 + $0xd8] sm:$0xf]
    %v1719 = vld [vmem:[#allocation10 + $0xdc] sm:$0xf]
    %v1720 = vld [vmem:[#allocation10 + $0xe0] sm:$0xf]
    %v1721 = vld [vmem:[#allocation10 + $0xe4] sm:$0xf]
    %v1722 = vld [vmem:[#allocation10 + $0xe8] sm:$0xf]
    %v1723 = vld [vmem:[#allocation10 + $0xec] sm:$0xf]
    %v1724 = vld [vmem:[#allocation10 + $0xf0] sm:$0xf]
    %v1725 = vld [vmem:[#allocation10 + $0xf4] sm:$0xf]
    %v1726 = vld [vmem:[#allocation10 + $0xf8] sm:$0xf]
    %v1727 = vld [vmem:[#allocation10 + $0xfc] sm:$0xf]
    %v1728 = vld [vmem:[%s8] sm:$0x1]
    %v1730 = vlaneseq
    %v1731 = vshrl.u32 %v1730, 7
    %v1732 = vsub.s32 0, %v1731
    %v1733 = vrot.slane %v1728, %v1732
    %v1799 = vunpack.c.l.b16 %v1664
    %v1800 = vunpack.c.l.b16 %v1665
    %v1801 = vunpack.c.l.b16 %v1666
    %v1802 = vunpack.c.l.b16 %v1667
    %v1803 = vunpack.c.l.b16 %v1668
    %v1804 = vunpack.c.l.b16 %v1669
    %v1805 = vunpack.c.l.b16 %v1670
    %v1806 = vunpack.c.l.b16 %v1671
    %v1807 = vunpack.c.l.b16 %v1672
    %v1808 = vunpack.c.l.b16 %v1673
    %v1809 = vunpack.c.l.b16 %v1674
    %v1810 = vunpack.c.l.b16 %v1675
    %v1811 = vunpack.c.l.b16 %v1676
    %v1812 = vunpack.c.l.b16 %v1677
    %v1813 = vunpack.c.l.b16 %v1678
    %v1814 = vunpack.c.l.b16 %v1679
    %v1815 = vunpack.c.l.b16 %v1680
    %v1816 = vunpack.c.l.b16 %v1681
    %v1817 = vunpack.c.l.b16 %v1682
    %v1818 = vunpack.c.l.b16 %v1683
    %v1819 = vunpack.c.l.b16 %v1684
    %v1820 = vunpack.c.l.b16 %v1685
    %v1821 = vunpack.c.l.b16 %v1686
    %v1822 = vunpack.c.l.b16 %v1687
    %v1823 = vunpack.c.l.b16 %v1688
    %v1824 = vunpack.c.l.b16 %v1689
    %v1825 = vunpack.c.l.b16 %v1690
    %v1826 = vunpack.c.l.b16 %v1691
    %v1827 = vunpack.c.l.b16 %v1692
    %v1828 = vunpack.c.l.b16 %v1693
    %v1829 = vunpack.c.l.b16 %v1694
    %v1830 = vunpack.c.l.b16 %v1695
    %v1831 = vunpack.c.l.b16 %v1696
    %v1832 = vunpack.c.l.b16 %v1697
    %v1833 = vunpack.c.l.b16 %v1698
    %v1834 = vunpack.c.l.b16 %v1699
    %v1835 = vunpack.c.l.b16 %v1700
    %v1836 = vunpack.c.l.b16 %v1701
    %v1837 = vunpack.c.l.b16 %v1702
    %v1838 = vunpack.c.l.b16 %v1703
    %v1839 = vunpack.c.l.b16 %v1704
    %v1840 = vunpack.c.l.b16 %v1705
    %v1841 = vunpack.c.l.b16 %v1706
    %v1842 = vunpack.c.l.b16 %v1707
    %v1843 = vunpack.c.l.b16 %v1708
    %v1844 = vunpack.c.l.b16 %v1709
    %v1845 = vunpack.c.l.b16 %v1710
    %v1846 = vunpack.c.l.b16 %v1711
    %v1847 = vunpack.c.l.b16 %v1712
    %v1848 = vunpack.c.l.b16 %v1713
    %v1849 = vunpack.c.l.b16 %v1714
    %v1850 = vunpack.c.l.b16 %v1715
    %v1851 = vunpack.c.l.b16 %v1716
    %v1852 = vunpack.c.l.b16 %v1717
    %v1853 = vunpack.c.l.b16 %v1718
    %v1854 = vunpack.c.l.b16 %v1719
    %v1855 = vunpack.c.l.b16 %v1720
    %v1856 = vunpack.c.l.b16 %v1721
    %v1857 = vunpack.c.l.b16 %v1722
    %v1858 = vunpack.c.l.b16 %v1723
    %v1859 = vunpack.c.l.b16 %v1724
    %v1860 = vunpack.c.l.b16 %v1725
    %v1861 = vunpack.c.l.b16 %v1726
    %v1862 = vunpack.c.l.b16 %v1727
    %v1863 = vpack.c.b16 %v1800, %v1799
    %v1864 = vpack.c.b16 %v1802, %v1801
    %v1865 = vpack.c.b16 %v1804, %v1803
    %v1866 = vpack.c.b16 %v1806, %v1805
    %v1867 = vpack.c.b16 %v1808, %v1807
    %v1868 = vpack.c.b16 %v1810, %v1809
    %v1869 = vpack.c.b16 %v1812, %v1811
    %v1870 = vpack.c.b16 %v1814, %v1813
    %v1871 = vpack.c.b16 %v1816, %v1815
    %v1872 = vpack.c.b16 %v1818, %v1817
    %v1873 = vpack.c.b16 %v1820, %v1819
    %v1874 = vpack.c.b16 %v1822, %v1821
    %v1875 = vpack.c.b16 %v1824, %v1823
    %v1876 = vpack.c.b16 %v1826, %v1825
    %v1877 = vpack.c.b16 %v1828, %v1827
    %v1878 = vpack.c.b16 %v1830, %v1829
    %v1879 = vpack.c.b16 %v1832, %v1831
    %v1880 = vpack.c.b16 %v1834, %v1833
    %v1881 = vpack.c.b16 %v1836, %v1835
    %v1882 = vpack.c.b16 %v1838, %v1837
    %v1883 = vpack.c.b16 %v1840, %v1839
    %v1884 = vpack.c.b16 %v1842, %v1841
    %v1885 = vpack.c.b16 %v1844, %v1843
    %v1886 = vpack.c.b16 %v1846, %v1845
    %v1887 = vpack.c.b16 %v1848, %v1847
    %v1888 = vpack.c.b16 %v1850, %v1849
    %v1889 = vpack.c.b16 %v1852, %v1851
    %v1890 = vpack.c.b16 %v1854, %v1853
    %v1891 = vpack.c.b16 %v1856, %v1855
    %v1892 = vpack.c.b16 %v1858, %v1857
    %v1893 = vpack.c.b16 %v1860, %v1859
    %v1894 = vpack.c.b16 %v1862, %v1861
    %1927 = vmatprep.subr.bf16.mxu0 0
    %1928 = vmatpush1.bf16.msra.mxu0 %v1863
    %1929 = vmatprep.subr.bf16.mxu0 0
    %1930 = vmatpush1.bf16.msra.mxu0 %v1864
    %1931 = vmatprep.subr.bf16.mxu0 0
    %1932 = vmatpush1.bf16.msra.mxu0 %v1865
    %1933 = vmatprep.subr.bf16.mxu0 0
    %1934 = vmatpush1.bf16.msra.mxu0 %v1866
    %1935 = vmatprep.subr.bf16.mxu0 0
    %1936 = vmatpush1.bf16.msra.mxu0 %v1867
    %1937 = vmatprep.subr.bf16.mxu0 0
    %1938 = vmatpush1.bf16.msra.mxu0 %v1868
    %1939 = vmatprep.subr.bf16.mxu0 0
    %1940 = vmatpush1.bf16.msra.mxu0 %v1869
    %1941 = vmatprep.subr.bf16.mxu0 0
    %1942 = vmatpush1.bf16.msra.mxu0 %v1870
    %1943 = vmatprep.subr.bf16.mxu0 0
    %1944 = vmatpush1.bf16.msra.mxu0 %v1871
    %1945 = vmatprep.subr.bf16.mxu0 0
    %1946 = vmatpush1.bf16.msra.mxu0 %v1872
    %1947 = vmatprep.subr.bf16.mxu0 0
    %1948 = vmatpush1.bf16.msra.mxu0 %v1873
    %1949 = vmatprep.subr.bf16.mxu0 0
    %1950 = vmatpush1.bf16.msra.mxu0 %v1874
    %1951 = vmatprep.subr.bf16.mxu0 0
    %1952 = vmatpush1.bf16.msra.mxu0 %v1875
    %1953 = vmatprep.subr.bf16.mxu0 0
    %1954 = vmatpush1.bf16.msra.mxu0 %v1876
    %1955 = vmatprep.subr.bf16.mxu0 0
    %1956 = vmatpush1.bf16.msra.mxu0 %v1877
    %1957 = vmatprep.subr.bf16.mxu0 0
    %1958 = vmatpush1.bf16.msra.mxu0 %v1878
    %1959 = vmatprep.mubr.bf16.mxu0 %v1661
    %1960 = vmatmul.mubr.bf16.gmra.mrb[0].mxu0 %v1660
    %v1961 = vpop.f32.mrb[0].mxu0
    %v1962 = vadd.f32 %v1733, %v1961
    %v1963 = vpop.f32.mrb[0].mxu0
    %v1964 = vpop.f32.mrb[0].mxu0
    %v1965 = vadd.f32 %v1733, %v1964
    %v1966 = vpop.f32.mrb[0].mxu0
    %1967 = vdwg.mxu0
    %1968 = vmatprep.subr.bf16.mxu0 0
    %1969 = vmatpush1.bf16.msra.mxu0 %v1879
    %1970 = vmatprep.subr.bf16.mxu0 0
    %1971 = vmatpush1.bf16.msra.mxu0 %v1880
    %1972 = vmatprep.subr.bf16.mxu0 0
    %1973 = vmatpush1.bf16.msra.mxu0 %v1881
    %1974 = vmatprep.subr.bf16.mxu0 0
    %1975 = vmatpush1.bf16.msra.mxu0 %v1882
    %1976 = vmatprep.subr.bf16.mxu0 0
    %1977 = vmatpush1.bf16.msra.mxu0 %v1883
    %1978 = vmatprep.subr.bf16.mxu0 0
    %1979 = vmatpush1.bf16.msra.mxu0 %v1884
    %1980 = vmatprep.subr.bf16.mxu0 0
    %1981 = vmatpush1.bf16.msra.mxu0 %v1885
    %1982 = vmatprep.subr.bf16.mxu0 0
    %1983 = vmatpush1.bf16.msra.mxu0 %v1886
    %1984 = vmatprep.subr.bf16.mxu0 0
    %1985 = vmatpush1.bf16.msra.mxu0 %v1887
    %1986 = vmatprep.subr.bf16.mxu0 0
    %1987 = vmatpush1.bf16.msra.mxu0 %v1888
    %1988 = vmatprep.subr.bf16.mxu0 0
    %1989 = vmatpush1.bf16.msra.mxu0 %v1889
    %1990 = vmatprep.subr.bf16.mxu0 0
    %1991 = vmatpush1.bf16.msra.mxu0 %v1890
    %1992 = vmatprep.subr.bf16.mxu0 0
    %1993 = vmatpush1.bf16.msra.mxu0 %v1891
    %1994 = vmatprep.subr.bf16.mxu0 0
    %1995 = vmatpush1.bf16.msra.mxu0 %v1892
    %1996 = vmatprep.subr.bf16.mxu0 0
    %1997 = vmatpush1.bf16.msra.mxu0 %v1893
    %1998 = vmatprep.subr.bf16.mxu0 0
    %1999 = vmatpush1.bf16.msra.mxu0 %v1894
    %2000 = vmatprep.mubr.bf16.mxu0 %v1663
    %2001 = vmatmul.mubr.bf16.gmra.mrb[0].mxu0 %v1662
    %v2002 = vpop.f32.mrb[0].mxu0
    %v2003 = vadd.f32 %v1962, %v2002
    %v2004 = vpop.f32.mrb[0].mxu0
    %v2005 = vpop.f32.mrb[0].mxu0
    %v2006 = vadd.f32 %v1965, %v2005
    %v2007 = vpop.f32.mrb[0].mxu0
    %2008 = vdwg.mxu0
    %2009 = vst [vmem:[#allocation11] sm:$0xff] %v2003
    %2010 = vst [vmem:[#allocation11 + $0x8] sm:$0xff] %v2006
    // Predicated region
    $region58: #{tpu_custom_call.1} parent=1 // pred_check
      _
    $region59: #{tpu_custom_call.1} parent=1 // pred_check_branch
      %2012 = sbr.rel (0) target = $region61
    $region60: #{tpu_custom_call.1} parent=1 // pred_region
      %s2014 = ssub.s32 256, 256
      %2015 = vsyncadd [#allocation4], %s2014
      %s2016 = sshll.u32 [#allocation11], 4
      %s2017 = int_to_ptr.vmem [resolvable:$true] %s2016
      %2022 = dma.vmem_to_hbm [thread:$0]  %s2017, 256, %s9, [#allocation4], 128, 128, 8
    $region61: #{tpu_custom_call.1} parent=1 // pred_fallthru
      _
    // Predicated region
    $region62: #{tpu_custom_call.1} parent=1 // pred_check
      _
    $region63: #{tpu_custom_call.1} parent=1 // pred_check_branch
      %2024 = sbr.rel (0) target = $region65
    $region64: #{tpu_custom_call.1} parent=1 // pred_region
      %2025 = dma.done [#allocation4], 256
    $region65: #{tpu_custom_call.1} parent=1 // pred_fallthru
      _
    %2026 = vsyncpa [#allocation3], 1
    %2027 = vsyncpa [#allocation6], 1
    %2028 = vsyncpa [#allocation9], 1
    %2029 = vsyncpa [#allocation4], 1

</llo_original>
